<compile_context>
chip_gen: v5e
topology: v5e:2x2
jax: 0.10.0
libtpu: 0.0.40
codegen_flags: <defaults>
</compile_context>

<pallas_src>
import math

import numpy as np
import jax
import jax.numpy as jnp
from jax.experimental import pallas as pl
from jax.experimental.pallas import tpu as pltpu


# ----------------------------- static shape config ----------------------------------
NUM_REPR = 4                    # num_repr
BATCH = 2                       # B
T_IN = 16                       # time
IDIM = 80                       # input feature dim (=> 19 freq bins after 2x conv)
ODIM = 32                       # odim / hidden


def _conv_out(n):               # Conv2d(kernel=3, stride=2, no padding)
    return (n - 3) // 2 + 1


T1, F1 = _conv_out(T_IN), _conv_out(IDIM)      # 7, 39
T2, F2 = _conv_out(T1), _conv_out(F1)          # 3, 19   (19*odim == compress in-dim)
R, B = NUM_REPR, BATCH
QP = 64                                        # per-batch padded rows (T2*F2 = 57 -> 64)
ROWS = B * QP                                  # 128 kernel rows = (b, q)
LANES1 = R * ODIM                              # 128 lanes = (repr, channel)
K1 = R * 9                                     # conv1 contraction (repr, conv1 tap) = 36
K2 = 9 * LANES1                                # conv2 contraction (tap, repr, ic) = 1152
CDIM = F2 * ODIM                               # 608 compress in-dim per repr (j, c2)
Q_VALID = T2 * F2                              # 57 valid rows per batch
OUT_ROWS = 8                                   # padded B*T2 = 6 -> 8
XSCALE = math.sqrt(ODIM)                       # pos-enc scale (folded into weights)


# ----------------------------------- kernel -----------------------------------------
def _fused_subsample_kernel(
    p1_ref,                    # (9, 128, 36) bf16 : conv1 patches per conv2 tap
    w1_ref, b1_ref,            # conv1 block-diag weight / bias
    w2_ref, b2_ref,            # shared conv2 stacked long-K weight / bias
    wf_ref, m_ref, l_ref, rs_ref, bias_ref,   # compress+out (wout & xscale folded)
    out_ref,                   # (8, 32) f32, rows = (b, t') padded
    h1_scr,                    # (128, 1152) bf16 VMEM scratch, lanes = (tap, r, c)
):
    f32 = jnp.float32
    bf16 = jnp.bfloat16

    w1 = w1_ref[...]                                      # (36, 128) bf16
    b1 = b1_ref[...]                                      # (1, 128) f32

    # ---- conv1 at the 9 conv2-tap-expanded positions: 9 independent matmuls ----
    for tap in range(9):                                  # static unroll
        h = jnp.dot(p1_ref[tap], w1, preferred_element_type=f32)      # (128, 128)
        h1_scr[:, tap * LANES1:(tap + 1) * LANES1] = (
            jnp.maximum(h + b1, 0.0).astype(bf16))

    # ---- shared conv2: ONE long-K matmul over (tap, ic); lanes stay (r, oc) ----
    h2 = jnp.dot(h1_scr[...], w2_ref[...], preferred_element_type=f32)  # (128, 128)
    h2 = jnp.maximum(h2 + b2_ref[...], 0.0).astype(bf16)

    # ---- compress Linear(19*odim->odim) per repr, xscale + final out Linear folded:
    #      masked-E contraction batched over all (b, time, freq) rows at once. ----
    e = jnp.dot(h2, wf_ref[...], preferred_element_type=f32)            # (128, 608)
    e = e.astype(bf16) * m_ref[...]            # keep only the row's own freq block
    c1 = jnp.dot(l_ref[...], e, preferred_element_type=f32)             # (8, 608)
    out = jnp.dot(c1.astype(bf16), rs_ref[...], preferred_element_type=f32)  # (8, 32)
    out_ref[...] = out + bias_ref[...]


# --------------------------- wrapper: operand packing --------------------------------
def _build_static_operands(params):
    """Pack PyTorch-layout params into compact bf16 kernel operands."""
    w1 = np.asarray(params["w1"], np.float32)      # (R, ODIM, 1, 3, 3)
    b1 = np.asarray(params["b1"], np.float32)      # (R, ODIM)
    w2 = np.asarray(params["w2"], np.float32)      # (ODIM, ODIM, 3, 3)  shared
    b2 = np.asarray(params["b2"], np.float32)      # (ODIM,)
    wc = np.asarray(params["wc"], np.float32)      # (R, ODIM, 19*ODIM)
    bc = np.asarray(params["bc"], np.float32)      # (R, ODIM)
    wout = np.asarray(params["wout"], np.float32)  # (ODIM, R*ODIM)
    bout = np.asarray(params["bout"], np.float32)  # (ODIM,)

    # conv1: block-diagonal (r, conv1 tap) -> (r, channel), shared over batch (rows).
    w1flat = w1[:, :, 0].reshape(R, ODIM, 9)                       # [r, c, t1]
    w1bd = np.zeros((K1, LANES1), np.float32)
    for r in range(R):
        w1bd[r * 9:(r + 1) * 9, r * ODIM:(r + 1) * ODIM] = w1flat[r].T
    b1row = b1.reshape(1, LANES1)

    # conv2 (shared): long-K stacked weight (tap, r, ic) -> (r, oc).
    w2taps = w2.transpose(2, 3, 1, 0).reshape(9, ODIM, ODIM)       # [tap, ic, oc]
    eye_r = np.eye(R, dtype=np.float32)
    w2stack = np.concatenate([np.kron(eye_r, w2taps[t]) for t in range(9)], axis=0)
    b2row = np.tile(b2, R).reshape(1, LANES1)

    # compress + final out Linear folded (all-linear, exact), xscale included:
    #   wfold[(r, c2), (j, od)] = XSCALE * sum_oc wc[r][oc, j*OD + c2] * wout[od, r*OD + oc]
    wfold = np.zeros((LANES1, CDIM), np.float32)
    for r in range(R):
        wout_r = wout[:, r * ODIM:(r + 1) * ODIM]                  # (od, oc)
        wc_r = wc[r].reshape(ODIM, F2, ODIM)                       # (oc, j, c2)
        weff = np.einsum("ojc,do->cjd", wc_r, wout_r) * XSCALE     # (c2, j, od)
        wfold[r * ODIM:(r + 1) * ODIM, :] = weff.reshape(ODIM, CDIM)
    bias = (bout + XSCALE * wout @ bc.reshape(-1)).reshape(1, ODIM)

    # masked-E selection constants (0/1, exact in bf16); padding rows are zeroed.
    m = np.zeros((ROWS, CDIM), np.float32)
    lmat = np.zeros((OUT_ROWS, ROWS), np.float32)
    for b in range(B):
        for i in range(T2):
            lmat[b * T2 + i, b * QP + i * F2: b * QP + (i + 1) * F2] = 1.0
        for q in range(Q_VALID):
            j = q % F2
            m[b * QP + q, j * ODIM:(j + 1) * ODIM] = 1.0
    rsum = np.tile(np.eye(ODIM, dtype=np.float32), (F2, 1))        # (608, 32)

    bf = jnp.bfloat16
    return dict(
        w1bd=jnp.asarray(w1bd, bf), b1row=jnp.asarray(b1row),
        w2stack=jnp.asarray(w2stack, bf), b2row=jnp.asarray(b2row),
        wfold=jnp.asarray(wfold, bf), m=jnp.asarray(m, bf),
        lmat=jnp.asarray(lmat, bf), rsum=jnp.asarray(rsum, bf),
        bias=jnp.asarray(bias),
    )


def _build_patches(xs):
    """xs (R, B, T, IDIM) -> conv1 im2col patches at conv2-tap-expanded positions.

    Returns (9, B*QP, R*9) bf16, axes = [conv2 tap, (b, padded q=i*F2+j), (r, conv1 tap)].
    Pure layout work, done in the wrapper; replaces the in-kernel one-hot gather matmuls.
    """
    slabs = []
    for ki in range(3):
        for kj in range(3):
            cols = []
            for ki1 in range(3):
                for kj1 in range(3):
                    r0, c0 = 2 * ki + ki1, 2 * kj + kj1
                    # input index = 4*i + 2*ki + ki1 , 4*j + 2*kj + kj1
                    cols.append(xs[:, :, r0:r0 + 4 * (T2 - 1) + 1:4,
                                 c0:c0 + 4 * (F2 - 1) + 1:4])        # (R, B, T2, F2)
            blk = jnp.stack(cols, axis=-1)                           # (R, B, T2, F2, 9)
            blk = jnp.transpose(blk, (1, 2, 3, 0, 4))                # (B, T2, F2, R, 9)
            blk = blk.reshape(B, Q_VALID, K1)
            blk = jnp.pad(blk, ((0, 0), (0, QP - Q_VALID), (0, 0)))  # pad q to 64
            slabs.append(blk.reshape(ROWS, K1))
    return jnp.stack(slabs, axis=0).astype(jnp.bfloat16)             # (9, 128, 36)


@jax.jit
def _fused_forward(xs, packed):
    p1 = _build_patches(xs)
    operands = (p1, packed["w1bd"], packed["b1row"], packed["w2stack"], packed["b2row"],
                packed["wfold"], packed["m"], packed["lmat"], packed["rsum"],
                packed["bias"])
    in_specs = [pl.BlockSpec(o.shape, lambda i, nd=o.ndim: (0,) * nd) for o in operands]
    out = pl.pallas_call(
        _fused_subsample_kernel,
        out_shape=jax.ShapeDtypeStruct((OUT_ROWS, ODIM), jnp.float32),
        grid=(1,),
        in_specs=in_specs,
        out_specs=pl.BlockSpec((OUT_ROWS, ODIM), lambda i: (0, 0)),
        scratch_shapes=[pltpu.VMEM((ROWS, K2), jnp.bfloat16)],
        compiler_params=pltpu.CompilerParams(dimension_semantics=("arbitrary",)),
    )(*operands)
    return out[:B * T2].reshape(B, T2, ODIM)


def _positional_encoding(length, d_model):
    pos = np.arange(length, dtype=np.float32)[:, None]
    div = np.exp(np.arange(0, d_model, 2, dtype=np.float32)
                 * -(math.log(10000.0) / d_model))
    pe = np.zeros((length, d_model), np.float32)
    pe[:, 0::2] = np.sin(pos * div)
    pe[:, 1::2] = np.cos(pos * div)
    return jnp.asarray(pe[None])                                    # (1, length, d_model)


def conv2d_subsampling_fused(x_list, x_mask, packed):
    """Mirrors Conv2dSubsamplingFUSED_29.forward: returns ((x, pos_emb), mask)."""
    xs = jnp.stack(x_list, axis=0)                                  # (R, B, T, IDIM)
    x_out = _fused_forward(xs, packed)                              # (B, T2, ODIM)
    pos_emb = _positional_encoding(T2, ODIM)
    if x_mask is None:
        return (x_out, pos_emb), None
    return (x_out, pos_emb), x_mask[:, :, :-2:2][:, :, :-2:2]


# ------------------------------ parameters & reference -------------------------------
def make_params(key):
    ks = jax.random.split(key, 8)
    s = 0.1

    def w(k, shape):
        return jax.random.normal(k, shape, dtype=jnp.float32) * s

    return dict(
        w1=w(ks[0], (R, ODIM, 1, 3, 3)), b1=w(ks[1], (R, ODIM)),     # per-repr Conv2d(1,odim,3,2)
        w2=w(ks[2], (ODIM, ODIM, 3, 3)), b2=w(ks[3], (ODIM,)),       # shared Conv2d(odim,odim,3,2)
        wc=w(ks[4], (R, ODIM, F2 * ODIM)), bc=w(ks[5], (R, ODIM)),   # per-repr Linear(19*odim, odim)
        wout=w(ks[6], (ODIM, R * ODIM)), bout=w(ks[7], (ODIM,)),     # Linear(4*odim, odim)
    )


def reference_forward(x_list, x_mask, params):
    """Pure-JAX f32 reference mirroring the PyTorch forward (dropout = identity)."""
    hi = jax.lax.Precision.HIGHEST
    outs = []
    for r in range(R):
        x = x_list[r]                                               # (B, T, IDIM)
        h1 = jnp.zeros((B, T1, F1, ODIM), jnp.float32)
        for ki in range(3):
            for kj in range(3):
                patch = x[:, ki:ki + 2 * T1:2, kj:kj + 2 * F1:2]
                h1 = h1 + patch[..., None] * params["w1"][r, :, 0, ki, kj]
        h1 = jax.nn.relu(h1 + params["b1"][r])
        h2 = jnp.zeros((B, T2, F2, ODIM), jnp.float32)
        for ki in range(3):
            for kj in range(3):
                patch = h1[:, ki:ki + 2 * T2:2, kj:kj + 2 * F2:2, :]
                h2 = h2 + jnp.einsum("btfi,oi->btfo", patch,
                                     params["w2"][:, :, ki, kj], precision=hi)
        h2 = jax.nn.relu(h2 + params["b2"])
        hf = h2.reshape(B, T2, F2 * ODIM)
        y = jnp.einsum("btk,ok->bto", hf, params["wc"][r], precision=hi) + params["bc"][r]
        outs.append(y * XSCALE)
    cat = jnp.concatenate(outs, axis=-1)
    x_out = jnp.einsum("btk,ok->bto", cat, params["wout"], precision=hi) + params["bout"]
    pos_emb = _positional_encoding(T2, ODIM)
    mask = None if x_mask is None else x_mask[:, :, :-2:2][:, :, :-2:2]
    return (x_out, pos_emb), mask


# --------------------------------------- main ----------------------------------------
if __name__ == "__main__":
    key = jax.random.PRNGKey(0)
    k_xs, k_p = jax.random.split(key)
    xk = jax.random.split(k_xs, R)
    x_list = [jax.random.normal(xk[r], (B, T_IN, IDIM), dtype=jnp.float32)
              for r in range(R)]
    x_mask = jnp.ones((B, 1, T_IN), dtype=bool)

    params = make_params(k_p)
    packed = _build_static_operands(params)

    (x_out, pos_emb), mask_sub = conv2d_subsampling_fused(x_list, x_mask, packed)
    x_out = jax.block_until_ready(x_out)

    (x_ref, _), mask_ref = reference_forward(x_list, x_mask, params)

    assert x_out.shape == (B, T2, ODIM)
    assert pos_emb.shape == (1, T2, ODIM)
    assert mask_sub.shape == (B, 1, T2)

    # bf16 matmul inputs (f32 accumulation) vs an f32 HIGHEST-precision reference:
    # expected relative error ~0.5-1%; a structural bug gives O(100%) errors.
    ref_scale = float(jnp.max(jnp.abs(x_ref)))
    max_err = float(jnp.max(jnp.abs(x_out - x_ref)))
    assert max_err <= 3e-2 * ref_scale + 1e-4, (
        f"mismatch vs JAX reference: max_err={max_err}, ref_scale={ref_scale}")
    assert jnp.array_equal(mask_sub, mask_ref)

    print("KERNEL_OK")
</pallas_src>

<mosaic_0001>
module attributes {stable_mosaic.version = 11 : i64} {
  func.func @_fused_subsample_kernel(%arg0: i32, %arg1: memref<9x128x36xbf16, #tpu.memory_space<vmem>>, %arg2: memref<36x128xbf16, #tpu.memory_space<vmem>>, %arg3: memref<1x128xf32, #tpu.memory_space<vmem>>, %arg4: memref<1152x128xbf16, #tpu.memory_space<vmem>>, %arg5: memref<1x128xf32, #tpu.memory_space<vmem>>, %arg6: memref<128x608xbf16, #tpu.memory_space<vmem>>, %arg7: memref<128x608xbf16, #tpu.memory_space<vmem>>, %arg8: memref<8x128xbf16, #tpu.memory_space<vmem>>, %arg9: memref<608x32xbf16, #tpu.memory_space<vmem>>, %arg10: memref<1x32xf32, #tpu.memory_space<vmem>>, %arg11: memref<8x32xf32, #tpu.memory_space<vmem>>, %arg12: memref<128x1152xbf16, #tpu.memory_space<vmem>>) attributes {dimension_semantics = [#tpu.dimension_semantics<arbitrary>], iteration_bounds = array<i64: 1>, scalar_prefetch = 0 : i64, scratch_operands = 1 : i64, tpu.core_type = #tpu.core_type<tc>, window_params = [{pipeline_mode = #tpu.pipeline_mode<synchronous>, transform_indices = @transform_0, window_bounds = array<i64: 9, 128, 36>}, {pipeline_mode = #tpu.pipeline_mode<synchronous>, transform_indices = @transform_1, window_bounds = array<i64: 36, 128>}, {pipeline_mode = #tpu.pipeline_mode<synchronous>, transform_indices = @transform_2, window_bounds = array<i64: 1, 128>}, {pipeline_mode = #tpu.pipeline_mode<synchronous>, transform_indices = @transform_3, window_bounds = array<i64: 1152, 128>}, {pipeline_mode = #tpu.pipeline_mode<synchronous>, transform_indices = @transform_4, window_bounds = array<i64: 1, 128>}, {pipeline_mode = #tpu.pipeline_mode<synchronous>, transform_indices = @transform_5, window_bounds = array<i64: 128, 608>}, {pipeline_mode = #tpu.pipeline_mode<synchronous>, transform_indices = @transform_6, window_bounds = array<i64: 128, 608>}, {pipeline_mode = #tpu.pipeline_mode<synchronous>, transform_indices = @transform_7, window_bounds = array<i64: 8, 128>}, {pipeline_mode = #tpu.pipeline_mode<synchronous>, transform_indices = @transform_8, window_bounds = array<i64: 608, 32>}, {pipeline_mode = #tpu.pipeline_mode<synchronous>, transform_indices = @transform_9, window_bounds = array<i64: 1, 32>}, {pipeline_mode = #tpu.pipeline_mode<synchronous>, transform_indices = @transform_10, window_bounds = array<i64: 8, 32>}]} {
    %c0 = arith.constant 0 : index
    %c0_0 = arith.constant 0 : index
    %0 = vector.load %arg2[%c0, %c0_0] : memref<36x128xbf16, #tpu.memory_space<vmem>>, vector<36x128xbf16>
    %c0_1 = arith.constant 0 : index
    %c0_2 = arith.constant 0 : index
    %1 = vector.load %arg3[%c0_1, %c0_2] : memref<1x128xf32, #tpu.memory_space<vmem>>, vector<1x128xf32>
    %c0_3 = arith.constant 0 : index
    %c0_4 = arith.constant 0 : index
    %c0_5 = arith.constant 0 : index
    %2 = vector.load %arg1[%c0_3, %c0_4, %c0_5] : memref<9x128x36xbf16, #tpu.memory_space<vmem>>, vector<1x128x36xbf16>
    %3 = vector.shape_cast %2 : vector<1x128x36xbf16> to vector<128x36xbf16>
    %cst = arith.constant dense<0.000000e+00> : vector<128x128xf32>
    %4 = tpu.matmul %3, %0, %cst {dimension_numbers = #tpu.dot_dimension_numbers<[1], [0], [0], [1], [0, 0, 1, 1], [], []>} : vector<128x36xbf16>, vector<36x128xbf16>, vector<128x128xf32> -> vector<128x128xf32>
    %5 = vector.broadcast %1 : vector<1x128xf32> to vector<128x128xf32>
    %6 = arith.addf %4, %5 : vector<128x128xf32>
    %cst_6 = arith.constant 0.000000e+00 : f32
    %7 = vector.broadcast %cst_6 : f32 to vector<128x128xf32>
    %8 = arith.maximumf %6, %7 : vector<128x128xf32>
    %9 = arith.truncf %8 : vector<128x128xf32> to vector<128x128xbf16>
    %c0_7 = arith.constant 0 : index
    %c0_8 = arith.constant 0 : index
    %10 = vector.load %arg12[%c0_7, %c0_8] : memref<128x1152xbf16, #tpu.memory_space<vmem>>, vector<128x128xbf16>
    tpu.vector_store %arg12[%c0_7, %c0_8], %9 {strides = array<i32>} : memref<128x1152xbf16, #tpu.memory_space<vmem>>, vector<128x128xbf16>,
    %c1 = arith.constant 1 : index
    %c0_9 = arith.constant 0 : index
    %c0_10 = arith.constant 0 : index
    %11 = vector.load %arg1[%c1, %c0_9, %c0_10] : memref<9x128x36xbf16, #tpu.memory_space<vmem>>, vector<1x128x36xbf16>
    %12 = vector.shape_cast %11 : vector<1x128x36xbf16> to vector<128x36xbf16>
    %cst_11 = arith.constant dense<0.000000e+00> : vector<128x128xf32>
    %13 = tpu.matmul %12, %0, %cst_11 {dimension_numbers = #tpu.dot_dimension_numbers<[1], [0], [0], [1], [0, 0, 1, 1], [], []>} : vector<128x36xbf16>, vector<36x128xbf16>, vector<128x128xf32> -> vector<128x128xf32>
    %14 = vector.broadcast %1 : vector<1x128xf32> to vector<128x128xf32>
    %15 = arith.addf %13, %14 : vector<128x128xf32>
    %cst_12 = arith.constant 0.000000e+00 : f32
    %16 = vector.broadcast %cst_12 : f32 to vector<128x128xf32>
    %17 = arith.maximumf %15, %16 : vector<128x128xf32>
    %18 = arith.truncf %17 : vector<128x128xf32> to vector<128x128xbf16>
    %c0_13 = arith.constant 0 : index
    %c128 = arith.constant 128 : index
    %19 = vector.load %arg12[%c0_13, %c128] : memref<128x1152xbf16, #tpu.memory_space<vmem>>, vector<128x128xbf16>
    tpu.vector_store %arg12[%c0_13, %c128], %18 {strides = array<i32>} : memref<128x1152xbf16, #tpu.memory_space<vmem>>, vector<128x128xbf16>,
    %c2 = arith.constant 2 : index
    %c0_14 = arith.constant 0 : index
    %c0_15 = arith.constant 0 : index
    %20 = vector.load %arg1[%c2, %c0_14, %c0_15] : memref<9x128x36xbf16, #tpu.memory_space<vmem>>, vector<1x128x36xbf16>
    %21 = vector.shape_cast %20 : vector<1x128x36xbf16> to vector<128x36xbf16>
    %cst_16 = arith.constant dense<0.000000e+00> : vector<128x128xf32>
    %22 = tpu.matmul %21, %0, %cst_16 {dimension_numbers = #tpu.dot_dimension_numbers<[1], [0], [0], [1], [0, 0, 1, 1], [], []>} : vector<128x36xbf16>, vector<36x128xbf16>, vector<128x128xf32> -> vector<128x128xf32>
    %23 = vector.broadcast %1 : vector<1x128xf32> to vector<128x128xf32>
    %24 = arith.addf %22, %23 : vector<128x128xf32>
    %cst_17 = arith.constant 0.000000e+00 : f32
    %25 = vector.broadcast %cst_17 : f32 to vector<128x128xf32>
    %26 = arith.maximumf %24, %25 : vector<128x128xf32>
    %27 = arith.truncf %26 : vector<128x128xf32> to vector<128x128xbf16>
    %c0_18 = arith.constant 0 : index
    %c256 = arith.constant 256 : index
    %28 = vector.load %arg12[%c0_18, %c256] : memref<128x1152xbf16, #tpu.memory_space<vmem>>, vector<128x128xbf16>
    tpu.vector_store %arg12[%c0_18, %c256], %27 {strides = array<i32>} : memref<128x1152xbf16, #tpu.memory_space<vmem>>, vector<128x128xbf16>,
    %c3 = arith.constant 3 : index
    %c0_19 = arith.constant 0 : index
    %c0_20 = arith.constant 0 : index
    %29 = vector.load %arg1[%c3, %c0_19, %c0_20] : memref<9x128x36xbf16, #tpu.memory_space<vmem>>, vector<1x128x36xbf16>
    %30 = vector.shape_cast %29 : vector<1x128x36xbf16> to vector<128x36xbf16>
    %cst_21 = arith.constant dense<0.000000e+00> : vector<128x128xf32>
    %31 = tpu.matmul %30, %0, %cst_21 {dimension_numbers = #tpu.dot_dimension_numbers<[1], [0], [0], [1], [0, 0, 1, 1], [], []>} : vector<128x36xbf16>, vector<36x128xbf16>, vector<128x128xf32> -> vector<128x128xf32>
    %32 = vector.broadcast %1 : vector<1x128xf32> to vector<128x128xf32>
    %33 = arith.addf %31, %32 : vector<128x128xf32>
    %cst_22 = arith.constant 0.000000e+00 : f32
    %34 = vector.broadcast %cst_22 : f32 to vector<128x128xf32>
    %35 = arith.maximumf %33, %34 : vector<128x128xf32>
    %36 = arith.truncf %35 : vector<128x128xf32> to vector<128x128xbf16>
    %c0_23 = arith.constant 0 : index
    %c384 = arith.constant 384 : index
    %37 = vector.load %arg12[%c0_23, %c384] : memref<128x1152xbf16, #tpu.memory_space<vmem>>, vector<128x128xbf16>
    tpu.vector_store %arg12[%c0_23, %c384], %36 {strides = array<i32>} : memref<128x1152xbf16, #tpu.memory_space<vmem>>, vector<128x128xbf16>,
    %c4 = arith.constant 4 : index
    %c0_24 = arith.constant 0 : index
    %c0_25 = arith.constant 0 : index
    %38 = vector.load %arg1[%c4, %c0_24, %c0_25] : memref<9x128x36xbf16, #tpu.memory_space<vmem>>, vector<1x128x36xbf16>
    %39 = vector.shape_cast %38 : vector<1x128x36xbf16> to vector<128x36xbf16>
    %cst_26 = arith.constant dense<0.000000e+00> : vector<128x128xf32>
    %40 = tpu.matmul %39, %0, %cst_26 {dimension_numbers = #tpu.dot_dimension_numbers<[1], [0], [0], [1], [0, 0, 1, 1], [], []>} : vector<128x36xbf16>, vector<36x128xbf16>, vector<128x128xf32> -> vector<128x128xf32>
    %41 = vector.broadcast %1 : vector<1x128xf32> to vector<128x128xf32>
    %42 = arith.addf %40, %41 : vector<128x128xf32>
    %cst_27 = arith.constant 0.000000e+00 : f32
    %43 = vector.broadcast %cst_27 : f32 to vector<128x128xf32>
    %44 = arith.maximumf %42, %43 : vector<128x128xf32>
    %45 = arith.truncf %44 : vector<128x128xf32> to vector<128x128xbf16>
    %c0_28 = arith.constant 0 : index
    %c512 = arith.constant 512 : index
    %46 = vector.load %arg12[%c0_28, %c512] : memref<128x1152xbf16, #tpu.memory_space<vmem>>, vector<128x128xbf16>
    tpu.vector_store %arg12[%c0_28, %c512], %45 {strides = array<i32>} : memref<128x1152xbf16, #tpu.memory_space<vmem>>, vector<128x128xbf16>,
    %c5 = arith.constant 5 : index
    %c0_29 = arith.constant 0 : index
    %c0_30 = arith.constant 0 : index
    %47 = vector.load %arg1[%c5, %c0_29, %c0_30] : memref<9x128x36xbf16, #tpu.memory_space<vmem>>, vector<1x128x36xbf16>
    %48 = vector.shape_cast %47 : vector<1x128x36xbf16> to vector<128x36xbf16>
    %cst_31 = arith.constant dense<0.000000e+00> : vector<128x128xf32>
    %49 = tpu.matmul %48, %0, %cst_31 {dimension_numbers = #tpu.dot_dimension_numbers<[1], [0], [0], [1], [0, 0, 1, 1], [], []>} : vector<128x36xbf16>, vector<36x128xbf16>, vector<128x128xf32> -> vector<128x128xf32>
    %50 = vector.broadcast %1 : vector<1x128xf32> to vector<128x128xf32>
    %51 = arith.addf %49, %50 : vector<128x128xf32>
    %cst_32 = arith.constant 0.000000e+00 : f32
    %52 = vector.broadcast %cst_32 : f32 to vector<128x128xf32>
    %53 = arith.maximumf %51, %52 : vector<128x128xf32>
    %54 = arith.truncf %53 : vector<128x128xf32> to vector<128x128xbf16>
    %c0_33 = arith.constant 0 : index
    %c640 = arith.constant 640 : index
    %55 = vector.load %arg12[%c0_33, %c640] : memref<128x1152xbf16, #tpu.memory_space<vmem>>, vector<128x128xbf16>
    tpu.vector_store %arg12[%c0_33, %c640], %54 {strides = array<i32>} : memref<128x1152xbf16, #tpu.memory_space<vmem>>, vector<128x128xbf16>,
    %c6 = arith.constant 6 : index
    %c0_34 = arith.constant 0 : index
    %c0_35 = arith.constant 0 : index
    %56 = vector.load %arg1[%c6, %c0_34, %c0_35] : memref<9x128x36xbf16, #tpu.memory_space<vmem>>, vector<1x128x36xbf16>
    %57 = vector.shape_cast %56 : vector<1x128x36xbf16> to vector<128x36xbf16>
    %cst_36 = arith.constant dense<0.000000e+00> : vector<128x128xf32>
    %58 = tpu.matmul %57, %0, %cst_36 {dimension_numbers = #tpu.dot_dimension_numbers<[1], [0], [0], [1], [0, 0, 1, 1], [], []>} : vector<128x36xbf16>, vector<36x128xbf16>, vector<128x128xf32> -> vector<128x128xf32>
    %59 = vector.broadcast %1 : vector<1x128xf32> to vector<128x128xf32>
    %60 = arith.addf %58, %59 : vector<128x128xf32>
    %cst_37 = arith.constant 0.000000e+00 : f32
    %61 = vector.broadcast %cst_37 : f32 to vector<128x128xf32>
    %62 = arith.maximumf %60, %61 : vector<128x128xf32>
    %63 = arith.truncf %62 : vector<128x128xf32> to vector<128x128xbf16>
    %c0_38 = arith.constant 0 : index
    %c768 = arith.constant 768 : index
    %64 = vector.load %arg12[%c0_38, %c768] : memref<128x1152xbf16, #tpu.memory_space<vmem>>, vector<128x128xbf16>
    tpu.vector_store %arg12[%c0_38, %c768], %63 {strides = array<i32>} : memref<128x1152xbf16, #tpu.memory_space<vmem>>, vector<128x128xbf16>,
    %c7 = arith.constant 7 : index
    %c0_39 = arith.constant 0 : index
    %c0_40 = arith.constant 0 : index
    %65 = vector.load %arg1[%c7, %c0_39, %c0_40] : memref<9x128x36xbf16, #tpu.memory_space<vmem>>, vector<1x128x36xbf16>
    %66 = vector.shape_cast %65 : vector<1x128x36xbf16> to vector<128x36xbf16>
    %cst_41 = arith.constant dense<0.000000e+00> : vector<128x128xf32>
    %67 = tpu.matmul %66, %0, %cst_41 {dimension_numbers = #tpu.dot_dimension_numbers<[1], [0], [0], [1], [0, 0, 1, 1], [], []>} : vector<128x36xbf16>, vector<36x128xbf16>, vector<128x128xf32> -> vector<128x128xf32>
    %68 = vector.broadcast %1 : vector<1x128xf32> to vector<128x128xf32>
    %69 = arith.addf %67, %68 : vector<128x128xf32>
    %cst_42 = arith.constant 0.000000e+00 : f32
    %70 = vector.broadcast %cst_42 : f32 to vector<128x128xf32>
    %71 = arith.maximumf %69, %70 : vector<128x128xf32>
    %72 = arith.truncf %71 : vector<128x128xf32> to vector<128x128xbf16>
    %c0_43 = arith.constant 0 : index
    %c896 = arith.constant 896 : index
    %73 = vector.load %arg12[%c0_43, %c896] : memref<128x1152xbf16, #tpu.memory_space<vmem>>, vector<128x128xbf16>
    tpu.vector_store %arg12[%c0_43, %c896], %72 {strides = array<i32>} : memref<128x1152xbf16, #tpu.memory_space<vmem>>, vector<128x128xbf16>,
    %c8 = arith.constant 8 : index
    %c0_44 = arith.constant 0 : index
    %c0_45 = arith.constant 0 : index
    %74 = vector.load %arg1[%c8, %c0_44, %c0_45] : memref<9x128x36xbf16, #tpu.memory_space<vmem>>, vector<1x128x36xbf16>
    %75 = vector.shape_cast %74 : vector<1x128x36xbf16> to vector<128x36xbf16>
    %cst_46 = arith.constant dense<0.000000e+00> : vector<128x128xf32>
    %76 = tpu.matmul %75, %0, %cst_46 {dimension_numbers = #tpu.dot_dimension_numbers<[1], [0], [0], [1], [0, 0, 1, 1], [], []>} : vector<128x36xbf16>, vector<36x128xbf16>, vector<128x128xf32> -> vector<128x128xf32>
    %77 = vector.broadcast %1 : vector<1x128xf32> to vector<128x128xf32>
    %78 = arith.addf %76, %77 : vector<128x128xf32>
    %cst_47 = arith.constant 0.000000e+00 : f32
    %79 = vector.broadcast %cst_47 : f32 to vector<128x128xf32>
    %80 = arith.maximumf %78, %79 : vector<128x128xf32>
    %81 = arith.truncf %80 : vector<128x128xf32> to vector<128x128xbf16>
    %c0_48 = arith.constant 0 : index
    %c1024 = arith.constant 1024 : index
    %82 = vector.load %arg12[%c0_48, %c1024] : memref<128x1152xbf16, #tpu.memory_space<vmem>>, vector<128x128xbf16>
    tpu.vector_store %arg12[%c0_48, %c1024], %81 {strides = array<i32>} : memref<128x1152xbf16, #tpu.memory_space<vmem>>, vector<128x128xbf16>,
    %c0_49 = arith.constant 0 : index
    %c0_50 = arith.constant 0 : index
    %83 = vector.load %arg12[%c0_49, %c0_50] : memref<128x1152xbf16, #tpu.memory_space<vmem>>, vector<128x1152xbf16>
    %c0_51 = arith.constant 0 : index
    %c0_52 = arith.constant 0 : index
    %84 = vector.load %arg4[%c0_51, %c0_52] : memref<1152x128xbf16, #tpu.memory_space<vmem>>, vector<1152x128xbf16>
    %cst_53 = arith.constant dense<0.000000e+00> : vector<128x128xf32>
    %85 = tpu.matmul %83, %84, %cst_53 {dimension_numbers = #tpu.dot_dimension_numbers<[1], [0], [0], [1], [0, 0, 1, 1], [], []>} : vector<128x1152xbf16>, vector<1152x128xbf16>, vector<128x128xf32> -> vector<128x128xf32>
    %c0_54 = arith.constant 0 : index
    %c0_55 = arith.constant 0 : index
    %86 = vector.load %arg5[%c0_54, %c0_55] : memref<1x128xf32, #tpu.memory_space<vmem>>, vector<1x128xf32>
    %87 = vector.broadcast %86 : vector<1x128xf32> to vector<128x128xf32>
    %88 = arith.addf %85, %87 : vector<128x128xf32>
    %cst_56 = arith.constant 0.000000e+00 : f32
    %89 = vector.broadcast %cst_56 : f32 to vector<128x128xf32>
    %90 = arith.maximumf %88, %89 : vector<128x128xf32>
    %91 = arith.truncf %90 : vector<128x128xf32> to vector<128x128xbf16>
    %c0_57 = arith.constant 0 : index
    %c0_58 = arith.constant 0 : index
    %92 = vector.load %arg6[%c0_57, %c0_58] : memref<128x608xbf16, #tpu.memory_space<vmem>>, vector<128x608xbf16>
    %cst_59 = arith.constant dense<0.000000e+00> : vector<128x608xf32>
    %93 = tpu.matmul %91, %92, %cst_59 {dimension_numbers = #tpu.dot_dimension_numbers<[1], [0], [0], [1], [0, 0, 1, 1], [], []>} : vector<128x128xbf16>, vector<128x608xbf16>, vector<128x608xf32> -> vector<128x608xf32>
    %94 = arith.truncf %93 : vector<128x608xf32> to vector<128x608xbf16>
    %c0_60 = arith.constant 0 : index
    %c0_61 = arith.constant 0 : index
    %95 = vector.load %arg7[%c0_60, %c0_61] : memref<128x608xbf16, #tpu.memory_space<vmem>>, vector<128x608xbf16>
    %96 = arith.mulf %94, %95 : vector<128x608xbf16>
    %c0_62 = arith.constant 0 : index
    %c0_63 = arith.constant 0 : index
    %97 = vector.load %arg8[%c0_62, %c0_63] : memref<8x128xbf16, #tpu.memory_space<vmem>>, vector<8x128xbf16>
    %cst_64 = arith.constant dense<0.000000e+00> : vector<8x608xf32>
    %98 = tpu.matmul %97, %96, %cst_64 {dimension_numbers = #tpu.dot_dimension_numbers<[1], [0], [0], [1], [0, 0, 1, 1], [], []>} : vector<8x128xbf16>, vector<128x608xbf16>, vector<8x608xf32> -> vector<8x608xf32>
    %99 = arith.truncf %98 : vector<8x608xf32> to vector<8x608xbf16>
    %c0_65 = arith.constant 0 : index
    %c0_66 = arith.constant 0 : index
    %100 = vector.load %arg9[%c0_65, %c0_66] : memref<608x32xbf16, #tpu.memory_space<vmem>>, vector<608x32xbf16>
    %cst_67 = arith.constant dense<0.000000e+00> : vector<8x32xf32>
    %101 = tpu.matmul %99, %100, %cst_67 {dimension_numbers = #tpu.dot_dimension_numbers<[1], [0], [0], [1], [0, 0, 1, 1], [], []>} : vector<8x608xbf16>, vector<608x32xbf16>, vector<8x32xf32> -> vector<8x32xf32>
    %c0_68 = arith.constant 0 : index
    %c0_69 = arith.constant 0 : index
    %102 = vector.load %arg10[%c0_68, %c0_69] : memref<1x32xf32, #tpu.memory_space<vmem>>, vector<1x32xf32>
    %103 = vector.broadcast %102 : vector<1x32xf32> to vector<8x32xf32>
    %104 = arith.addf %101, %103 : vector<8x32xf32>
    %c0_70 = arith.constant 0 : index
    %c0_71 = arith.constant 0 : index
    %105 = vector.load %arg11[%c0_70, %c0_71] : memref<8x32xf32, #tpu.memory_space<vmem>>, vector<8x32xf32>
    tpu.vector_store %arg11[%c0_70, %c0_71], %104 {strides = array<i32>} : memref<8x32xf32, #tpu.memory_space<vmem>>, vector<8x32xf32>,
    return
  }
  func.func @transform_0(%arg0: i32) -> (i32, i32, i32) {
    %c0_i32 = arith.constant 0 : i32
    %c0_i32_0 = arith.constant 0 : i32
    %c0_i32_1 = arith.constant 0 : i32
    %c0_i32_2 = arith.constant 0 : i32
    return %c0_i32, %c0_i32_0, %c0_i32_1 : i32, i32, i32
  }
  func.func @transform_1(%arg0: i32) -> (i32, i32) {
    %c0_i32 = arith.constant 0 : i32
    %c0_i32_0 = arith.constant 0 : i32
    %c0_i32_1 = arith.constant 0 : i32
    return %c0_i32, %c0_i32_0 : i32, i32
  }
  func.func @transform_2(%arg0: i32) -> (i32, i32) {
    %c0_i32 = arith.constant 0 : i32
    %c0_i32_0 = arith.constant 0 : i32
    %c0_i32_1 = arith.constant 0 : i32
    return %c0_i32, %c0_i32_0 : i32, i32
  }
  func.func @transform_3(%arg0: i32) -> (i32, i32) {
    %c0_i32 = arith.constant 0 : i32
    %c0_i32_0 = arith.constant 0 : i32
    %c0_i32_1 = arith.constant 0 : i32
    return %c0_i32, %c0_i32_0 : i32, i32
  }
  func.func @transform_4(%arg0: i32) -> (i32, i32) {
    %c0_i32 = arith.constant 0 : i32
    %c0_i32_0 = arith.constant 0 : i32
    %c0_i32_1 = arith.constant 0 : i32
    return %c0_i32, %c0_i32_0 : i32, i32
  }
  func.func @transform_5(%arg0: i32) -> (i32, i32) {
    %c0_i32 = arith.constant 0 : i32
    %c0_i32_0 = arith.constant 0 : i32
    %c0_i32_1 = arith.constant 0 : i32
    return %c0_i32, %c0_i32_0 : i32, i32
  }
  func.func @transform_6(%arg0: i32) -> (i32, i32) {
    %c0_i32 = arith.constant 0 : i32
    %c0_i32_0 = arith.constant 0 : i32
    %c0_i32_1 = arith.constant 0 : i32
    return %c0_i32, %c0_i32_0 : i32, i32
  }
  func.func @transform_7(%arg0: i32) -> (i32, i32) {
    %c0_i32 = arith.constant 0 : i32
    %c0_i32_0 = arith.constant 0 : i32
    %c0_i32_1 = arith.constant 0 : i32
    return %c0_i32, %c0_i32_0 : i32, i32
  }
  func.func @transform_8(%arg0: i32) -> (i32, i32) {
    %c0_i32 = arith.constant 0 : i32
    %c0_i32_0 = arith.constant 0 : i32
    %c0_i32_1 = arith.constant 0 : i32
    return %c0_i32, %c0_i32_0 : i32, i32
  }
  func.func @transform_9(%arg0: i32) -> (i32, i32) {
    %c0_i32 = arith.constant 0 : i32
    %c0_i32_0 = arith.constant 0 : i32
    %c0_i32_1 = arith.constant 0 : i32
    return %c0_i32, %c0_i32_0 : i32, i32
  }
  func.func @transform_10(%arg0: i32) -> (i32, i32) {
    %c0_i32 = arith.constant 0 : i32
    %c0_i32_0 = arith.constant 0 : i32
    %c0_i32_1 = arith.constant 0 : i32
    return %c0_i32, %c0_i32_0 : i32, i32
  }
}

</mosaic_0001>

<llo_original>
// kernel: _fused_forward.1
$region0: #{_fused_forward.1}
  #allocation0 [shape = 'u32[]', space=smem, size = 0x4, offset = 0x4, fixed_abs, tag = 'smem constant byte address 0x4 - core index']
  #allocation1 [shape = 'u32[72,128]{1,0:T(1,128)}', space=vmem, size = 0x9000, scoped, tag = 'internal scratch']
  #allocation2 [shape = 'bf16[128,1152]{1,0:T(8,128)(2,1)}', space=vmem, size = 0x48000, scoped, tag = 'scratch operand']
  %s0 = inlined_call_operand.vmem [shape: bf16[9,128,36], index: 0, kind: input, shape index: {}]
  %s1 = inlined_call_operand.vmem [shape: bf16[36,128], index: 1, kind: input, shape index: {}]
  %s2 = inlined_call_operand.vmem [shape: f32[1,128], index: 2, kind: input, shape index: {}]
  %s3 = inlined_call_operand.vmem [shape: bf16[1152,128], index: 3, kind: input, shape index: {}]
  %s4 = inlined_call_operand.vmem [shape: f32[1,128], index: 4, kind: input, shape index: {}]
  %s5 = inlined_call_operand.vmem [shape: bf16[128,608], index: 5, kind: input, shape index: {}]
  %s6 = inlined_call_operand.vmem [shape: bf16[128,608], index: 6, kind: input, shape index: {}]
  %s7 = inlined_call_operand.vmem [shape: bf16[8,128], index: 7, kind: input, shape index: {}]
  %s8 = inlined_call_operand.vmem [shape: bf16[608,32], index: 8, kind: input, shape index: {}]
  %s9 = inlined_call_operand.vmem [shape: f32[1,32], index: 9, kind: input, shape index: {}]
  %s10 = inlined_call_operand.vmem [shape: f32[8,32], index: 10, kind: output, shape index: {}]
  %s11 = sld [smem:[#allocation0]]
  $region50: #{_fused_forward.1} parent=0
    _
  %s13 = ssub.s32 1, %s11
  %s14 = scalar_select 0, %s13, %s11
  // Predicated region
  $region2: #{_fused_forward.1} parent=0 // pred_check
    _
  $region3: #{_fused_forward.1} parent=0 // pred_check_branch
    %16 = sbr.rel (0) target = $region5
  $region4: #{_fused_forward.1} parent=0 // pred_region
    _
  $region5: #{_fused_forward.1} parent=0 // pred_fallthru
    _
  // Predicated region
  $region6: #{_fused_forward.1} parent=0 // pred_check
    _
  $region7: #{_fused_forward.1} parent=0 // pred_check_branch
    %18 = sbr.rel (0) target = $region9
  $region8: #{_fused_forward.1} parent=0 // pred_region
    _
  $region9: #{_fused_forward.1} parent=0 // pred_fallthru
    _
  // Predicated region
  $region10: #{_fused_forward.1} parent=0 // pred_check
    _
  $region11: #{_fused_forward.1} parent=0 // pred_check_branch
    %20 = sbr.rel (0) target = $region13
  $region12: #{_fused_forward.1} parent=0 // pred_region
    _
  $region13: #{_fused_forward.1} parent=0 // pred_fallthru
    _
  // Predicated region
  $region14: #{_fused_forward.1} parent=0 // pred_check
    _
  $region15: #{_fused_forward.1} parent=0 // pred_check_branch
    %22 = sbr.rel (0) target = $region17
  $region16: #{_fused_forward.1} parent=0 // pred_region
    _
  $region17: #{_fused_forward.1} parent=0 // pred_fallthru
    _
  // Predicated region
  $region18: #{_fused_forward.1} parent=0 // pred_check
    _
  $region19: #{_fused_forward.1} parent=0 // pred_check_branch
    %24 = sbr.rel (0) target = $region21
  $region20: #{_fused_forward.1} parent=0 // pred_region
    _
  $region21: #{_fused_forward.1} parent=0 // pred_fallthru
    _
  // Predicated region
  $region22: #{_fused_forward.1} parent=0 // pred_check
    _
  $region23: #{_fused_forward.1} parent=0 // pred_check_branch
    %26 = sbr.rel (0) target = $region25
  $region24: #{_fused_forward.1} parent=0 // pred_region
    _
  $region25: #{_fused_forward.1} parent=0 // pred_fallthru
    _
  // Predicated region
  $region26: #{_fused_forward.1} parent=0 // pred_check
    _
  $region27: #{_fused_forward.1} parent=0 // pred_check_branch
    %28 = sbr.rel (0) target = $region29
  $region28: #{_fused_forward.1} parent=0 // pred_region
    _
  $region29: #{_fused_forward.1} parent=0 // pred_fallthru
    _
  // Predicated region
  $region30: #{_fused_forward.1} parent=0 // pred_check
    _
  $region31: #{_fused_forward.1} parent=0 // pred_check_branch
    %30 = sbr.rel (0) target = $region33
  $region32: #{_fused_forward.1} parent=0 // pred_region
    _
  $region33: #{_fused_forward.1} parent=0 // pred_fallthru
    _
  // Predicated region
  $region34: #{_fused_forward.1} parent=0 // pred_check
    _
  $region35: #{_fused_forward.1} parent=0 // pred_check_branch
    %32 = sbr.rel (0) target = $region37
  $region36: #{_fused_forward.1} parent=0 // pred_region
    _
  $region37: #{_fused_forward.1} parent=0 // pred_fallthru
    _
  // Predicated region
  $region38: #{_fused_forward.1} parent=0 // pred_check
    _
  $region39: #{_fused_forward.1} parent=0 // pred_check_branch
    %34 = sbr.rel (0) target = $region41
  $region40: #{_fused_forward.1} parent=0 // pred_region
    _
  $region41: #{_fused_forward.1} parent=0 // pred_fallthru
    _
  %v36 = vld [vmem:[%s1] sm:$0xf]
  %v37 = vld [vmem:[%s1 + $0x4] sm:$0xf]
  %v38 = vld [vmem:[%s1 + $0x8] sm:$0xf]
  %v39 = vld [vmem:[%s1 + $0xc] sm:$0xf]
  %v40 = vld [vmem:[%s1 + $0x10] sm:$0x3]
  %v41 = vld [vmem:[%s2] sm:$0x1]
  %v42 = vld [vmem:[%s0] sm:$0xf]
  %v43 = vld [vmem:[%s0 + $0x4] sm:$0xf]
  %v44 = vld [vmem:[%s0 + $0x8] sm:$0xf]
  %v45 = vld [vmem:[%s0 + $0xc] sm:$0xf]
  %v46 = vld [vmem:[%s0 + $0x10] sm:$0xf]
  %v47 = vld [vmem:[%s0 + $0x14] sm:$0xf]
  %v48 = vld [vmem:[%s0 + $0x18] sm:$0xf]
  %v49 = vld [vmem:[%s0 + $0x1c] sm:$0xf]
  %v50 = vld [vmem:[%s0 + $0x20] sm:$0xf]
  %v51 = vld [vmem:[%s0 + $0x24] sm:$0xf]
  %v52 = vld [vmem:[%s0 + $0x28] sm:$0xf]
  %v53 = vld [vmem:[%s0 + $0x2c] sm:$0xf]
  %v54 = vld [vmem:[%s0 + $0x30] sm:$0xf]
  %v55 = vld [vmem:[%s0 + $0x34] sm:$0xf]
  %v56 = vld [vmem:[%s0 + $0x38] sm:$0xf]
  %v57 = vld [vmem:[%s0 + $0x3c] sm:$0xf]
  %v59 = vperm.slane %v41, 0
  %v77 = vunpack.c.l.b16 %v42
  %v78 = vunpack.c.l.b16 %v43
  %v79 = vunpack.c.l.b16 %v44
  %v80 = vunpack.c.l.b16 %v45
  %v81 = vunpack.c.l.b16 %v46
  %v82 = vunpack.c.l.b16 %v47
  %v83 = vunpack.c.l.b16 %v48
  %v84 = vunpack.c.l.b16 %v49
  %v85 = vunpack.c.l.b16 %v50
  %v86 = vunpack.c.l.b16 %v51
  %v87 = vunpack.c.l.b16 %v52
  %v88 = vunpack.c.l.b16 %v53
  %v89 = vunpack.c.l.b16 %v54
  %v90 = vunpack.c.l.b16 %v55
  %v91 = vunpack.c.l.b16 %v56
  %v92 = vunpack.c.l.b16 %v57
  %v93 = vpack.c.b16 %v78, %v77
  %v94 = vpack.c.b16 %v80, %v79
  %v95 = vpack.c.b16 %v82, %v81
  %v96 = vpack.c.b16 %v84, %v83
  %v97 = vpack.c.b16 %v86, %v85
  %v98 = vpack.c.b16 %v88, %v87
  %v99 = vpack.c.b16 %v90, %v89
  %v100 = vpack.c.b16 %v92, %v91
  %v106 = vunpack.c.l.b16 %v36
  %v107 = vunpack.c.l.b16 %v37
  %v108 = vunpack.c.l.b16 %v38
  %v109 = vunpack.c.l.b16 %v39
  %v110 = vunpack.c.l.b16 %v40
  %v111 = vpack.c.b16 %v107, %v106
  %v112 = vpack.c.b16 %v109, %v108
  %v113 = vpack.c.b16 %v110, %v110
  %vm116 = vcmask 293888
  %v118 = vsel %vm116, %v93, 0
  %v121 = vsel %vm116, %v94, 0
  %v124 = vsel %vm116, %v95, 0
  %v127 = vsel %vm116, %v96, 0
  %v130 = vsel %vm116, %v97, 0
  %v133 = vsel %vm116, %v98, 0
  %v136 = vsel %vm116, %v99, 0
  %v139 = vsel %vm116, %v100, 0
  %vm141 = vcmask 1041408
  %v143 = vsel %vm141, %v113, 0
  %145 = vmatpush.bf16.msra.mxu0 0
  %146 = vmatpush.bf16.msra.mxu0 0
  %147 = vmatpush.bf16.msra.mxu0 0
  %148 = vmatpush.bf16.msra.mxu0 0
  %149 = vmatpush.bf16.msra.mxu0 0
  %150 = vmatpush.bf16.msra.mxu0 %v143
  %151 = vmatpush.bf16.msra.mxu0 %v112
  %152 = vmatpush.bf16.msra.mxu0 %v111
  %153 = vmatmul.bf16.gmra.mxu0 %v118
  %v154 = vpop.f32.mrf.mxu0
  %v155 = vadd.f32 %v59, %v154
  %v156 = vpop.f32.mrf.mxu0
  %v157 = vadd.f32 %v59, %v156
  %158 = vmatmul.bf16.gmra.mxu0 %v121
  %v159 = vpop.f32.mrf.mxu0
  %v160 = vadd.f32 %v59, %v159
  %v161 = vpop.f32.mrf.mxu0
  %v162 = vadd.f32 %v59, %v161
  %163 = vmatmul.bf16.gmra.mxu0 %v124
  %v164 = vpop.f32.mrf.mxu0
  %v165 = vadd.f32 %v59, %v164
  %v166 = vpop.f32.mrf.mxu0
  %v167 = vadd.f32 %v59, %v166
  %168 = vmatmul.bf16.gmra.mxu0 %v127
  %v169 = vpop.f32.mrf.mxu0
  %v170 = vadd.f32 %v59, %v169
  %v171 = vpop.f32.mrf.mxu0
  %v172 = vadd.f32 %v59, %v171
  %173 = vmatmul.bf16.gmra.mxu0 %v130
  %v174 = vpop.f32.mrf.mxu0
  %v175 = vadd.f32 %v59, %v174
  %v176 = vpop.f32.mrf.mxu0
  %v177 = vadd.f32 %v59, %v176
  %178 = vmatmul.bf16.gmra.mxu0 %v133
  %v179 = vpop.f32.mrf.mxu0
  %v180 = vadd.f32 %v59, %v179
  %v181 = vpop.f32.mrf.mxu0
  %v182 = vadd.f32 %v59, %v181
  %183 = vmatmul.bf16.gmra.mxu0 %v136
  %v184 = vpop.f32.mrf.mxu0
  %v185 = vadd.f32 %v59, %v184
  %v186 = vpop.f32.mrf.mxu0
  %v187 = vadd.f32 %v59, %v186
  %188 = vmatmul.bf16.gmra.mxu0 %v139
  %v189 = vpop.f32.mrf.mxu0
  %v190 = vadd.f32 %v59, %v189
  %v191 = vpop.f32.mrf.mxu0
  %v192 = vadd.f32 %v59, %v191
  %193 = vdwg.mxu0
  %v194 = vmax.f32 %v155, 0.0
  %v195 = vmax.f32 %v157, 0.0
  %v196 = vmax.f32 %v160, 0.0
  %v197 = vmax.f32 %v162, 0.0
  %v198 = vmax.f32 %v165, 0.0
  %v199 = vmax.f32 %v167, 0.0
  %v200 = vmax.f32 %v170, 0.0
  %v201 = vmax.f32 %v172, 0.0
  %v202 = vmax.f32 %v175, 0.0
  %v203 = vmax.f32 %v177, 0.0
  %v204 = vmax.f32 %v180, 0.0
  %v205 = vmax.f32 %v182, 0.0
  %v206 = vmax.f32 %v185, 0.0
  %v207 = vmax.f32 %v187, 0.0
  %v208 = vmax.f32 %v190, 0.0
  %v209 = vmax.f32 %v192, 0.0
  %v210 = vpack.c.bf16 %v194, %v194
  %v211 = vpack.c.bf16 %v195, %v195
  %v212 = vpack.c.bf16 %v196, %v196
  %v213 = vpack.c.bf16 %v197, %v197
  %v214 = vpack.c.bf16 %v198, %v198
  %v215 = vpack.c.bf16 %v199, %v199
  %v216 = vpack.c.bf16 %v200, %v200
  %v217 = vpack.c.bf16 %v201, %v201
  %v218 = vpack.c.bf16 %v202, %v202
  %v219 = vpack.c.bf16 %v203, %v203
  %v220 = vpack.c.bf16 %v204, %v204
  %v221 = vpack.c.bf16 %v205, %v205
  %v222 = vpack.c.bf16 %v206, %v206
  %v223 = vpack.c.bf16 %v207, %v207
  %v224 = vpack.c.bf16 %v208, %v208
  %v225 = vpack.c.bf16 %v209, %v209
  %226 = vst [vmem:[#allocation2] sm:$0xf] %v210
  %227 = vst [vmem:[#allocation2 + $0x24] sm:$0xf] %v211
  %228 = vst [vmem:[#allocation2 + $0x48] sm:$0xf] %v212
  %229 = vst [vmem:[#allocation2 + $0x6c] sm:$0xf] %v213
  %230 = vst [vmem:[#allocation2 + $0x90] sm:$0xf] %v214
  %231 = vst [vmem:[#allocation2 + $0xb4] sm:$0xf] %v215
  %232 = vst [vmem:[#allocation2 + $0xd8] sm:$0xf] %v216
  %233 = vst [vmem:[#allocation2 + $0xfc] sm:$0xf] %v217
  %234 = vst [vmem:[#allocation2 + $0x120] sm:$0xf] %v218
  %235 = vst [vmem:[#allocation2 + $0x144] sm:$0xf] %v219
  %236 = vst [vmem:[#allocation2 + $0x168] sm:$0xf] %v220
  %237 = vst [vmem:[#allocation2 + $0x18c] sm:$0xf] %v221
  %238 = vst [vmem:[#allocation2 + $0x1b0] sm:$0xf] %v222
  %239 = vst [vmem:[#allocation2 + $0x1d4] sm:$0xf] %v223
  %240 = vst [vmem:[#allocation2 + $0x1f8] sm:$0xf] %v224
  %241 = vst [vmem:[#allocation2 + $0x21c] sm:$0xf] %v225
  %s242 = scalar_lea.vmem %s0, 64
  %v243 = vld [vmem:[%s242] sm:$0xf]
  %v244 = vld [vmem:[%s242 + $0x4] sm:$0xf]
  %v245 = vld [vmem:[%s242 + $0x8] sm:$0xf]
  %v246 = vld [vmem:[%s242 + $0xc] sm:$0xf]
  %v247 = vld [vmem:[%s242 + $0x10] sm:$0xf]
  %v248 = vld [vmem:[%s242 + $0x14] sm:$0xf]
  %v249 = vld [vmem:[%s242 + $0x18] sm:$0xf]
  %v250 = vld [vmem:[%s242 + $0x1c] sm:$0xf]
  %v251 = vld [vmem:[%s242 + $0x20] sm:$0xf]
  %v252 = vld [vmem:[%s242 + $0x24] sm:$0xf]
  %v253 = vld [vmem:[%s242 + $0x28] sm:$0xf]
  %v254 = vld [vmem:[%s242 + $0x2c] sm:$0xf]
  %v255 = vld [vmem:[%s242 + $0x30] sm:$0xf]
  %v256 = vld [vmem:[%s242 + $0x34] sm:$0xf]
  %v257 = vld [vmem:[%s242 + $0x38] sm:$0xf]
  %v258 = vld [vmem:[%s242 + $0x3c] sm:$0xf]
  %v275 = vunpack.c.l.b16 %v243
  %v276 = vunpack.c.l.b16 %v244
  %v277 = vunpack.c.l.b16 %v245
  %v278 = vunpack.c.l.b16 %v246
  %v279 = vunpack.c.l.b16 %v247
  %v280 = vunpack.c.l.b16 %v248
  %v281 = vunpack.c.l.b16 %v249
  %v282 = vunpack.c.l.b16 %v250
  %v283 = vunpack.c.l.b16 %v251
  %v284 = vunpack.c.l.b16 %v252
  %v285 = vunpack.c.l.b16 %v253
  %v286 = vunpack.c.l.b16 %v254
  %v287 = vunpack.c.l.b16 %v255
  %v288 = vunpack.c.l.b16 %v256
  %v289 = vunpack.c.l.b16 %v257
  %v290 = vunpack.c.l.b16 %v258
  %v291 = vpack.c.b16 %v276, %v275
  %v292 = vpack.c.b16 %v278, %v277
  %v293 = vpack.c.b16 %v280, %v279
  %v294 = vpack.c.b16 %v282, %v281
  %v295 = vpack.c.b16 %v284, %v283
  %v296 = vpack.c.b16 %v286, %v285
  %v297 = vpack.c.b16 %v288, %v287
  %v298 = vpack.c.b16 %v290, %v289
  %v300 = vsel %vm116, %v291, 0
  %v303 = vsel %vm116, %v292, 0
  %v306 = vsel %vm116, %v293, 0
  %v309 = vsel %vm116, %v294, 0
  %v312 = vsel %vm116, %v295, 0
  %v315 = vsel %vm116, %v296, 0
  %v318 = vsel %vm116, %v297, 0
  %v321 = vsel %vm116, %v298, 0
  %323 = vmatpush.bf16.msra.mxu0 0
  %324 = vmatpush.bf16.msra.mxu0 0
  %325 = vmatpush.bf16.msra.mxu0 0
  %326 = vmatpush.bf16.msra.mxu0 0
  %327 = vmatpush.bf16.msra.mxu0 0
  %328 = vmatpush.bf16.msra.mxu0 %v143
  %329 = vmatpush.bf16.msra.mxu0 %v112
  %330 = vmatpush.bf16.msra.mxu0 %v111
  %331 = vmatmul.bf16.gmra.mxu0 %v300
  %v332 = vpop.f32.mrf.mxu0
  %v333 = vadd.f32 %v59, %v332
  %v334 = vpop.f32.mrf.mxu0
  %v335 = vadd.f32 %v59, %v334
  %336 = vmatmul.bf16.gmra.mxu0 %v303
  %v337 = vpop.f32.mrf.mxu0
  %v338 = vadd.f32 %v59, %v337
  %v339 = vpop.f32.mrf.mxu0
  %v340 = vadd.f32 %v59, %v339
  %341 = vmatmul.bf16.gmra.mxu0 %v306
  %v342 = vpop.f32.mrf.mxu0
  %v343 = vadd.f32 %v59, %v342
  %v344 = vpop.f32.mrf.mxu0
  %v345 = vadd.f32 %v59, %v344
  %346 = vmatmul.bf16.gmra.mxu0 %v309
  %v347 = vpop.f32.mrf.mxu0
  %v348 = vadd.f32 %v59, %v347
  %v349 = vpop.f32.mrf.mxu0
  %v350 = vadd.f32 %v59, %v349
  %351 = vmatmul.bf16.gmra.mxu0 %v312
  %v352 = vpop.f32.mrf.mxu0
  %v353 = vadd.f32 %v59, %v352
  %v354 = vpop.f32.mrf.mxu0
  %v355 = vadd.f32 %v59, %v354
  %356 = vmatmul.bf16.gmra.mxu0 %v315
  %v357 = vpop.f32.mrf.mxu0
  %v358 = vadd.f32 %v59, %v357
  %v359 = vpop.f32.mrf.mxu0
  %v360 = vadd.f32 %v59, %v359
  %361 = vmatmul.bf16.gmra.mxu0 %v318
  %v362 = vpop.f32.mrf.mxu0
  %v363 = vadd.f32 %v59, %v362
  %v364 = vpop.f32.mrf.mxu0
  %v365 = vadd.f32 %v59, %v364
  %366 = vmatmul.bf16.gmra.mxu0 %v321
  %v367 = vpop.f32.mrf.mxu0
  %v368 = vadd.f32 %v59, %v367
  %v369 = vpop.f32.mrf.mxu0
  %v370 = vadd.f32 %v59, %v369
  %371 = vdwg.mxu0
  %v372 = vmax.f32 %v333, 0.0
  %v373 = vmax.f32 %v335, 0.0
  %v374 = vmax.f32 %v338, 0.0
  %v375 = vmax.f32 %v340, 0.0
  %v376 = vmax.f32 %v343, 0.0
  %v377 = vmax.f32 %v345, 0.0
  %v378 = vmax.f32 %v348, 0.0
  %v379 = vmax.f32 %v350, 0.0
  %v380 = vmax.f32 %v353, 0.0
  %v381 = vmax.f32 %v355, 0.0
  %v382 = vmax.f32 %v358, 0.0
  %v383 = vmax.f32 %v360, 0.0
  %v384 = vmax.f32 %v363, 0.0
  %v385 = vmax.f32 %v365, 0.0
  %v386 = vmax.f32 %v368, 0.0
  %v387 = vmax.f32 %v370, 0.0
  %v388 = vpack.c.bf16 %v372, %v372
  %v389 = vpack.c.bf16 %v373, %v373
  %v390 = vpack.c.bf16 %v374, %v374
  %v391 = vpack.c.bf16 %v375, %v375
  %v392 = vpack.c.bf16 %v376, %v376
  %v393 = vpack.c.bf16 %v377, %v377
  %v394 = vpack.c.bf16 %v378, %v378
  %v395 = vpack.c.bf16 %v379, %v379
  %v396 = vpack.c.bf16 %v380, %v380
  %v397 = vpack.c.bf16 %v381, %v381
  %v398 = vpack.c.bf16 %v382, %v382
  %v399 = vpack.c.bf16 %v383, %v383
  %v400 = vpack.c.bf16 %v384, %v384
  %v401 = vpack.c.bf16 %v385, %v385
  %v402 = vpack.c.bf16 %v386, %v386
  %v403 = vpack.c.bf16 %v387, %v387
  %404 = vst [vmem:[#allocation2 + $0x4] sm:$0xf] %v388
  %405 = vst [vmem:[#allocation2 + $0x28] sm:$0xf] %v389
  %406 = vst [vmem:[#allocation2 + $0x4c] sm:$0xf] %v390
  %407 = vst [vmem:[#allocation2 + $0x70] sm:$0xf] %v391
  %408 = vst [vmem:[#allocation2 + $0x94] sm:$0xf] %v392
  %409 = vst [vmem:[#allocation2 + $0xb8] sm:$0xf] %v393
  %410 = vst [vmem:[#allocation2 + $0xdc] sm:$0xf] %v394
  %411 = vst [vmem:[#allocation2 + $0x100] sm:$0xf] %v395
  %412 = vst [vmem:[#allocation2 + $0x124] sm:$0xf] %v396
  %413 = vst [vmem:[#allocation2 + $0x148] sm:$0xf] %v397
  %414 = vst [vmem:[#allocation2 + $0x16c] sm:$0xf] %v398
  %415 = vst [vmem:[#allocation2 + $0x190] sm:$0xf] %v399
  %416 = vst [vmem:[#allocation2 + $0x1b4] sm:$0xf] %v400
  %417 = vst [vmem:[#allocation2 + $0x1d8] sm:$0xf] %v401
  %418 = vst [vmem:[#allocation2 + $0x1fc] sm:$0xf] %v402
  %419 = vst [vmem:[#allocation2 + $0x220] sm:$0xf] %v403
  %s420 = scalar_lea.vmem %s0, 128
  %v421 = vld [vmem:[%s420] sm:$0xf]
  %v422 = vld [vmem:[%s420 + $0x4] sm:$0xf]
  %v423 = vld [vmem:[%s420 + $0x8] sm:$0xf]
  %v424 = vld [vmem:[%s420 + $0xc] sm:$0xf]
  %v425 = vld [vmem:[%s420 + $0x10] sm:$0xf]
  %v426 = vld [vmem:[%s420 + $0x14] sm:$0xf]
  %v427 = vld [vmem:[%s420 + $0x18] sm:$0xf]
  %v428 = vld [vmem:[%s420 + $0x1c] sm:$0xf]
  %v429 = vld [vmem:[%s420 + $0x20] sm:$0xf]
  %v430 = vld [vmem:[%s420 + $0x24] sm:$0xf]
  %v431 = vld [vmem:[%s420 + $0x28] sm:$0xf]
  %v432 = vld [vmem:[%s420 + $0x2c] sm:$0xf]
  %v433 = vld [vmem:[%s420 + $0x30] sm:$0xf]
  %v434 = vld [vmem:[%s420 + $0x34] sm:$0xf]
  %v435 = vld [vmem:[%s420 + $0x38] sm:$0xf]
  %v436 = vld [vmem:[%s420 + $0x3c] sm:$0xf]
  %v453 = vunpack.c.l.b16 %v421
  %v454 = vunpack.c.l.b16 %v422
  %v455 = vunpack.c.l.b16 %v423
  %v456 = vunpack.c.l.b16 %v424
  %v457 = vunpack.c.l.b16 %v425
  %v458 = vunpack.c.l.b16 %v426
  %v459 = vunpack.c.l.b16 %v427
  %v460 = vunpack.c.l.b16 %v428
  %v461 = vunpack.c.l.b16 %v429
  %v462 = vunpack.c.l.b16 %v430
  %v463 = vunpack.c.l.b16 %v431
  %v464 = vunpack.c.l.b16 %v432
  %v465 = vunpack.c.l.b16 %v433
  %v466 = vunpack.c.l.b16 %v434
  %v467 = vunpack.c.l.b16 %v435
  %v468 = vunpack.c.l.b16 %v436
  %v469 = vpack.c.b16 %v454, %v453
  %v470 = vpack.c.b16 %v456, %v455
  %v471 = vpack.c.b16 %v458, %v457
  %v472 = vpack.c.b16 %v460, %v459
  %v473 = vpack.c.b16 %v462, %v461
  %v474 = vpack.c.b16 %v464, %v463
  %v475 = vpack.c.b16 %v466, %v465
  %v476 = vpack.c.b16 %v468, %v467
  %v478 = vsel %vm116, %v469, 0
  %v481 = vsel %vm116, %v470, 0
  %v484 = vsel %vm116, %v471, 0
  %v487 = vsel %vm116, %v472, 0
  %v490 = vsel %vm116, %v473, 0
  %v493 = vsel %vm116, %v474, 0
  %v496 = vsel %vm116, %v475, 0
  %v499 = vsel %vm116, %v476, 0
  %501 = vmatpush.bf16.msra.mxu0 0
  %502 = vmatpush.bf16.msra.mxu0 0
  %503 = vmatpush.bf16.msra.mxu0 0
  %504 = vmatpush.bf16.msra.mxu0 0
  %505 = vmatpush.bf16.msra.mxu0 0
  %506 = vmatpush.bf16.msra.mxu0 %v143
  %507 = vmatpush.bf16.msra.mxu0 %v112
  %508 = vmatpush.bf16.msra.mxu0 %v111
  %509 = vmatmul.bf16.gmra.mxu0 %v478
  %v510 = vpop.f32.mrf.mxu0
  %v511 = vadd.f32 %v59, %v510
  %v512 = vpop.f32.mrf.mxu0
  %v513 = vadd.f32 %v59, %v512
  %514 = vmatmul.bf16.gmra.mxu0 %v481
  %v515 = vpop.f32.mrf.mxu0
  %v516 = vadd.f32 %v59, %v515
  %v517 = vpop.f32.mrf.mxu0
  %v518 = vadd.f32 %v59, %v517
  %519 = vmatmul.bf16.gmra.mxu0 %v484
  %v520 = vpop.f32.mrf.mxu0
  %v521 = vadd.f32 %v59, %v520
  %v522 = vpop.f32.mrf.mxu0
  %v523 = vadd.f32 %v59, %v522
  %524 = vmatmul.bf16.gmra.mxu0 %v487
  %v525 = vpop.f32.mrf.mxu0
  %v526 = vadd.f32 %v59, %v525
  %v527 = vpop.f32.mrf.mxu0
  %v528 = vadd.f32 %v59, %v527
  %529 = vmatmul.bf16.gmra.mxu0 %v490
  %v530 = vpop.f32.mrf.mxu0
  %v531 = vadd.f32 %v59, %v530
  %v532 = vpop.f32.mrf.mxu0
  %v533 = vadd.f32 %v59, %v532
  %534 = vmatmul.bf16.gmra.mxu0 %v493
  %v535 = vpop.f32.mrf.mxu0
  %v536 = vadd.f32 %v59, %v535
  %v537 = vpop.f32.mrf.mxu0
  %v538 = vadd.f32 %v59, %v537
  %539 = vmatmul.bf16.gmra.mxu0 %v496
  %v540 = vpop.f32.mrf.mxu0
  %v541 = vadd.f32 %v59, %v540
  %v542 = vpop.f32.mrf.mxu0
  %v543 = vadd.f32 %v59, %v542
  %544 = vmatmul.bf16.gmra.mxu0 %v499
  %v545 = vpop.f32.mrf.mxu0
  %v546 = vadd.f32 %v59, %v545
  %v547 = vpop.f32.mrf.mxu0
  %v548 = vadd.f32 %v59, %v547
  %549 = vdwg.mxu0
  %v550 = vmax.f32 %v511, 0.0
  %v551 = vmax.f32 %v513, 0.0
  %v552 = vmax.f32 %v516, 0.0
  %v553 = vmax.f32 %v518, 0.0
  %v554 = vmax.f32 %v521, 0.0
  %v555 = vmax.f32 %v523, 0.0
  %v556 = vmax.f32 %v526, 0.0
  %v557 = vmax.f32 %v528, 0.0
  %v558 = vmax.f32 %v531, 0.0
  %v559 = vmax.f32 %v533, 0.0
  %v560 = vmax.f32 %v536, 0.0
  %v561 = vmax.f32 %v538, 0.0
  %v562 = vmax.f32 %v541, 0.0
  %v563 = vmax.f32 %v543, 0.0
  %v564 = vmax.f32 %v546, 0.0
  %v565 = vmax.f32 %v548, 0.0
  %v566 = vpack.c.bf16 %v550, %v550
  %v567 = vpack.c.bf16 %v551, %v551
  %v568 = vpack.c.bf16 %v552, %v552
  %v569 = vpack.c.bf16 %v553, %v553
  %v570 = vpack.c.bf16 %v554, %v554
  %v571 = vpack.c.bf16 %v555, %v555
  %v572 = vpack.c.bf16 %v556, %v556
  %v573 = vpack.c.bf16 %v557, %v557
  %v574 = vpack.c.bf16 %v558, %v558
  %v575 = vpack.c.bf16 %v559, %v559
  %v576 = vpack.c.bf16 %v560, %v560
  %v577 = vpack.c.bf16 %v561, %v561
  %v578 = vpack.c.bf16 %v562, %v562
  %v579 = vpack.c.bf16 %v563, %v563
  %v580 = vpack.c.bf16 %v564, %v564
  %v581 = vpack.c.bf16 %v565, %v565
  %582 = vst [vmem:[#allocation2 + $0x8] sm:$0xf] %v566
  %583 = vst [vmem:[#allocation2 + $0x2c] sm:$0xf] %v567
  %584 = vst [vmem:[#allocation2 + $0x50] sm:$0xf] %v568
  %585 = vst [vmem:[#allocation2 + $0x74] sm:$0xf] %v569
  %586 = vst [vmem:[#allocation2 + $0x98] sm:$0xf] %v570
  %587 = vst [vmem:[#allocation2 + $0xbc] sm:$0xf] %v571
  %588 = vst [vmem:[#allocation2 + $0xe0] sm:$0xf] %v572
  %589 = vst [vmem:[#allocation2 + $0x104] sm:$0xf] %v573
  %590 = vst [vmem:[#allocation2 + $0x128] sm:$0xf] %v574
  %591 = vst [vmem:[#allocation2 + $0x14c] sm:$0xf] %v575
  %592 = vst [vmem:[#allocation2 + $0x170] sm:$0xf] %v576
  %593 = vst [vmem:[#allocation2 + $0x194] sm:$0xf] %v577
  %594 = vst [vmem:[#allocation2 + $0x1b8] sm:$0xf] %v578
  %595 = vst [vmem:[#allocation2 + $0x1dc] sm:$0xf] %v579
  %596 = vst [vmem:[#allocation2 + $0x200] sm:$0xf] %v580
  %597 = vst [vmem:[#allocation2 + $0x224] sm:$0xf] %v581
  %s598 = scalar_lea.vmem %s0, 192
  %v599 = vld [vmem:[%s598] sm:$0xf]
  %v600 = vld [vmem:[%s598 + $0x4] sm:$0xf]
  %v601 = vld [vmem:[%s598 + $0x8] sm:$0xf]
  %v602 = vld [vmem:[%s598 + $0xc] sm:$0xf]
  %v603 = vld [vmem:[%s598 + $0x10] sm:$0xf]
  %v604 = vld [vmem:[%s598 + $0x14] sm:$0xf]
  %v605 = vld [vmem:[%s598 + $0x18] sm:$0xf]
  %v606 = vld [vmem:[%s598 + $0x1c] sm:$0xf]
  %v607 = vld [vmem:[%s598 + $0x20] sm:$0xf]
  %v608 = vld [vmem:[%s598 + $0x24] sm:$0xf]
  %v609 = vld [vmem:[%s598 + $0x28] sm:$0xf]
  %v610 = vld [vmem:[%s598 + $0x2c] sm:$0xf]
  %v611 = vld [vmem:[%s598 + $0x30] sm:$0xf]
  %v612 = vld [vmem:[%s598 + $0x34] sm:$0xf]
  %v613 = vld [vmem:[%s598 + $0x38] sm:$0xf]
  %v614 = vld [vmem:[%s598 + $0x3c] sm:$0xf]
  %v631 = vunpack.c.l.b16 %v599
  %v632 = vunpack.c.l.b16 %v600
  %v633 = vunpack.c.l.b16 %v601
  %v634 = vunpack.c.l.b16 %v602
  %v635 = vunpack.c.l.b16 %v603
  %v636 = vunpack.c.l.b16 %v604
  %v637 = vunpack.c.l.b16 %v605
  %v638 = vunpack.c.l.b16 %v606
  %v639 = vunpack.c.l.b16 %v607
  %v640 = vunpack.c.l.b16 %v608
  %v641 = vunpack.c.l.b16 %v609
  %v642 = vunpack.c.l.b16 %v610
  %v643 = vunpack.c.l.b16 %v611
  %v644 = vunpack.c.l.b16 %v612
  %v645 = vunpack.c.l.b16 %v613
  %v646 = vunpack.c.l.b16 %v614
  %v647 = vpack.c.b16 %v632, %v631
  %v648 = vpack.c.b16 %v634, %v633
  %v649 = vpack.c.b16 %v636, %v635
  %v650 = vpack.c.b16 %v638, %v637
  %v651 = vpack.c.b16 %v640, %v639
  %v652 = vpack.c.b16 %v642, %v641
  %v653 = vpack.c.b16 %v644, %v643
  %v654 = vpack.c.b16 %v646, %v645
  %v656 = vsel %vm116, %v647, 0
  %v659 = vsel %vm116, %v648, 0
  %v662 = vsel %vm116, %v649, 0
  %v665 = vsel %vm116, %v650, 0
  %v668 = vsel %vm116, %v651, 0
  %v671 = vsel %vm116, %v652, 0
  %v674 = vsel %vm116, %v653, 0
  %v677 = vsel %vm116, %v654, 0
  %679 = vmatpush.bf16.msra.mxu0 0
  %680 = vmatpush.bf16.msra.mxu0 0
  %681 = vmatpush.bf16.msra.mxu0 0
  %682 = vmatpush.bf16.msra.mxu0 0
  %683 = vmatpush.bf16.msra.mxu0 0
  %684 = vmatpush.bf16.msra.mxu0 %v143
  %685 = vmatpush.bf16.msra.mxu0 %v112
  %686 = vmatpush.bf16.msra.mxu0 %v111
  %687 = vmatmul.bf16.gmra.mxu0 %v656
  %v688 = vpop.f32.mrf.mxu0
  %v689 = vadd.f32 %v59, %v688
  %v690 = vpop.f32.mrf.mxu0
  %v691 = vadd.f32 %v59, %v690
  %692 = vmatmul.bf16.gmra.mxu0 %v659
  %v693 = vpop.f32.mrf.mxu0
  %v694 = vadd.f32 %v59, %v693
  %v695 = vpop.f32.mrf.mxu0
  %v696 = vadd.f32 %v59, %v695
  %697 = vmatmul.bf16.gmra.mxu0 %v662
  %v698 = vpop.f32.mrf.mxu0
  %v699 = vadd.f32 %v59, %v698
  %v700 = vpop.f32.mrf.mxu0
  %v701 = vadd.f32 %v59, %v700
  %702 = vmatmul.bf16.gmra.mxu0 %v665
  %v703 = vpop.f32.mrf.mxu0
  %v704 = vadd.f32 %v59, %v703
  %v705 = vpop.f32.mrf.mxu0
  %v706 = vadd.f32 %v59, %v705
  %707 = vmatmul.bf16.gmra.mxu0 %v668
  %v708 = vpop.f32.mrf.mxu0
  %v709 = vadd.f32 %v59, %v708
  %v710 = vpop.f32.mrf.mxu0
  %v711 = vadd.f32 %v59, %v710
  %712 = vmatmul.bf16.gmra.mxu0 %v671
  %v713 = vpop.f32.mrf.mxu0
  %v714 = vadd.f32 %v59, %v713
  %v715 = vpop.f32.mrf.mxu0
  %v716 = vadd.f32 %v59, %v715
  %717 = vmatmul.bf16.gmra.mxu0 %v674
  %v718 = vpop.f32.mrf.mxu0
  %v719 = vadd.f32 %v59, %v718
  %v720 = vpop.f32.mrf.mxu0
  %v721 = vadd.f32 %v59, %v720
  %722 = vmatmul.bf16.gmra.mxu0 %v677
  %v723 = vpop.f32.mrf.mxu0
  %v724 = vadd.f32 %v59, %v723
  %v725 = vpop.f32.mrf.mxu0
  %v726 = vadd.f32 %v59, %v725
  %727 = vdwg.mxu0
  %v728 = vmax.f32 %v689, 0.0
  %v729 = vmax.f32 %v691, 0.0
  %v730 = vmax.f32 %v694, 0.0
  %v731 = vmax.f32 %v696, 0.0
  %v732 = vmax.f32 %v699, 0.0
  %v733 = vmax.f32 %v701, 0.0
  %v734 = vmax.f32 %v704, 0.0
  %v735 = vmax.f32 %v706, 0.0
  %v736 = vmax.f32 %v709, 0.0
  %v737 = vmax.f32 %v711, 0.0
  %v738 = vmax.f32 %v714, 0.0
  %v739 = vmax.f32 %v716, 0.0
  %v740 = vmax.f32 %v719, 0.0
  %v741 = vmax.f32 %v721, 0.0
  %v742 = vmax.f32 %v724, 0.0
  %v743 = vmax.f32 %v726, 0.0
  %v744 = vpack.c.bf16 %v728, %v728
  %v745 = vpack.c.bf16 %v729, %v729
  %v746 = vpack.c.bf16 %v730, %v730
  %v747 = vpack.c.bf16 %v731, %v731
  %v748 = vpack.c.bf16 %v732, %v732
  %v749 = vpack.c.bf16 %v733, %v733
  %v750 = vpack.c.bf16 %v734, %v734
  %v751 = vpack.c.bf16 %v735, %v735
  %v752 = vpack.c.bf16 %v736, %v736
  %v753 = vpack.c.bf16 %v737, %v737
  %v754 = vpack.c.bf16 %v738, %v738
  %v755 = vpack.c.bf16 %v739, %v739
  %v756 = vpack.c.bf16 %v740, %v740
  %v757 = vpack.c.bf16 %v741, %v741
  %v758 = vpack.c.bf16 %v742, %v742
  %v759 = vpack.c.bf16 %v743, %v743
  %760 = vst [vmem:[#allocation2 + $0xc] sm:$0xf] %v744
  %761 = vst [vmem:[#allocation2 + $0x30] sm:$0xf] %v745
  %762 = vst [vmem:[#allocation2 + $0x54] sm:$0xf] %v746
  %763 = vst [vmem:[#allocation2 + $0x78] sm:$0xf] %v747
  %764 = vst [vmem:[#allocation2 + $0x9c] sm:$0xf] %v748
  %765 = vst [vmem:[#allocation2 + $0xc0] sm:$0xf] %v749
  %766 = vst [vmem:[#allocation2 + $0xe4] sm:$0xf] %v750
  %767 = vst [vmem:[#allocation2 + $0x108] sm:$0xf] %v751
  %768 = vst [vmem:[#allocation2 + $0x12c] sm:$0xf] %v752
  %769 = vst [vmem:[#allocation2 + $0x150] sm:$0xf] %v753
  %770 = vst [vmem:[#allocation2 + $0x174] sm:$0xf] %v754
  %771 = vst [vmem:[#allocation2 + $0x198] sm:$0xf] %v755
  %772 = vst [vmem:[#allocation2 + $0x1bc] sm:$0xf] %v756
  %773 = vst [vmem:[#allocation2 + $0x1e0] sm:$0xf] %v757
  %774 = vst [vmem:[#allocation2 + $0x204] sm:$0xf] %v758
  %775 = vst [vmem:[#allocation2 + $0x228] sm:$0xf] %v759
  %s776 = scalar_lea.vmem %s0, 256
  %v777 = vld [vmem:[%s776] sm:$0xf]
  %v778 = vld [vmem:[%s776 + $0x4] sm:$0xf]
  %v779 = vld [vmem:[%s776 + $0x8] sm:$0xf]
  %v780 = vld [vmem:[%s776 + $0xc] sm:$0xf]
  %v781 = vld [vmem:[%s776 + $0x10] sm:$0xf]
  %v782 = vld [vmem:[%s776 + $0x14] sm:$0xf]
  %v783 = vld [vmem:[%s776 + $0x18] sm:$0xf]
  %v784 = vld [vmem:[%s776 + $0x1c] sm:$0xf]
  %v785 = vld [vmem:[%s776 + $0x20] sm:$0xf]
  %v786 = vld [vmem:[%s776 + $0x24] sm:$0xf]
  %v787 = vld [vmem:[%s776 + $0x28] sm:$0xf]
  %v788 = vld [vmem:[%s776 + $0x2c] sm:$0xf]
  %v789 = vld [vmem:[%s776 + $0x30] sm:$0xf]
  %v790 = vld [vmem:[%s776 + $0x34] sm:$0xf]
  %v791 = vld [vmem:[%s776 + $0x38] sm:$0xf]
  %v792 = vld [vmem:[%s776 + $0x3c] sm:$0xf]
  %v809 = vunpack.c.l.b16 %v777
  %v810 = vunpack.c.l.b16 %v778
  %v811 = vunpack.c.l.b16 %v779
  %v812 = vunpack.c.l.b16 %v780
  %v813 = vunpack.c.l.b16 %v781
  %v814 = vunpack.c.l.b16 %v782
  %v815 = vunpack.c.l.b16 %v783
  %v816 = vunpack.c.l.b16 %v784
  %v817 = vunpack.c.l.b16 %v785
  %v818 = vunpack.c.l.b16 %v786
  %v819 = vunpack.c.l.b16 %v787
  %v820 = vunpack.c.l.b16 %v788
  %v821 = vunpack.c.l.b16 %v789
  %v822 = vunpack.c.l.b16 %v790
  %v823 = vunpack.c.l.b16 %v791
  %v824 = vunpack.c.l.b16 %v792
  %v825 = vpack.c.b16 %v810, %v809
  %v826 = vpack.c.b16 %v812, %v811
  %v827 = vpack.c.b16 %v814, %v813
  %v828 = vpack.c.b16 %v816, %v815
  %v829 = vpack.c.b16 %v818, %v817
  %v830 = vpack.c.b16 %v820, %v819
  %v831 = vpack.c.b16 %v822, %v821
  %v832 = vpack.c.b16 %v824, %v823
  %v834 = vsel %vm116, %v825, 0
  %v837 = vsel %vm116, %v826, 0
  %v840 = vsel %vm116, %v827, 0
  %v843 = vsel %vm116, %v828, 0
  %v846 = vsel %vm116, %v829, 0
  %v849 = vsel %vm116, %v830, 0
  %v852 = vsel %vm116, %v831, 0
  %v855 = vsel %vm116, %v832, 0
  %857 = vmatpush.bf16.msra.mxu0 0
  %858 = vmatpush.bf16.msra.mxu0 0
  %859 = vmatpush.bf16.msra.mxu0 0
  %860 = vmatpush.bf16.msra.mxu0 0
  %861 = vmatpush.bf16.msra.mxu0 0
  %862 = vmatpush.bf16.msra.mxu0 %v143
  %863 = vmatpush.bf16.msra.mxu0 %v112
  %864 = vmatpush.bf16.msra.mxu0 %v111
  %865 = vmatmul.bf16.gmra.mxu0 %v834
  %v866 = vpop.f32.mrf.mxu0
  %v867 = vadd.f32 %v59, %v866
  %v868 = vpop.f32.mrf.mxu0
  %v869 = vadd.f32 %v59, %v868
  %870 = vmatmul.bf16.gmra.mxu0 %v837
  %v871 = vpop.f32.mrf.mxu0
  %v872 = vadd.f32 %v59, %v871
  %v873 = vpop.f32.mrf.mxu0
  %v874 = vadd.f32 %v59, %v873
  %875 = vmatmul.bf16.gmra.mxu0 %v840
  %v876 = vpop.f32.mrf.mxu0
  %v877 = vadd.f32 %v59, %v876
  %v878 = vpop.f32.mrf.mxu0
  %v879 = vadd.f32 %v59, %v878
  %880 = vmatmul.bf16.gmra.mxu0 %v843
  %v881 = vpop.f32.mrf.mxu0
  %v882 = vadd.f32 %v59, %v881
  %v883 = vpop.f32.mrf.mxu0
  %v884 = vadd.f32 %v59, %v883
  %885 = vmatmul.bf16.gmra.mxu0 %v846
  %v886 = vpop.f32.mrf.mxu0
  %v887 = vadd.f32 %v59, %v886
  %v888 = vpop.f32.mrf.mxu0
  %v889 = vadd.f32 %v59, %v888
  %890 = vmatmul.bf16.gmra.mxu0 %v849
  %v891 = vpop.f32.mrf.mxu0
  %v892 = vadd.f32 %v59, %v891
  %v893 = vpop.f32.mrf.mxu0
  %v894 = vadd.f32 %v59, %v893
  %895 = vmatmul.bf16.gmra.mxu0 %v852
  %v896 = vpop.f32.mrf.mxu0
  %v897 = vadd.f32 %v59, %v896
  %v898 = vpop.f32.mrf.mxu0
  %v899 = vadd.f32 %v59, %v898
  %900 = vmatmul.bf16.gmra.mxu0 %v855
  %v901 = vpop.f32.mrf.mxu0
  %v902 = vadd.f32 %v59, %v901
  %v903 = vpop.f32.mrf.mxu0
  %v904 = vadd.f32 %v59, %v903
  %905 = vdwg.mxu0
  %v906 = vmax.f32 %v867, 0.0
  %v907 = vmax.f32 %v869, 0.0
  %v908 = vmax.f32 %v872, 0.0
  %v909 = vmax.f32 %v874, 0.0
  %v910 = vmax.f32 %v877, 0.0
  %v911 = vmax.f32 %v879, 0.0
  %v912 = vmax.f32 %v882, 0.0
  %v913 = vmax.f32 %v884, 0.0
  %v914 = vmax.f32 %v887, 0.0
  %v915 = vmax.f32 %v889, 0.0
  %v916 = vmax.f32 %v892, 0.0
  %v917 = vmax.f32 %v894, 0.0
  %v918 = vmax.f32 %v897, 0.0
  %v919 = vmax.f32 %v899, 0.0
  %v920 = vmax.f32 %v902, 0.0
  %v921 = vmax.f32 %v904, 0.0
  %v922 = vpack.c.bf16 %v906, %v906
  %v923 = vpack.c.bf16 %v907, %v907
  %v924 = vpack.c.bf16 %v908, %v908
  %v925 = vpack.c.bf16 %v909, %v909
  %v926 = vpack.c.bf16 %v910, %v910
  %v927 = vpack.c.bf16 %v911, %v911
  %v928 = vpack.c.bf16 %v912, %v912
  %v929 = vpack.c.bf16 %v913, %v913
  %v930 = vpack.c.bf16 %v914, %v914
  %v931 = vpack.c.bf16 %v915, %v915
  %v932 = vpack.c.bf16 %v916, %v916
  %v933 = vpack.c.bf16 %v917, %v917
  %v934 = vpack.c.bf16 %v918, %v918
  %v935 = vpack.c.bf16 %v919, %v919
  %v936 = vpack.c.bf16 %v920, %v920
  %v937 = vpack.c.bf16 %v921, %v921
  %938 = vst [vmem:[#allocation2 + $0x10] sm:$0xf] %v922
  %939 = vst [vmem:[#allocation2 + $0x34] sm:$0xf] %v923
  %940 = vst [vmem:[#allocation2 + $0x58] sm:$0xf] %v924
  %941 = vst [vmem:[#allocation2 + $0x7c] sm:$0xf] %v925
  %942 = vst [vmem:[#allocation2 + $0xa0] sm:$0xf] %v926
  %943 = vst [vmem:[#allocation2 + $0xc4] sm:$0xf] %v927
  %944 = vst [vmem:[#allocation2 + $0xe8] sm:$0xf] %v928
  %945 = vst [vmem:[#allocation2 + $0x10c] sm:$0xf] %v929
  %946 = vst [vmem:[#allocation2 + $0x130] sm:$0xf] %v930
  %947 = vst [vmem:[#allocation2 + $0x154] sm:$0xf] %v931
  %948 = vst [vmem:[#allocation2 + $0x178] sm:$0xf] %v932
  %949 = vst [vmem:[#allocation2 + $0x19c] sm:$0xf] %v933
  %950 = vst [vmem:[#allocation2 + $0x1c0] sm:$0xf] %v934
  %951 = vst [vmem:[#allocation2 + $0x1e4] sm:$0xf] %v935
  %952 = vst [vmem:[#allocation2 + $0x208] sm:$0xf] %v936
  %953 = vst [vmem:[#allocation2 + $0x22c] sm:$0xf] %v937
  %s954 = scalar_lea.vmem %s0, 320
  %v955 = vld [vmem:[%s954] sm:$0xf]
  %v956 = vld [vmem:[%s954 + $0x4] sm:$0xf]
  %v957 = vld [vmem:[%s954 + $0x8] sm:$0xf]
  %v958 = vld [vmem:[%s954 + $0xc] sm:$0xf]
  %v959 = vld [vmem:[%s954 + $0x10] sm:$0xf]
  %v960 = vld [vmem:[%s954 + $0x14] sm:$0xf]
  %v961 = vld [vmem:[%s954 + $0x18] sm:$0xf]
  %v962 = vld [vmem:[%s954 + $0x1c] sm:$0xf]
  %v963 = vld [vmem:[%s954 + $0x20] sm:$0xf]
  %v964 = vld [vmem:[%s954 + $0x24] sm:$0xf]
  %v965 = vld [vmem:[%s954 + $0x28] sm:$0xf]
  %v966 = vld [vmem:[%s954 + $0x2c] sm:$0xf]
  %v967 = vld [vmem:[%s954 + $0x30] sm:$0xf]
  %v968 = vld [vmem:[%s954 + $0x34] sm:$0xf]
  %v969 = vld [vmem:[%s954 + $0x38] sm:$0xf]
  %v970 = vld [vmem:[%s954 + $0x3c] sm:$0xf]
  %v987 = vunpack.c.l.b16 %v955
  %v988 = vunpack.c.l.b16 %v956
  %v989 = vunpack.c.l.b16 %v957
  %v990 = vunpack.c.l.b16 %v958
  %v991 = vunpack.c.l.b16 %v959
  %v992 = vunpack.c.l.b16 %v960
  %v993 = vunpack.c.l.b16 %v961
  %v994 = vunpack.c.l.b16 %v962
  %v995 = vunpack.c.l.b16 %v963
  %v996 = vunpack.c.l.b16 %v964
  %v997 = vunpack.c.l.b16 %v965
  %v998 = vunpack.c.l.b16 %v966
  %v999 = vunpack.c.l.b16 %v967
  %v1000 = vunpack.c.l.b16 %v968
  %v1001 = vunpack.c.l.b16 %v969
  %v1002 = vunpack.c.l.b16 %v970
  %v1003 = vpack.c.b16 %v988, %v987
  %v1004 = vpack.c.b16 %v990, %v989
  %v1005 = vpack.c.b16 %v992, %v991
  %v1006 = vpack.c.b16 %v994, %v993
  %v1007 = vpack.c.b16 %v996, %v995
  %v1008 = vpack.c.b16 %v998, %v997
  %v1009 = vpack.c.b16 %v1000, %v999
  %v1010 = vpack.c.b16 %v1002, %v1001
  %v1012 = vsel %vm116, %v1003, 0
  %v1015 = vsel %vm116, %v1004, 0
  %v1018 = vsel %vm116, %v1005, 0
  %v1021 = vsel %vm116, %v1006, 0
  %v1024 = vsel %vm116, %v1007, 0
  %v1027 = vsel %vm116, %v1008, 0
  %v1030 = vsel %vm116, %v1009, 0
  %v1033 = vsel %vm116, %v1010, 0
  %1035 = vmatpush.bf16.msra.mxu0 0
  %1036 = vmatpush.bf16.msra.mxu0 0
  %1037 = vmatpush.bf16.msra.mxu0 0
  %1038 = vmatpush.bf16.msra.mxu0 0
  %1039 = vmatpush.bf16.msra.mxu0 0
  %1040 = vmatpush.bf16.msra.mxu0 %v143
  %1041 = vmatpush.bf16.msra.mxu0 %v112
  %1042 = vmatpush.bf16.msra.mxu0 %v111
  %1043 = vmatmul.bf16.gmra.mxu0 %v1012
  %v1044 = vpop.f32.mrf.mxu0
  %v1045 = vadd.f32 %v59, %v1044
  %v1046 = vpop.f32.mrf.mxu0
  %v1047 = vadd.f32 %v59, %v1046
  %1048 = vmatmul.bf16.gmra.mxu0 %v1015
  %v1049 = vpop.f32.mrf.mxu0
  %v1050 = vadd.f32 %v59, %v1049
  %v1051 = vpop.f32.mrf.mxu0
  %v1052 = vadd.f32 %v59, %v1051
  %1053 = vmatmul.bf16.gmra.mxu0 %v1018
  %v1054 = vpop.f32.mrf.mxu0
  %v1055 = vadd.f32 %v59, %v1054
  %v1056 = vpop.f32.mrf.mxu0
  %v1057 = vadd.f32 %v59, %v1056
  %1058 = vmatmul.bf16.gmra.mxu0 %v1021
  %v1059 = vpop.f32.mrf.mxu0
  %v1060 = vadd.f32 %v59, %v1059
  %v1061 = vpop.f32.mrf.mxu0
  %v1062 = vadd.f32 %v59, %v1061
  %1063 = vmatmul.bf16.gmra.mxu0 %v1024
  %v1064 = vpop.f32.mrf.mxu0
  %v1065 = vadd.f32 %v59, %v1064
  %v1066 = vpop.f32.mrf.mxu0
  %v1067 = vadd.f32 %v59, %v1066
  %1068 = vmatmul.bf16.gmra.mxu0 %v1027
  %v1069 = vpop.f32.mrf.mxu0
  %v1070 = vadd.f32 %v59, %v1069
  %v1071 = vpop.f32.mrf.mxu0
  %v1072 = vadd.f32 %v59, %v1071
  %1073 = vmatmul.bf16.gmra.mxu0 %v1030
  %v1074 = vpop.f32.mrf.mxu0
  %v1075 = vadd.f32 %v59, %v1074
  %v1076 = vpop.f32.mrf.mxu0
  %v1077 = vadd.f32 %v59, %v1076
  %1078 = vmatmul.bf16.gmra.mxu0 %v1033
  %v1079 = vpop.f32.mrf.mxu0
  %v1080 = vadd.f32 %v59, %v1079
  %v1081 = vpop.f32.mrf.mxu0
  %v1082 = vadd.f32 %v59, %v1081
  %1083 = vdwg.mxu0
  %v1084 = vmax.f32 %v1045, 0.0
  %v1085 = vmax.f32 %v1047, 0.0
  %v1086 = vmax.f32 %v1050, 0.0
  %v1087 = vmax.f32 %v1052, 0.0
  %v1088 = vmax.f32 %v1055, 0.0
  %v1089 = vmax.f32 %v1057, 0.0
  %v1090 = vmax.f32 %v1060, 0.0
  %v1091 = vmax.f32 %v1062, 0.0
  %v1092 = vmax.f32 %v1065, 0.0
  %v1093 = vmax.f32 %v1067, 0.0
  %v1094 = vmax.f32 %v1070, 0.0
  %v1095 = vmax.f32 %v1072, 0.0
  %v1096 = vmax.f32 %v1075, 0.0
  %v1097 = vmax.f32 %v1077, 0.0
  %v1098 = vmax.f32 %v1080, 0.0
  %v1099 = vmax.f32 %v1082, 0.0
  %v1100 = vpack.c.bf16 %v1084, %v1084
  %v1101 = vpack.c.bf16 %v1085, %v1085
  %v1102 = vpack.c.bf16 %v1086, %v1086
  %v1103 = vpack.c.bf16 %v1087, %v1087
  %v1104 = vpack.c.bf16 %v1088, %v1088
  %v1105 = vpack.c.bf16 %v1089, %v1089
  %v1106 = vpack.c.bf16 %v1090, %v1090
  %v1107 = vpack.c.bf16 %v1091, %v1091
  %v1108 = vpack.c.bf16 %v1092, %v1092
  %v1109 = vpack.c.bf16 %v1093, %v1093
  %v1110 = vpack.c.bf16 %v1094, %v1094
  %v1111 = vpack.c.bf16 %v1095, %v1095
  %v1112 = vpack.c.bf16 %v1096, %v1096
  %v1113 = vpack.c.bf16 %v1097, %v1097
  %v1114 = vpack.c.bf16 %v1098, %v1098
  %v1115 = vpack.c.bf16 %v1099, %v1099
  %1116 = vst [vmem:[#allocation2 + $0x14] sm:$0xf] %v1100
  %1117 = vst [vmem:[#allocation2 + $0x38] sm:$0xf] %v1101
  %1118 = vst [vmem:[#allocation2 + $0x5c] sm:$0xf] %v1102
  %1119 = vst [vmem:[#allocation2 + $0x80] sm:$0xf] %v1103
  %1120 = vst [vmem:[#allocation2 + $0xa4] sm:$0xf] %v1104
  %1121 = vst [vmem:[#allocation2 + $0xc8] sm:$0xf] %v1105
  %1122 = vst [vmem:[#allocation2 + $0xec] sm:$0xf] %v1106
  %1123 = vst [vmem:[#allocation2 + $0x110] sm:$0xf] %v1107
  %1124 = vst [vmem:[#allocation2 + $0x134] sm:$0xf] %v1108
  %1125 = vst [vmem:[#allocation2 + $0x158] sm:$0xf] %v1109
  %1126 = vst [vmem:[#allocation2 + $0x17c] sm:$0xf] %v1110
  %1127 = vst [vmem:[#allocation2 + $0x1a0] sm:$0xf] %v1111
  %1128 = vst [vmem:[#allocation2 + $0x1c4] sm:$0xf] %v1112
  %1129 = vst [vmem:[#allocation2 + $0x1e8] sm:$0xf] %v1113
  %1130 = vst [vmem:[#allocation2 + $0x20c] sm:$0xf] %v1114
  %1131 = vst [vmem:[#allocation2 + $0x230] sm:$0xf] %v1115
  %s1132 = scalar_lea.vmem %s0, 384
  %v1133 = vld [vmem:[%s1132] sm:$0xf]
  %v1134 = vld [vmem:[%s1132 + $0x4] sm:$0xf]
  %v1135 = vld [vmem:[%s1132 + $0x8] sm:$0xf]
  %v1136 = vld [vmem:[%s1132 + $0xc] sm:$0xf]
  %v1137 = vld [vmem:[%s1132 + $0x10] sm:$0xf]
  %v1138 = vld [vmem:[%s1132 + $0x14] sm:$0xf]
  %v1139 = vld [vmem:[%s1132 + $0x18] sm:$0xf]
  %v1140 = vld [vmem:[%s1132 + $0x1c] sm:$0xf]
  %v1141 = vld [vmem:[%s1132 + $0x20] sm:$0xf]
  %v1142 = vld [vmem:[%s1132 + $0x24] sm:$0xf]
  %v1143 = vld [vmem:[%s1132 + $0x28] sm:$0xf]
  %v1144 = vld [vmem:[%s1132 + $0x2c] sm:$0xf]
  %v1145 = vld [vmem:[%s1132 + $0x30] sm:$0xf]
  %v1146 = vld [vmem:[%s1132 + $0x34] sm:$0xf]
  %v1147 = vld [vmem:[%s1132 + $0x38] sm:$0xf]
  %v1148 = vld [vmem:[%s1132 + $0x3c] sm:$0xf]
  %v1165 = vunpack.c.l.b16 %v1133
  %v1166 = vunpack.c.l.b16 %v1134
  %v1167 = vunpack.c.l.b16 %v1135
  %v1168 = vunpack.c.l.b16 %v1136
  %v1169 = vunpack.c.l.b16 %v1137
  %v1170 = vunpack.c.l.b16 %v1138
  %v1171 = vunpack.c.l.b16 %v1139
  %v1172 = vunpack.c.l.b16 %v1140
  %v1173 = vunpack.c.l.b16 %v1141
  %v1174 = vunpack.c.l.b16 %v1142
  %v1175 = vunpack.c.l.b16 %v1143
  %v1176 = vunpack.c.l.b16 %v1144
  %v1177 = vunpack.c.l.b16 %v1145
  %v1178 = vunpack.c.l.b16 %v1146
  %v1179 = vunpack.c.l.b16 %v1147
  %v1180 = vunpack.c.l.b16 %v1148
  %v1181 = vpack.c.b16 %v1166, %v1165
  %v1182 = vpack.c.b16 %v1168, %v1167
  %v1183 = vpack.c.b16 %v1170, %v1169
  %v1184 = vpack.c.b16 %v1172, %v1171
  %v1185 = vpack.c.b16 %v1174, %v1173
  %v1186 = vpack.c.b16 %v1176, %v1175
  %v1187 = vpack.c.b16 %v1178, %v1177
  %v1188 = vpack.c.b16 %v1180, %v1179
  %v1190 = vsel %vm116, %v1181, 0
  %v1193 = vsel %vm116, %v1182, 0
  %v1196 = vsel %vm116, %v1183, 0
  %v1199 = vsel %vm116, %v1184, 0
  %v1202 = vsel %vm116, %v1185, 0
  %v1205 = vsel %vm116, %v1186, 0
  %v1208 = vsel %vm116, %v1187, 0
  %v1211 = vsel %vm116, %v1188, 0
  %1213 = vmatpush.bf16.msra.mxu0 0
  %1214 = vmatpush.bf16.msra.mxu0 0
  %1215 = vmatpush.bf16.msra.mxu0 0
  %1216 = vmatpush.bf16.msra.mxu0 0
  %1217 = vmatpush.bf16.msra.mxu0 0
  %1218 = vmatpush.bf16.msra.mxu0 %v143
  %1219 = vmatpush.bf16.msra.mxu0 %v112
  %1220 = vmatpush.bf16.msra.mxu0 %v111
  %1221 = vmatmul.bf16.gmra.mxu0 %v1190
  %v1222 = vpop.f32.mrf.mxu0
  %v1223 = vadd.f32 %v59, %v1222
  %v1224 = vpop.f32.mrf.mxu0
  %v1225 = vadd.f32 %v59, %v1224
  %1226 = vmatmul.bf16.gmra.mxu0 %v1193
  %v1227 = vpop.f32.mrf.mxu0
  %v1228 = vadd.f32 %v59, %v1227
  %v1229 = vpop.f32.mrf.mxu0
  %v1230 = vadd.f32 %v59, %v1229
  %1231 = vmatmul.bf16.gmra.mxu0 %v1196
  %v1232 = vpop.f32.mrf.mxu0
  %v1233 = vadd.f32 %v59, %v1232
  %v1234 = vpop.f32.mrf.mxu0
  %v1235 = vadd.f32 %v59, %v1234
  %1236 = vmatmul.bf16.gmra.mxu0 %v1199
  %v1237 = vpop.f32.mrf.mxu0
  %v1238 = vadd.f32 %v59, %v1237
  %v1239 = vpop.f32.mrf.mxu0
  %v1240 = vadd.f32 %v59, %v1239
  %1241 = vmatmul.bf16.gmra.mxu0 %v1202
  %v1242 = vpop.f32.mrf.mxu0
  %v1243 = vadd.f32 %v59, %v1242
  %v1244 = vpop.f32.mrf.mxu0
  %v1245 = vadd.f32 %v59, %v1244
  %1246 = vmatmul.bf16.gmra.mxu0 %v1205
  %v1247 = vpop.f32.mrf.mxu0
  %v1248 = vadd.f32 %v59, %v1247
  %v1249 = vpop.f32.mrf.mxu0
  %v1250 = vadd.f32 %v59, %v1249
  %1251 = vmatmul.bf16.gmra.mxu0 %v1208
  %v1252 = vpop.f32.mrf.mxu0
  %v1253 = vadd.f32 %v59, %v1252
  %v1254 = vpop.f32.mrf.mxu0
  %v1255 = vadd.f32 %v59, %v1254
  %1256 = vmatmul.bf16.gmra.mxu0 %v1211
  %v1257 = vpop.f32.mrf.mxu0
  %v1258 = vadd.f32 %v59, %v1257
  %v1259 = vpop.f32.mrf.mxu0
  %v1260 = vadd.f32 %v59, %v1259
  %1261 = vdwg.mxu0
  %v1262 = vmax.f32 %v1223, 0.0
  %v1263 = vmax.f32 %v1225, 0.0
  %v1264 = vmax.f32 %v1228, 0.0
  %v1265 = vmax.f32 %v1230, 0.0
  %v1266 = vmax.f32 %v1233, 0.0
  %v1267 = vmax.f32 %v1235, 0.0
  %v1268 = vmax.f32 %v1238, 0.0
  %v1269 = vmax.f32 %v1240, 0.0
  %v1270 = vmax.f32 %v1243, 0.0
  %v1271 = vmax.f32 %v1245, 0.0
  %v1272 = vmax.f32 %v1248, 0.0
  %v1273 = vmax.f32 %v1250, 0.0
  %v1274 = vmax.f32 %v1253, 0.0
  %v1275 = vmax.f32 %v1255, 0.0
  %v1276 = vmax.f32 %v1258, 0.0
  %v1277 = vmax.f32 %v1260, 0.0
  %v1278 = vpack.c.bf16 %v1262, %v1262
  %v1279 = vpack.c.bf16 %v1263, %v1263
  %v1280 = vpack.c.bf16 %v1264, %v1264
  %v1281 = vpack.c.bf16 %v1265, %v1265
  %v1282 = vpack.c.bf16 %v1266, %v1266
  %v1283 = vpack.c.bf16 %v1267, %v1267
  %v1284 = vpack.c.bf16 %v1268, %v1268
  %v1285 = vpack.c.bf16 %v1269, %v1269
  %v1286 = vpack.c.bf16 %v1270, %v1270
  %v1287 = vpack.c.bf16 %v1271, %v1271
  %v1288 = vpack.c.bf16 %v1272, %v1272
  %v1289 = vpack.c.bf16 %v1273, %v1273
  %v1290 = vpack.c.bf16 %v1274, %v1274
  %v1291 = vpack.c.bf16 %v1275, %v1275
  %v1292 = vpack.c.bf16 %v1276, %v1276
  %v1293 = vpack.c.bf16 %v1277, %v1277
  %1294 = vst [vmem:[#allocation2 + $0x18] sm:$0xf] %v1278
  %1295 = vst [vmem:[#allocation2 + $0x3c] sm:$0xf] %v1279
  %1296 = vst [vmem:[#allocation2 + $0x60] sm:$0xf] %v1280
  %1297 = vst [vmem:[#allocation2 + $0x84] sm:$0xf] %v1281
  %1298 = vst [vmem:[#allocation2 + $0xa8] sm:$0xf] %v1282
  %1299 = vst [vmem:[#allocation2 + $0xcc] sm:$0xf] %v1283
  %1300 = vst [vmem:[#allocation2 + $0xf0] sm:$0xf] %v1284
  %1301 = vst [vmem:[#allocation2 + $0x114] sm:$0xf] %v1285
  %1302 = vst [vmem:[#allocation2 + $0x138] sm:$0xf] %v1286
  %1303 = vst [vmem:[#allocation2 + $0x15c] sm:$0xf] %v1287
  %1304 = vst [vmem:[#allocation2 + $0x180] sm:$0xf] %v1288
  %1305 = vst [vmem:[#allocation2 + $0x1a4] sm:$0xf] %v1289
  %1306 = vst [vmem:[#allocation2 + $0x1c8] sm:$0xf] %v1290
  %1307 = vst [vmem:[#allocation2 + $0x1ec] sm:$0xf] %v1291
  %1308 = vst [vmem:[#allocation2 + $0x210] sm:$0xf] %v1292
  %1309 = vst [vmem:[#allocation2 + $0x234] sm:$0xf] %v1293
  %s1310 = scalar_lea.vmem %s0, 448
  %v1311 = vld [vmem:[%s1310] sm:$0xf]
  %v1312 = vld [vmem:[%s1310 + $0x4] sm:$0xf]
  %v1313 = vld [vmem:[%s1310 + $0x8] sm:$0xf]
  %v1314 = vld [vmem:[%s1310 + $0xc] sm:$0xf]
  %v1315 = vld [vmem:[%s1310 + $0x10] sm:$0xf]
  %v1316 = vld [vmem:[%s1310 + $0x14] sm:$0xf]
  %v1317 = vld [vmem:[%s1310 + $0x18] sm:$0xf]
  %v1318 = vld [vmem:[%s1310 + $0x1c] sm:$0xf]
  %v1319 = vld [vmem:[%s1310 + $0x20] sm:$0xf]
  %v1320 = vld [vmem:[%s1310 + $0x24] sm:$0xf]
  %v1321 = vld [vmem:[%s1310 + $0x28] sm:$0xf]
  %v1322 = vld [vmem:[%s1310 + $0x2c] sm:$0xf]
  %v1323 = vld [vmem:[%s1310 + $0x30] sm:$0xf]
  %v1324 = vld [vmem:[%s1310 + $0x34] sm:$0xf]
  %v1325 = vld [vmem:[%s1310 + $0x38] sm:$0xf]
  %v1326 = vld [vmem:[%s1310 + $0x3c] sm:$0xf]
  %v1343 = vunpack.c.l.b16 %v1311
  %v1344 = vunpack.c.l.b16 %v1312
  %v1345 = vunpack.c.l.b16 %v1313
  %v1346 = vunpack.c.l.b16 %v1314
  %v1347 = vunpack.c.l.b16 %v1315
  %v1348 = vunpack.c.l.b16 %v1316
  %v1349 = vunpack.c.l.b16 %v1317
  %v1350 = vunpack.c.l.b16 %v1318
  %v1351 = vunpack.c.l.b16 %v1319
  %v1352 = vunpack.c.l.b16 %v1320
  %v1353 = vunpack.c.l.b16 %v1321
  %v1354 = vunpack.c.l.b16 %v1322
  %v1355 = vunpack.c.l.b16 %v1323
  %v1356 = vunpack.c.l.b16 %v1324
  %v1357 = vunpack.c.l.b16 %v1325
  %v1358 = vunpack.c.l.b16 %v1326
  %v1359 = vpack.c.b16 %v1344, %v1343
  %v1360 = vpack.c.b16 %v1346, %v1345
  %v1361 = vpack.c.b16 %v1348, %v1347
  %v1362 = vpack.c.b16 %v1350, %v1349
  %v1363 = vpack.c.b16 %v1352, %v1351
  %v1364 = vpack.c.b16 %v1354, %v1353
  %v1365 = vpack.c.b16 %v1356, %v1355
  %v1366 = vpack.c.b16 %v1358, %v1357
  %v1368 = vsel %vm116, %v1359, 0
  %v1371 = vsel %vm116, %v1360, 0
  %v1374 = vsel %vm116, %v1361, 0
  %v1377 = vsel %vm116, %v1362, 0
  %v1380 = vsel %vm116, %v1363, 0
  %v1383 = vsel %vm116, %v1364, 0
  %v1386 = vsel %vm116, %v1365, 0
  %v1389 = vsel %vm116, %v1366, 0
  %1391 = vmatpush.bf16.msra.mxu0 0
  %1392 = vmatpush.bf16.msra.mxu0 0
  %1393 = vmatpush.bf16.msra.mxu0 0
  %1394 = vmatpush.bf16.msra.mxu0 0
  %1395 = vmatpush.bf16.msra.mxu0 0
  %1396 = vmatpush.bf16.msra.mxu0 %v143
  %1397 = vmatpush.bf16.msra.mxu0 %v112
  %1398 = vmatpush.bf16.msra.mxu0 %v111
  %1399 = vmatmul.bf16.gmra.mxu0 %v1368
  %v1400 = vpop.f32.mrf.mxu0
  %v1401 = vadd.f32 %v59, %v1400
  %v1402 = vpop.f32.mrf.mxu0
  %v1403 = vadd.f32 %v59, %v1402
  %1404 = vmatmul.bf16.gmra.mxu0 %v1371
  %v1405 = vpop.f32.mrf.mxu0
  %v1406 = vadd.f32 %v59, %v1405
  %v1407 = vpop.f32.mrf.mxu0
  %v1408 = vadd.f32 %v59, %v1407
  %1409 = vmatmul.bf16.gmra.mxu0 %v1374
  %v1410 = vpop.f32.mrf.mxu0
  %v1411 = vadd.f32 %v59, %v1410
  %v1412 = vpop.f32.mrf.mxu0
  %v1413 = vadd.f32 %v59, %v1412
  %1414 = vmatmul.bf16.gmra.mxu0 %v1377
  %v1415 = vpop.f32.mrf.mxu0
  %v1416 = vadd.f32 %v59, %v1415
  %v1417 = vpop.f32.mrf.mxu0
  %v1418 = vadd.f32 %v59, %v1417
  %1419 = vmatmul.bf16.gmra.mxu0 %v1380
  %v1420 = vpop.f32.mrf.mxu0
  %v1421 = vadd.f32 %v59, %v1420
  %v1422 = vpop.f32.mrf.mxu0
  %v1423 = vadd.f32 %v59, %v1422
  %1424 = vmatmul.bf16.gmra.mxu0 %v1383
  %v1425 = vpop.f32.mrf.mxu0
  %v1426 = vadd.f32 %v59, %v1425
  %v1427 = vpop.f32.mrf.mxu0
  %v1428 = vadd.f32 %v59, %v1427
  %1429 = vmatmul.bf16.gmra.mxu0 %v1386
  %v1430 = vpop.f32.mrf.mxu0
  %v1431 = vadd.f32 %v59, %v1430
  %v1432 = vpop.f32.mrf.mxu0
  %v1433 = vadd.f32 %v59, %v1432
  %1434 = vmatmul.bf16.gmra.mxu0 %v1389
  %v1435 = vpop.f32.mrf.mxu0
  %v1436 = vadd.f32 %v59, %v1435
  %v1437 = vpop.f32.mrf.mxu0
  %v1438 = vadd.f32 %v59, %v1437
  %1439 = vdwg.mxu0
  %v1440 = vmax.f32 %v1401, 0.0
  %v1441 = vmax.f32 %v1403, 0.0
  %v1442 = vmax.f32 %v1406, 0.0
  %v1443 = vmax.f32 %v1408, 0.0
  %v1444 = vmax.f32 %v1411, 0.0
  %v1445 = vmax.f32 %v1413, 0.0
  %v1446 = vmax.f32 %v1416, 0.0
  %v1447 = vmax.f32 %v1418, 0.0
  %v1448 = vmax.f32 %v1421, 0.0
  %v1449 = vmax.f32 %v1423, 0.0
  %v1450 = vmax.f32 %v1426, 0.0
  %v1451 = vmax.f32 %v1428, 0.0
  %v1452 = vmax.f32 %v1431, 0.0
  %v1453 = vmax.f32 %v1433, 0.0
  %v1454 = vmax.f32 %v1436, 0.0
  %v1455 = vmax.f32 %v1438, 0.0
  %v1456 = vpack.c.bf16 %v1440, %v1440
  %v1457 = vpack.c.bf16 %v1441, %v1441
  %v1458 = vpack.c.bf16 %v1442, %v1442
  %v1459 = vpack.c.bf16 %v1443, %v1443
  %v1460 = vpack.c.bf16 %v1444, %v1444
  %v1461 = vpack.c.bf16 %v1445, %v1445
  %v1462 = vpack.c.bf16 %v1446, %v1446
  %v1463 = vpack.c.bf16 %v1447, %v1447
  %v1464 = vpack.c.bf16 %v1448, %v1448
  %v1465 = vpack.c.bf16 %v1449, %v1449
  %v1466 = vpack.c.bf16 %v1450, %v1450
  %v1467 = vpack.c.bf16 %v1451, %v1451
  %v1468 = vpack.c.bf16 %v1452, %v1452
  %v1469 = vpack.c.bf16 %v1453, %v1453
  %v1470 = vpack.c.bf16 %v1454, %v1454
  %v1471 = vpack.c.bf16 %v1455, %v1455
  %1472 = vst [vmem:[#allocation2 + $0x1c] sm:$0xf] %v1456
  %1473 = vst [vmem:[#allocation2 + $0x40] sm:$0xf] %v1457
  %1474 = vst [vmem:[#allocation2 + $0x64] sm:$0xf] %v1458
  %1475 = vst [vmem:[#allocation2 + $0x88] sm:$0xf] %v1459
  %1476 = vst [vmem:[#allocation2 + $0xac] sm:$0xf] %v1460
  %1477 = vst [vmem:[#allocation2 + $0xd0] sm:$0xf] %v1461
  %1478 = vst [vmem:[#allocation2 + $0xf4] sm:$0xf] %v1462
  %1479 = vst [vmem:[#allocation2 + $0x118] sm:$0xf] %v1463
  %1480 = vst [vmem:[#allocation2 + $0x13c] sm:$0xf] %v1464
  %1481 = vst [vmem:[#allocation2 + $0x160] sm:$0xf] %v1465
  %1482 = vst [vmem:[#allocation2 + $0x184] sm:$0xf] %v1466
  %1483 = vst [vmem:[#allocation2 + $0x1a8] sm:$0xf] %v1467
  %1484 = vst [vmem:[#allocation2 + $0x1cc] sm:$0xf] %v1468
  %1485 = vst [vmem:[#allocation2 + $0x1f0] sm:$0xf] %v1469
  %1486 = vst [vmem:[#allocation2 + $0x214] sm:$0xf] %v1470
  %1487 = vst [vmem:[#allocation2 + $0x238] sm:$0xf] %v1471
  %s1488 = scalar_lea.vmem %s0, 512
  %v1489 = vld [vmem:[%s1488] sm:$0xf]
  %v1490 = vld [vmem:[%s1488 + $0x4] sm:$0xf]
  %v1491 = vld [vmem:[%s1488 + $0x8] sm:$0xf]
  %v1492 = vld [vmem:[%s1488 + $0xc] sm:$0xf]
  %v1493 = vld [vmem:[%s1488 + $0x10] sm:$0xf]
  %v1494 = vld [vmem:[%s1488 + $0x14] sm:$0xf]
  %v1495 = vld [vmem:[%s1488 + $0x18] sm:$0xf]
  %v1496 = vld [vmem:[%s1488 + $0x1c] sm:$0xf]
  %v1497 = vld [vmem:[%s1488 + $0x20] sm:$0xf]
  %v1498 = vld [vmem:[%s1488 + $0x24] sm:$0xf]
  %v1499 = vld [vmem:[%s1488 + $0x28] sm:$0xf]
  %v1500 = vld [vmem:[%s1488 + $0x2c] sm:$0xf]
  %v1501 = vld [vmem:[%s1488 + $0x30] sm:$0xf]
  %v1502 = vld [vmem:[%s1488 + $0x34] sm:$0xf]
  %v1503 = vld [vmem:[%s1488 + $0x38] sm:$0xf]
  %v1504 = vld [vmem:[%s1488 + $0x3c] sm:$0xf]
  %v1521 = vunpack.c.l.b16 %v1489
  %v1522 = vunpack.c.l.b16 %v1490
  %v1523 = vunpack.c.l.b16 %v1491
  %v1524 = vunpack.c.l.b16 %v1492
  %v1525 = vunpack.c.l.b16 %v1493
  %v1526 = vunpack.c.l.b16 %v1494
  %v1527 = vunpack.c.l.b16 %v1495
  %v1528 = vunpack.c.l.b16 %v1496
  %v1529 = vunpack.c.l.b16 %v1497
  %v1530 = vunpack.c.l.b16 %v1498
  %v1531 = vunpack.c.l.b16 %v1499
  %v1532 = vunpack.c.l.b16 %v1500
  %v1533 = vunpack.c.l.b16 %v1501
  %v1534 = vunpack.c.l.b16 %v1502
  %v1535 = vunpack.c.l.b16 %v1503
  %v1536 = vunpack.c.l.b16 %v1504
  %v1537 = vpack.c.b16 %v1522, %v1521
  %v1538 = vpack.c.b16 %v1524, %v1523
  %v1539 = vpack.c.b16 %v1526, %v1525
  %v1540 = vpack.c.b16 %v1528, %v1527
  %v1541 = vpack.c.b16 %v1530, %v1529
  %v1542 = vpack.c.b16 %v1532, %v1531
  %v1543 = vpack.c.b16 %v1534, %v1533
  %v1544 = vpack.c.b16 %v1536, %v1535
  %v1546 = vsel %vm116, %v1537, 0
  %v1549 = vsel %vm116, %v1538, 0
  %v1552 = vsel %vm116, %v1539, 0
  %v1555 = vsel %vm116, %v1540, 0
  %v1558 = vsel %vm116, %v1541, 0
  %v1561 = vsel %vm116, %v1542, 0
  %v1564 = vsel %vm116, %v1543, 0
  %v1567 = vsel %vm116, %v1544, 0
  %1569 = vmatpush.bf16.msra.mxu0 0
  %1570 = vmatpush.bf16.msra.mxu0 0
  %1571 = vmatpush.bf16.msra.mxu0 0
  %1572 = vmatpush.bf16.msra.mxu0 0
  %1573 = vmatpush.bf16.msra.mxu0 0
  %1574 = vmatpush.bf16.msra.mxu0 %v143
  %1575 = vmatpush.bf16.msra.mxu0 %v112
  %1576 = vmatpush.bf16.msra.mxu0 %v111
  %1577 = vmatmul.bf16.gmra.mxu0 %v1546
  %v1578 = vpop.f32.mrf.mxu0
  %v1579 = vadd.f32 %v59, %v1578
  %v1580 = vpop.f32.mrf.mxu0
  %v1581 = vadd.f32 %v59, %v1580
  %1582 = vmatmul.bf16.gmra.mxu0 %v1549
  %v1583 = vpop.f32.mrf.mxu0
  %v1584 = vadd.f32 %v59, %v1583
  %v1585 = vpop.f32.mrf.mxu0
  %v1586 = vadd.f32 %v59, %v1585
  %1587 = vmatmul.bf16.gmra.mxu0 %v1552
  %v1588 = vpop.f32.mrf.mxu0
  %v1589 = vadd.f32 %v59, %v1588
  %v1590 = vpop.f32.mrf.mxu0
  %v1591 = vadd.f32 %v59, %v1590
  %1592 = vmatmul.bf16.gmra.mxu0 %v1555
  %v1593 = vpop.f32.mrf.mxu0
  %v1594 = vadd.f32 %v59, %v1593
  %v1595 = vpop.f32.mrf.mxu0
  %v1596 = vadd.f32 %v59, %v1595
  %1597 = vmatmul.bf16.gmra.mxu0 %v1558
  %v1598 = vpop.f32.mrf.mxu0
  %v1599 = vadd.f32 %v59, %v1598
  %v1600 = vpop.f32.mrf.mxu0
  %v1601 = vadd.f32 %v59, %v1600
  %1602 = vmatmul.bf16.gmra.mxu0 %v1561
  %v1603 = vpop.f32.mrf.mxu0
  %v1604 = vadd.f32 %v59, %v1603
  %v1605 = vpop.f32.mrf.mxu0
  %v1606 = vadd.f32 %v59, %v1605
  %1607 = vmatmul.bf16.gmra.mxu0 %v1564
  %v1608 = vpop.f32.mrf.mxu0
  %v1609 = vadd.f32 %v59, %v1608
  %v1610 = vpop.f32.mrf.mxu0
  %v1611 = vadd.f32 %v59, %v1610
  %1612 = vmatmul.bf16.gmra.mxu0 %v1567
  %v1613 = vpop.f32.mrf.mxu0
  %v1614 = vadd.f32 %v59, %v1613
  %v1615 = vpop.f32.mrf.mxu0
  %v1616 = vadd.f32 %v59, %v1615
  %1617 = vdwg.mxu0
  %v1618 = vmax.f32 %v1579, 0.0
  %v1619 = vmax.f32 %v1581, 0.0
  %v1620 = vmax.f32 %v1584, 0.0
  %v1621 = vmax.f32 %v1586, 0.0
  %v1622 = vmax.f32 %v1589, 0.0
  %v1623 = vmax.f32 %v1591, 0.0
  %v1624 = vmax.f32 %v1594, 0.0
  %v1625 = vmax.f32 %v1596, 0.0
  %v1626 = vmax.f32 %v1599, 0.0
  %v1627 = vmax.f32 %v1601, 0.0
  %v1628 = vmax.f32 %v1604, 0.0
  %v1629 = vmax.f32 %v1606, 0.0
  %v1630 = vmax.f32 %v1609, 0.0
  %v1631 = vmax.f32 %v1611, 0.0
  %v1632 = vmax.f32 %v1614, 0.0
  %v1633 = vmax.f32 %v1616, 0.0
  %v1634 = vpack.c.bf16 %v1618, %v1618
  %v1635 = vpack.c.bf16 %v1619, %v1619
  %v1636 = vpack.c.bf16 %v1620, %v1620
  %v1637 = vpack.c.bf16 %v1621, %v1621
  %v1638 = vpack.c.bf16 %v1622, %v1622
  %v1639 = vpack.c.bf16 %v1623, %v1623
  %v1640 = vpack.c.bf16 %v1624, %v1624
  %v1641 = vpack.c.bf16 %v1625, %v1625
  %v1642 = vpack.c.bf16 %v1626, %v1626
  %v1643 = vpack.c.bf16 %v1627, %v1627
  %v1644 = vpack.c.bf16 %v1628, %v1628
  %v1645 = vpack.c.bf16 %v1629, %v1629
  %v1646 = vpack.c.bf16 %v1630, %v1630
  %v1647 = vpack.c.bf16 %v1631, %v1631
  %v1648 = vpack.c.bf16 %v1632, %v1632
  %v1649 = vpack.c.bf16 %v1633, %v1633
  %1650 = vst [vmem:[#allocation2 + $0x20] sm:$0xf] %v1634
  %1651 = vst [vmem:[#allocation2 + $0x44] sm:$0xf] %v1635
  %1652 = vst [vmem:[#allocation2 + $0x68] sm:$0xf] %v1636
  %1653 = vst [vmem:[#allocation2 + $0x8c] sm:$0xf] %v1637
  %1654 = vst [vmem:[#allocation2 + $0xb0] sm:$0xf] %v1638
  %1655 = vst [vmem:[#allocation2 + $0xd4] sm:$0xf] %v1639
  %1656 = vst [vmem:[#allocation2 + $0xf8] sm:$0xf] %v1640
  %1657 = vst [vmem:[#allocation2 + $0x11c] sm:$0xf] %v1641
  %1658 = vst [vmem:[#allocation2 + $0x140] sm:$0xf] %v1642
  %1659 = vst [vmem:[#allocation2 + $0x164] sm:$0xf] %v1643
  %1660 = vst [vmem:[#allocation2 + $0x188] sm:$0xf] %v1644
  %1661 = vst [vmem:[#allocation2 + $0x1ac] sm:$0xf] %v1645
  %1662 = vst [vmem:[#allocation2 + $0x1d0] sm:$0xf] %v1646
  %1663 = vst [vmem:[#allocation2 + $0x1f4] sm:$0xf] %v1647
  %1664 = vst [vmem:[#allocation2 + $0x218] sm:$0xf] %v1648
  %1665 = vst [vmem:[#allocation2 + $0x23c] sm:$0xf] %v1649
  %v1666 = vld [vmem:[#allocation2] sm:$0xff]
  %v1667 = vld [vmem:[#allocation2 + $0x8] sm:$0xff]
  %v1668 = vld [vmem:[#allocation2 + $0x10] sm:$0xff]
  %v1669 = vld [vmem:[#allocation2 + $0x18] sm:$0xff]
  %v1670 = vld [vmem:[#allocation2 + $0x20] sm:$0xf]
  %v1671 = vld [vmem:[#allocation2 + $0x24] sm:$0xff]
  %v1672 = vld [vmem:[#allocation2 + $0x2c] sm:$0xff]
  %v1673 = vld [vmem:[#allocation2 + $0x34] sm:$0xff]
  %v1674 = vld [vmem:[#allocation2 + $0x3c] sm:$0xff]
  %v1675 = vld [vmem:[#allocation2 + $0x44] sm:$0xf]
  %v1676 = vld [vmem:[#allocation2 + $0x48] sm:$0xff]
  %v1677 = vld [vmem:[#allocation2 + $0x50] sm:$0xff]
  %v1678 = vld [vmem:[#allocation2 + $0x58] sm:$0xff]
  %v1679 = vld [vmem:[#allocation2 + $0x60] sm:$0xff]
  %v1680 = vld [vmem:[#allocation2 + $0x68] sm:$0xf]
  %v1681 = vld [vmem:[#allocation2 + $0x6c] sm:$0xff]
  %v1682 = vld [vmem:[#allocation2 + $0x74] sm:$0xff]
  %v1683 = vld [vmem:[#allocation2 + $0x7c] sm:$0xff]
  %v1684 = vld [vmem:[#allocation2 + $0x84] sm:$0xff]
  %v1685 = vld [vmem:[#allocation2 + $0x8c] sm:$0xf]
  %v1686 = vld [vmem:[#allocation2 + $0x90] sm:$0xff]
  %v1687 = vld [vmem:[#allocation2 + $0x98] sm:$0xff]
  %v1688 = vld [vmem:[#allocation2 + $0xa0] sm:$0xff]
  %v1689 = vld [vmem:[#allocation2 + $0xa8] sm:$0xff]
  %v1690 = vld [vmem:[#allocation2 + $0xb0] sm:$0xf]
  %v1691 = vld [vmem:[#allocation2 + $0xb4] sm:$0xff]
  %v1692 = vld [vmem:[#allocation2 + $0xbc] sm:$0xff]
  %v1693 = vld [vmem:[#allocation2 + $0xc4] sm:$0xff]
  %v1694 = vld [vmem:[#allocation2 + $0xcc] sm:$0xff]
  %v1695 = vld [vmem:[#allocation2 + $0xd4] sm:$0xf]
  %v1696 = vld [vmem:[#allocation2 + $0xd8] sm:$0xff]
  %v1697 = vld [vmem:[#allocation2 + $0xe0] sm:$0xff]
  %v1698 = vld [vmem:[#allocation2 + $0xe8] sm:$0xff]
  %v1699 = vld [vmem:[#allocation2 + $0xf0] sm:$0xff]
  %v1700 = vld [vmem:[#allocation2 + $0xf8] sm:$0xf]
  %v1701 = vld [vmem:[#allocation2 + $0xfc] sm:$0xff]
  %v1702 = vld [vmem:[#allocation2 + $0x104] sm:$0xff]
  %v1703 = vld [vmem:[#allocation2 + $0x10c] sm:$0xff]
  %v1704 = vld [vmem:[#allocation2 + $0x114] sm:$0xff]
  %v1705 = vld [vmem:[#allocation2 + $0x11c] sm:$0xf]
  %v1706 = vld [vmem:[#allocation2 + $0x120] sm:$0xff]
  %v1707 = vld [vmem:[#allocation2 + $0x128] sm:$0xff]
  %v1708 = vld [vmem:[#allocation2 + $0x130] sm:$0xff]
  %v1709 = vld [vmem:[#allocation2 + $0x138] sm:$0xff]
  %v1710 = vld [vmem:[#allocation2 + $0x140] sm:$0xf]
  %v1711 = vld [vmem:[#allocation2 + $0x144] sm:$0xff]
  %v1712 = vld [vmem:[#allocation2 + $0x14c] sm:$0xff]
  %v1713 = vld [vmem:[#allocation2 + $0x154] sm:$0xff]
  %v1714 = vld [vmem:[#allocation2 + $0x15c] sm:$0xff]
  %v1715 = vld [vmem:[#allocation2 + $0x164] sm:$0xf]
  %v1716 = vld [vmem:[#allocation2 + $0x168] sm:$0xff]
  %v1717 = vld [vmem:[#allocation2 + $0x170] sm:$0xff]
  %v1718 = vld [vmem:[#allocation2 + $0x178] sm:$0xff]
  %v1719 = vld [vmem:[#allocation2 + $0x180] sm:$0xff]
  %v1720 = vld [vmem:[#allocation2 + $0x188] sm:$0xf]
  %v1721 = vld [vmem:[#allocation2 + $0x18c] sm:$0xff]
  %v1722 = vld [vmem:[#allocation2 + $0x194] sm:$0xff]
  %v1723 = vld [vmem:[#allocation2 + $0x19c] sm:$0xff]
  %v1724 = vld [vmem:[#allocation2 + $0x1a4] sm:$0xff]
  %v1725 = vld [vmem:[#allocation2 + $0x1ac] sm:$0xf]
  %v1726 = vld [vmem:[#allocation2 + $0x1b0] sm:$0xff]
  %v1727 = vld [vmem:[#allocation2 + $0x1b8] sm:$0xff]
  %v1728 = vld [vmem:[#allocation2 + $0x1c0] sm:$0xff]
  %v1729 = vld [vmem:[#allocation2 + $0x1c8] sm:$0xff]
  %v1730 = vld [vmem:[#allocation2 + $0x1d0] sm:$0xf]
  %v1731 = vld [vmem:[#allocation2 + $0x1d4] sm:$0xff]
  %v1732 = vld [vmem:[#allocation2 + $0x1dc] sm:$0xff]
  %v1733 = vld [vmem:[#allocation2 + $0x1e4] sm:$0xff]
  %v1734 = vld [vmem:[#allocation2 + $0x1ec] sm:$0xff]
  %v1735 = vld [vmem:[#allocation2 + $0x1f4] sm:$0xf]
  %v1736 = vld [vmem:[#allocation2 + $0x1f8] sm:$0xff]
  %v1737 = vld [vmem:[#allocation2 + $0x200] sm:$0xff]
  %v1738 = vld [vmem:[#allocation2 + $0x208] sm:$0xff]
  %v1739 = vld [vmem:[#allocation2 + $0x210] sm:$0xff]
  %v1740 = vld [vmem:[#allocation2 + $0x218] sm:$0xf]
  %v1741 = vld [vmem:[#allocation2 + $0x21c] sm:$0xff]
  %v1742 = vld [vmem:[#allocation2 + $0x224] sm:$0xff]
  %v1743 = vld [vmem:[#allocation2 + $0x22c] sm:$0xff]
  %v1744 = vld [vmem:[#allocation2 + $0x234] sm:$0xff]
  %v1745 = vld [vmem:[#allocation2 + $0x23c] sm:$0xf]
  %v1746 = vld [vmem:[%s3] sm:$0xf]
  %v1747 = vld [vmem:[%s3 + $0x4] sm:$0xf]
  %v1748 = vld [vmem:[%s3 + $0x8] sm:$0xf]
  %v1749 = vld [vmem:[%s3 + $0xc] sm:$0xf]
  %v1750 = vld [vmem:[%s3 + $0x10] sm:$0xf]
  %v1751 = vld [vmem:[%s3 + $0x14] sm:$0xf]
  %v1752 = vld [vmem:[%s3 + $0x18] sm:$0xf]
  %v1753 = vld [vmem:[%s3 + $0x1c] sm:$0xf]
  %v1754 = vld [vmem:[%s3 + $0x20] sm:$0xf]
  %v1755 = vld [vmem:[%s3 + $0x24] sm:$0xf]
  %v1756 = vld [vmem:[%s3 + $0x28] sm:$0xf]
  %v1757 = vld [vmem:[%s3 + $0x2c] sm:$0xf]
  %v1758 = vld [vmem:[%s3 + $0x30] sm:$0xf]
  %v1759 = vld [vmem:[%s3 + $0x34] sm:$0xf]
  %v1760 = vld [vmem:[%s3 + $0x38] sm:$0xf]
  %v1761 = vld [vmem:[%s3 + $0x3c] sm:$0xf]
  %v1762 = vld [vmem:[%s3 + $0x40] sm:$0xf]
  %v1763 = vld [vmem:[%s3 + $0x44] sm:$0xf]
  %v1764 = vld [vmem:[%s3 + $0x48] sm:$0xf]
  %v1765 = vld [vmem:[%s3 + $0x4c] sm:$0xf]
  %v1766 = vld [vmem:[%s3 + $0x50] sm:$0xf]
  %v1767 = vld [vmem:[%s3 + $0x54] sm:$0xf]
  %v1768 = vld [vmem:[%s3 + $0x58] sm:$0xf]
  %v1769 = vld [vmem:[%s3 + $0x5c] sm:$0xf]
  %v1770 = vld [vmem:[%s3 + $0x60] sm:$0xf]
  %v1771 = vld [vmem:[%s3 + $0x64] sm:$0xf]
  %v1772 = vld [vmem:[%s3 + $0x68] sm:$0xf]
  %v1773 = vld [vmem:[%s3 + $0x6c] sm:$0xf]
  %v1774 = vld [vmem:[%s3 + $0x70] sm:$0xf]
  %v1775 = vld [vmem:[%s3 + $0x74] sm:$0xf]
  %v1776 = vld [vmem:[%s3 + $0x78] sm:$0xf]
  %v1777 = vld [vmem:[%s3 + $0x7c] sm:$0xf]
  %v1778 = vld [vmem:[%s3 + $0x80] sm:$0xf]
  %v1779 = vld [vmem:[%s3 + $0x84] sm:$0xf]
  %v1780 = vld [vmem:[%s3 + $0x88] sm:$0xf]
  %v1781 = vld [vmem:[%s3 + $0x8c] sm:$0xf]
  %v1782 = vld [vmem:[%s3 + $0x90] sm:$0xf]
  %v1783 = vld [vmem:[%s3 + $0x94] sm:$0xf]
  %v1784 = vld [vmem:[%s3 + $0x98] sm:$0xf]
  %v1785 = vld [vmem:[%s3 + $0x9c] sm:$0xf]
  %v1786 = vld [vmem:[%s3 + $0xa0] sm:$0xf]
  %v1787 = vld [vmem:[%s3 + $0xa4] sm:$0xf]
  %v1788 = vld [vmem:[%s3 + $0xa8] sm:$0xf]
  %v1789 = vld [vmem:[%s3 + $0xac] sm:$0xf]
  %v1790 = vld [vmem:[%s3 + $0xb0] sm:$0xf]
  %v1791 = vld [vmem:[%s3 + $0xb4] sm:$0xf]
  %v1792 = vld [vmem:[%s3 + $0xb8] sm:$0xf]
  %v1793 = vld [vmem:[%s3 + $0xbc] sm:$0xf]
  %v1794 = vld [vmem:[%s3 + $0xc0] sm:$0xf]
  %v1795 = vld [vmem:[%s3 + $0xc4] sm:$0xf]
  %v1796 = vld [vmem:[%s3 + $0xc8] sm:$0xf]
  %v1797 = vld [vmem:[%s3 + $0xcc] sm:$0xf]
  %v1798 = vld [vmem:[%s3 + $0xd0] sm:$0xf]
  %v1799 = vld [vmem:[%s3 + $0xd4] sm:$0xf]
  %v1800 = vld [vmem:[%s3 + $0xd8] sm:$0xf]
  %v1801 = vld [vmem:[%s3 + $0xdc] sm:$0xf]
  %v1802 = vld [vmem:[%s3 + $0xe0] sm:$0xf]
  %v1803 = vld [vmem:[%s3 + $0xe4] sm:$0xf]
  %v1804 = vld [vmem:[%s3 + $0xe8] sm:$0xf]
  %v1805 = vld [vmem:[%s3 + $0xec] sm:$0xf]
  %v1806 = vld [vmem:[%s3 + $0xf0] sm:$0xf]
  %v1807 = vld [vmem:[%s3 + $0xf4] sm:$0xf]
  %v1808 = vld [vmem:[%s3 + $0xf8] sm:$0xf]
  %v1809 = vld [vmem:[%s3 + $0xfc] sm:$0xf]
  %v1810 = vld [vmem:[%s3 + $0x100] sm:$0xf]
  %v1811 = vld [vmem:[%s3 + $0x104] sm:$0xf]
  %v1812 = vld [vmem:[%s3 + $0x108] sm:$0xf]
  %v1813 = vld [vmem:[%s3 + $0x10c] sm:$0xf]
  %v1814 = vld [vmem:[%s3 + $0x110] sm:$0xf]
  %v1815 = vld [vmem:[%s3 + $0x114] sm:$0xf]
  %v1816 = vld [vmem:[%s3 + $0x118] sm:$0xf]
  %v1817 = vld [vmem:[%s3 + $0x11c] sm:$0xf]
  %v1818 = vld [vmem:[%s3 + $0x120] sm:$0xf]
  %v1819 = vld [vmem:[%s3 + $0x124] sm:$0xf]
  %v1820 = vld [vmem:[%s3 + $0x128] sm:$0xf]
  %v1821 = vld [vmem:[%s3 + $0x12c] sm:$0xf]
  %v1822 = vld [vmem:[%s3 + $0x130] sm:$0xf]
  %v1823 = vld [vmem:[%s3 + $0x134] sm:$0xf]
  %v1824 = vld [vmem:[%s3 + $0x138] sm:$0xf]
  %v1825 = vld [vmem:[%s3 + $0x13c] sm:$0xf]
  %v1826 = vld [vmem:[%s3 + $0x140] sm:$0xf]
  %v1827 = vld [vmem:[%s3 + $0x144] sm:$0xf]
  %v1828 = vld [vmem:[%s3 + $0x148] sm:$0xf]
  %v1829 = vld [vmem:[%s3 + $0x14c] sm:$0xf]
  %v1830 = vld [vmem:[%s3 + $0x150] sm:$0xf]
  %v1831 = vld [vmem:[%s3 + $0x154] sm:$0xf]
  %v1832 = vld [vmem:[%s3 + $0x158] sm:$0xf]
  %v1833 = vld [vmem:[%s3 + $0x15c] sm:$0xf]
  %v1834 = vld [vmem:[%s3 + $0x160] sm:$0xf]
  %v1835 = vld [vmem:[%s3 + $0x164] sm:$0xf]
  %v1836 = vld [vmem:[%s3 + $0x168] sm:$0xf]
  %v1837 = vld [vmem:[%s3 + $0x16c] sm:$0xf]
  %v1838 = vld [vmem:[%s3 + $0x170] sm:$0xf]
  %v1839 = vld [vmem:[%s3 + $0x174] sm:$0xf]
  %v1840 = vld [vmem:[%s3 + $0x178] sm:$0xf]
  %v1841 = vld [vmem:[%s3 + $0x17c] sm:$0xf]
  %v1842 = vld [vmem:[%s3 + $0x180] sm:$0xf]
  %v1843 = vld [vmem:[%s3 + $0x184] sm:$0xf]
  %v1844 = vld [vmem:[%s3 + $0x188] sm:$0xf]
  %v1845 = vld [vmem:[%s3 + $0x18c] sm:$0xf]
  %v1846 = vld [vmem:[%s3 + $0x190] sm:$0xf]
  %v1847 = vld [vmem:[%s3 + $0x194] sm:$0xf]
  %v1848 = vld [vmem:[%s3 + $0x198] sm:$0xf]
  %v1849 = vld [vmem:[%s3 + $0x19c] sm:$0xf]
  %v1850 = vld [vmem:[%s3 + $0x1a0] sm:$0xf]
  %v1851 = vld [vmem:[%s3 + $0x1a4] sm:$0xf]
  %v1852 = vld [vmem:[%s3 + $0x1a8] sm:$0xf]
  %v1853 = vld [vmem:[%s3 + $0x1ac] sm:$0xf]
  %v1854 = vld [vmem:[%s3 + $0x1b0] sm:$0xf]
  %v1855 = vld [vmem:[%s3 + $0x1b4] sm:$0xf]
  %v1856 = vld [vmem:[%s3 + $0x1b8] sm:$0xf]
  %v1857 = vld [vmem:[%s3 + $0x1bc] sm:$0xf]
  %v1858 = vld [vmem:[%s3 + $0x1c0] sm:$0xf]
  %v1859 = vld [vmem:[%s3 + $0x1c4] sm:$0xf]
  %v1860 = vld [vmem:[%s3 + $0x1c8] sm:$0xf]
  %v1861 = vld [vmem:[%s3 + $0x1cc] sm:$0xf]
  %v1862 = vld [vmem:[%s3 + $0x1d0] sm:$0xf]
  %v1863 = vld [vmem:[%s3 + $0x1d4] sm:$0xf]
  %v1864 = vld [vmem:[%s3 + $0x1d8] sm:$0xf]
  %v1865 = vld [vmem:[%s3 + $0x1dc] sm:$0xf]
  %v1866 = vld [vmem:[%s3 + $0x1e0] sm:$0xf]
  %v1867 = vld [vmem:[%s3 + $0x1e4] sm:$0xf]
  %v1868 = vld [vmem:[%s3 + $0x1e8] sm:$0xf]
  %v1869 = vld [vmem:[%s3 + $0x1ec] sm:$0xf]
  %v1870 = vld [vmem:[%s3 + $0x1f0] sm:$0xf]
  %v1871 = vld [vmem:[%s3 + $0x1f4] sm:$0xf]
  %v1872 = vld [vmem:[%s3 + $0x1f8] sm:$0xf]
  %v1873 = vld [vmem:[%s3 + $0x1fc] sm:$0xf]
  %v1874 = vld [vmem:[%s3 + $0x200] sm:$0xf]
  %v1875 = vld [vmem:[%s3 + $0x204] sm:$0xf]
  %v1876 = vld [vmem:[%s3 + $0x208] sm:$0xf]
  %v1877 = vld [vmem:[%s3 + $0x20c] sm:$0xf]
  %v1878 = vld [vmem:[%s3 + $0x210] sm:$0xf]
  %v1879 = vld [vmem:[%s3 + $0x214] sm:$0xf]
  %v1880 = vld [vmem:[%s3 + $0x218] sm:$0xf]
  %v1881 = vld [vmem:[%s3 + $0x21c] sm:$0xf]
  %v1882 = vld [vmem:[%s3 + $0x220] sm:$0xf]
  %v1883 = vld [vmem:[%s3 + $0x224] sm:$0xf]
  %v1884 = vld [vmem:[%s3 + $0x228] sm:$0xf]
  %v1885 = vld [vmem:[%s3 + $0x22c] sm:$0xf]
  %v1886 = vld [vmem:[%s3 + $0x230] sm:$0xf]
  %v1887 = vld [vmem:[%s3 + $0x234] sm:$0xf]
  %v1888 = vld [vmem:[%s3 + $0x238] sm:$0xf]
  %v1889 = vld [vmem:[%s3 + $0x23c] sm:$0xf]
  %v1890 = vld [vmem:[%s4] sm:$0x1]
  %v1892 = vperm.slane %v1890, 0
  %v1974 = vunpack.c.l.b16 %v1666
  %v1975 = vunpack.c.h.b16 %v1666
  %v1976 = vunpack.c.l.b16 %v1667
  %v1977 = vunpack.c.h.b16 %v1667
  %v1978 = vunpack.c.l.b16 %v1668
  %v1979 = vunpack.c.h.b16 %v1668
  %v1980 = vunpack.c.l.b16 %v1669
  %v1981 = vunpack.c.h.b16 %v1669
  %v1982 = vunpack.c.l.b16 %v1670
  %v1983 = vunpack.c.l.b16 %v1671
  %v1984 = vunpack.c.h.b16 %v1671
  %v1985 = vunpack.c.l.b16 %v1672
  %v1986 = vunpack.c.h.b16 %v1672
  %v1987 = vunpack.c.l.b16 %v1673
  %v1988 = vunpack.c.h.b16 %v1673
  %v1989 = vunpack.c.l.b16 %v1674
  %v1990 = vunpack.c.h.b16 %v1674
  %v1991 = vunpack.c.l.b16 %v1675
  %v1992 = vunpack.c.l.b16 %v1676
  %v1993 = vunpack.c.h.b16 %v1676
  %v1994 = vunpack.c.l.b16 %v1677
  %v1995 = vunpack.c.h.b16 %v1677
  %v1996 = vunpack.c.l.b16 %v1678
  %v1997 = vunpack.c.h.b16 %v1678
  %v1998 = vunpack.c.l.b16 %v1679
  %v1999 = vunpack.c.h.b16 %v1679
  %v2000 = vunpack.c.l.b16 %v1680
  %v2001 = vunpack.c.l.b16 %v1681
  %v2002 = vunpack.c.h.b16 %v1681
  %v2003 = vunpack.c.l.b16 %v1682
  %v2004 = vunpack.c.h.b16 %v1682
  %v2005 = vunpack.c.l.b16 %v1683
  %v2006 = vunpack.c.h.b16 %v1683
  %v2007 = vunpack.c.l.b16 %v1684
  %v2008 = vunpack.c.h.b16 %v1684
  %v2009 = vunpack.c.l.b16 %v1685
  %v2010 = vunpack.c.l.b16 %v1686
  %v2011 = vunpack.c.h.b16 %v1686
  %v2012 = vunpack.c.l.b16 %v1687
  %v2013 = vunpack.c.h.b16 %v1687
  %v2014 = vunpack.c.l.b16 %v1688
  %v2015 = vunpack.c.h.b16 %v1688
  %v2016 = vunpack.c.l.b16 %v1689
  %v2017 = vunpack.c.h.b16 %v1689
  %v2018 = vunpack.c.l.b16 %v1690
  %v2019 = vunpack.c.l.b16 %v1691
  %v2020 = vunpack.c.h.b16 %v1691
  %v2021 = vunpack.c.l.b16 %v1692
  %v2022 = vunpack.c.h.b16 %v1692
  %v2023 = vunpack.c.l.b16 %v1693
  %v2024 = vunpack.c.h.b16 %v1693
  %v2025 = vunpack.c.l.b16 %v1694
  %v2026 = vunpack.c.h.b16 %v1694
  %v2027 = vunpack.c.l.b16 %v1695
  %v2028 = vunpack.c.l.b16 %v1696
  %v2029 = vunpack.c.h.b16 %v1696
  %v2030 = vunpack.c.l.b16 %v1697
  %v2031 = vunpack.c.h.b16 %v1697
  %v2032 = vunpack.c.l.b16 %v1698
  %v2033 = vunpack.c.h.b16 %v1698
  %v2034 = vunpack.c.l.b16 %v1699
  %v2035 = vunpack.c.h.b16 %v1699
  %v2036 = vunpack.c.l.b16 %v1700
  %v2037 = vunpack.c.l.b16 %v1701
  %v2038 = vunpack.c.h.b16 %v1701
  %v2039 = vunpack.c.l.b16 %v1702
  %v2040 = vunpack.c.h.b16 %v1702
  %v2041 = vunpack.c.l.b16 %v1703
  %v2042 = vunpack.c.h.b16 %v1703
  %v2043 = vunpack.c.l.b16 %v1704
  %v2044 = vunpack.c.h.b16 %v1704
  %v2045 = vunpack.c.l.b16 %v1705
  %v2046 = vunpack.c.l.b16 %v1706
  %v2047 = vunpack.c.h.b16 %v1706
  %v2048 = vunpack.c.l.b16 %v1707
  %v2049 = vunpack.c.h.b16 %v1707
  %v2050 = vunpack.c.l.b16 %v1708
  %v2051 = vunpack.c.h.b16 %v1708
  %v2052 = vunpack.c.l.b16 %v1709
  %v2053 = vunpack.c.h.b16 %v1709
  %v2054 = vunpack.c.l.b16 %v1710
  %v2055 = vunpack.c.l.b16 %v1711
  %v2056 = vunpack.c.h.b16 %v1711
  %v2057 = vunpack.c.l.b16 %v1712
  %v2058 = vunpack.c.h.b16 %v1712
  %v2059 = vunpack.c.l.b16 %v1713
  %v2060 = vunpack.c.h.b16 %v1713
  %v2061 = vunpack.c.l.b16 %v1714
  %v2062 = vunpack.c.h.b16 %v1714
  %v2063 = vunpack.c.l.b16 %v1715
  %v2064 = vunpack.c.l.b16 %v1716
  %v2065 = vunpack.c.h.b16 %v1716
  %v2066 = vunpack.c.l.b16 %v1717
  %v2067 = vunpack.c.h.b16 %v1717
  %v2068 = vunpack.c.l.b16 %v1718
  %v2069 = vunpack.c.h.b16 %v1718
  %v2070 = vunpack.c.l.b16 %v1719
  %v2071 = vunpack.c.h.b16 %v1719
  %v2072 = vunpack.c.l.b16 %v1720
  %v2073 = vunpack.c.l.b16 %v1721
  %v2074 = vunpack.c.h.b16 %v1721
  %v2075 = vunpack.c.l.b16 %v1722
  %v2076 = vunpack.c.h.b16 %v1722
  %v2077 = vunpack.c.l.b16 %v1723
  %v2078 = vunpack.c.h.b16 %v1723
  %v2079 = vunpack.c.l.b16 %v1724
  %v2080 = vunpack.c.h.b16 %v1724
  %v2081 = vunpack.c.l.b16 %v1725
  %v2082 = vunpack.c.l.b16 %v1726
  %v2083 = vunpack.c.h.b16 %v1726
  %v2084 = vunpack.c.l.b16 %v1727
  %v2085 = vunpack.c.h.b16 %v1727
  %v2086 = vunpack.c.l.b16 %v1728
  %v2087 = vunpack.c.h.b16 %v1728
  %v2088 = vunpack.c.l.b16 %v1729
  %v2089 = vunpack.c.h.b16 %v1729
  %v2090 = vunpack.c.l.b16 %v1730
  %v2091 = vunpack.c.l.b16 %v1731
  %v2092 = vunpack.c.h.b16 %v1731
  %v2093 = vunpack.c.l.b16 %v1732
  %v2094 = vunpack.c.h.b16 %v1732
  %v2095 = vunpack.c.l.b16 %v1733
  %v2096 = vunpack.c.h.b16 %v1733
  %v2097 = vunpack.c.l.b16 %v1734
  %v2098 = vunpack.c.h.b16 %v1734
  %v2099 = vunpack.c.l.b16 %v1735
  %v2100 = vunpack.c.l.b16 %v1736
  %v2101 = vunpack.c.h.b16 %v1736
  %v2102 = vunpack.c.l.b16 %v1737
  %v2103 = vunpack.c.h.b16 %v1737
  %v2104 = vunpack.c.l.b16 %v1738
  %v2105 = vunpack.c.h.b16 %v1738
  %v2106 = vunpack.c.l.b16 %v1739
  %v2107 = vunpack.c.h.b16 %v1739
  %v2108 = vunpack.c.l.b16 %v1740
  %v2109 = vunpack.c.l.b16 %v1741
  %v2110 = vunpack.c.h.b16 %v1741
  %v2111 = vunpack.c.l.b16 %v1742
  %v2112 = vunpack.c.h.b16 %v1742
  %v2113 = vunpack.c.l.b16 %v1743
  %v2114 = vunpack.c.h.b16 %v1743
  %v2115 = vunpack.c.l.b16 %v1744
  %v2116 = vunpack.c.h.b16 %v1744
  %v2117 = vunpack.c.l.b16 %v1745
  %v2118 = vpack.c.b16 %v1983, %v1974
  %v2119 = vpack.c.b16 %v1984, %v1975
  %v2120 = vpack.c.b16 %v1985, %v1976
  %v2121 = vpack.c.b16 %v1986, %v1977
  %v2122 = vpack.c.b16 %v1987, %v1978
  %v2123 = vpack.c.b16 %v1988, %v1979
  %v2124 = vpack.c.b16 %v1989, %v1980
  %v2125 = vpack.c.b16 %v1990, %v1981
  %v2126 = vpack.c.b16 %v1991, %v1982
  %v2127 = vpack.c.b16 %v2001, %v1992
  %v2128 = vpack.c.b16 %v2002, %v1993
  %v2129 = vpack.c.b16 %v2003, %v1994
  %v2130 = vpack.c.b16 %v2004, %v1995
  %v2131 = vpack.c.b16 %v2005, %v1996
  %v2132 = vpack.c.b16 %v2006, %v1997
  %v2133 = vpack.c.b16 %v2007, %v1998
  %v2134 = vpack.c.b16 %v2008, %v1999
  %v2135 = vpack.c.b16 %v2009, %v2000
  %v2136 = vpack.c.b16 %v2019, %v2010
  %v2137 = vpack.c.b16 %v2020, %v2011
  %v2138 = vpack.c.b16 %v2021, %v2012
  %v2139 = vpack.c.b16 %v2022, %v2013
  %v2140 = vpack.c.b16 %v2023, %v2014
  %v2141 = vpack.c.b16 %v2024, %v2015
  %v2142 = vpack.c.b16 %v2025, %v2016
  %v2143 = vpack.c.b16 %v2026, %v2017
  %v2144 = vpack.c.b16 %v2027, %v2018
  %v2145 = vpack.c.b16 %v2037, %v2028
  %v2146 = vpack.c.b16 %v2038, %v2029
  %v2147 = vpack.c.b16 %v2039, %v2030
  %v2148 = vpack.c.b16 %v2040, %v2031
  %v2149 = vpack.c.b16 %v2041, %v2032
  %v2150 = vpack.c.b16 %v2042, %v2033
  %v2151 = vpack.c.b16 %v2043, %v2034
  %v2152 = vpack.c.b16 %v2044, %v2035
  %v2153 = vpack.c.b16 %v2045, %v2036
  %v2154 = vpack.c.b16 %v2055, %v2046
  %v2155 = vpack.c.b16 %v2056, %v2047
  %v2156 = vpack.c.b16 %v2057, %v2048
  %v2157 = vpack.c.b16 %v2058, %v2049
  %v2158 = vpack.c.b16 %v2059, %v2050
  %v2159 = vpack.c.b16 %v2060, %v2051
  %v2160 = vpack.c.b16 %v2061, %v2052
  %v2161 = vpack.c.b16 %v2062, %v2053
  %v2162 = vpack.c.b16 %v2063, %v2054
  %v2163 = vpack.c.b16 %v2073, %v2064
  %v2164 = vpack.c.b16 %v2074, %v2065
  %v2165 = vpack.c.b16 %v2075, %v2066
  %v2166 = vpack.c.b16 %v2076, %v2067
  %v2167 = vpack.c.b16 %v2077, %v2068
  %v2168 = vpack.c.b16 %v2078, %v2069
  %v2169 = vpack.c.b16 %v2079, %v2070
  %v2170 = vpack.c.b16 %v2080, %v2071
  %v2171 = vpack.c.b16 %v2081, %v2072
  %v2172 = vpack.c.b16 %v2091, %v2082
  %v2173 = vpack.c.b16 %v2092, %v2083
  %v2174 = vpack.c.b16 %v2093, %v2084
  %v2175 = vpack.c.b16 %v2094, %v2085
  %v2176 = vpack.c.b16 %v2095, %v2086
  %v2177 = vpack.c.b16 %v2096, %v2087
  %v2178 = vpack.c.b16 %v2097, %v2088
  %v2179 = vpack.c.b16 %v2098, %v2089
  %v2180 = vpack.c.b16 %v2099, %v2090
  %v2181 = vpack.c.b16 %v2109, %v2100
  %v2182 = vpack.c.b16 %v2110, %v2101
  %v2183 = vpack.c.b16 %v2111, %v2102
  %v2184 = vpack.c.b16 %v2112, %v2103
  %v2185 = vpack.c.b16 %v2113, %v2104
  %v2186 = vpack.c.b16 %v2114, %v2105
  %v2187 = vpack.c.b16 %v2115, %v2106
  %v2188 = vpack.c.b16 %v2116, %v2107
  %v2189 = vpack.c.b16 %v2117, %v2108
  %v2406 = vunpack.c.l.b16 %v1746
  %v2407 = vunpack.c.l.b16 %v1747
  %v2408 = vunpack.c.l.b16 %v1748
  %v2409 = vunpack.c.l.b16 %v1749
  %v2410 = vunpack.c.l.b16 %v1750
  %v2411 = vunpack.c.l.b16 %v1751
  %v2412 = vunpack.c.l.b16 %v1752
  %v2413 = vunpack.c.l.b16 %v1753
  %v2414 = vunpack.c.l.b16 %v1754
  %v2415 = vunpack.c.l.b16 %v1755
  %v2416 = vunpack.c.l.b16 %v1756
  %v2417 = vunpack.c.l.b16 %v1757
  %v2418 = vunpack.c.l.b16 %v1758
  %v2419 = vunpack.c.l.b16 %v1759
  %v2420 = vunpack.c.l.b16 %v1760
  %v2421 = vunpack.c.l.b16 %v1761
  %v2422 = vunpack.c.l.b16 %v1762
  %v2423 = vunpack.c.l.b16 %v1763
  %v2424 = vunpack.c.l.b16 %v1764
  %v2425 = vunpack.c.l.b16 %v1765
  %v2426 = vunpack.c.l.b16 %v1766
  %v2427 = vunpack.c.l.b16 %v1767
  %v2428 = vunpack.c.l.b16 %v1768
  %v2429 = vunpack.c.l.b16 %v1769
  %v2430 = vunpack.c.l.b16 %v1770
  %v2431 = vunpack.c.l.b16 %v1771
  %v2432 = vunpack.c.l.b16 %v1772
  %v2433 = vunpack.c.l.b16 %v1773
  %v2434 = vunpack.c.l.b16 %v1774
  %v2435 = vunpack.c.l.b16 %v1775
  %v2436 = vunpack.c.l.b16 %v1776
  %v2437 = vunpack.c.l.b16 %v1777
  %v2438 = vunpack.c.l.b16 %v1778
  %v2439 = vunpack.c.l.b16 %v1779
  %v2440 = vunpack.c.l.b16 %v1780
  %v2441 = vunpack.c.l.b16 %v1781
  %v2442 = vunpack.c.l.b16 %v1782
  %v2443 = vunpack.c.l.b16 %v1783
  %v2444 = vunpack.c.l.b16 %v1784
  %v2445 = vunpack.c.l.b16 %v1785
  %v2446 = vunpack.c.l.b16 %v1786
  %v2447 = vunpack.c.l.b16 %v1787
  %v2448 = vunpack.c.l.b16 %v1788
  %v2449 = vunpack.c.l.b16 %v1789
  %v2450 = vunpack.c.l.b16 %v1790
  %v2451 = vunpack.c.l.b16 %v1791
  %v2452 = vunpack.c.l.b16 %v1792
  %v2453 = vunpack.c.l.b16 %v1793
  %v2454 = vunpack.c.l.b16 %v1794
  %v2455 = vunpack.c.l.b16 %v1795
  %v2456 = vunpack.c.l.b16 %v1796
  %v2457 = vunpack.c.l.b16 %v1797
  %v2458 = vunpack.c.l.b16 %v1798
  %v2459 = vunpack.c.l.b16 %v1799
  %v2460 = vunpack.c.l.b16 %v1800
  %v2461 = vunpack.c.l.b16 %v1801
  %v2462 = vunpack.c.l.b16 %v1802
  %v2463 = vunpack.c.l.b16 %v1803
  %v2464 = vunpack.c.l.b16 %v1804
  %v2465 = vunpack.c.l.b16 %v1805
  %v2466 = vunpack.c.l.b16 %v1806
  %v2467 = vunpack.c.l.b16 %v1807
  %v2468 = vunpack.c.l.b16 %v1808
  %v2469 = vunpack.c.l.b16 %v1809
  %v2470 = vunpack.c.l.b16 %v1810
  %v2471 = vunpack.c.l.b16 %v1811
  %v2472 = vunpack.c.l.b16 %v1812
  %v2473 = vunpack.c.l.b16 %v1813
  %v2474 = vunpack.c.l.b16 %v1814
  %v2475 = vunpack.c.l.b16 %v1815
  %v2476 = vunpack.c.l.b16 %v1816
  %v2477 = vunpack.c.l.b16 %v1817
  %v2478 = vunpack.c.l.b16 %v1818
  %v2479 = vunpack.c.l.b16 %v1819
  %v2480 = vunpack.c.l.b16 %v1820
  %v2481 = vunpack.c.l.b16 %v1821
  %v2482 = vunpack.c.l.b16 %v1822
  %v2483 = vunpack.c.l.b16 %v1823
  %v2484 = vunpack.c.l.b16 %v1824
  %v2485 = vunpack.c.l.b16 %v1825
  %v2486 = vunpack.c.l.b16 %v1826
  %v2487 = vunpack.c.l.b16 %v1827
  %v2488 = vunpack.c.l.b16 %v1828
  %v2489 = vunpack.c.l.b16 %v1829
  %v2490 = vunpack.c.l.b16 %v1830
  %v2491 = vunpack.c.l.b16 %v1831
  %v2492 = vunpack.c.l.b16 %v1832
  %v2493 = vunpack.c.l.b16 %v1833
  %v2494 = vunpack.c.l.b16 %v1834
  %v2495 = vunpack.c.l.b16 %v1835
  %v2496 = vunpack.c.l.b16 %v1836
  %v2497 = vunpack.c.l.b16 %v1837
  %v2498 = vunpack.c.l.b16 %v1838
  %v2499 = vunpack.c.l.b16 %v1839
  %v2500 = vunpack.c.l.b16 %v1840
  %v2501 = vunpack.c.l.b16 %v1841
  %v2502 = vunpack.c.l.b16 %v1842
  %v2503 = vunpack.c.l.b16 %v1843
  %v2504 = vunpack.c.l.b16 %v1844
  %v2505 = vunpack.c.l.b16 %v1845
  %v2506 = vunpack.c.l.b16 %v1846
  %v2507 = vunpack.c.l.b16 %v1847
  %v2508 = vunpack.c.l.b16 %v1848
  %v2509 = vunpack.c.l.b16 %v1849
  %v2510 = vunpack.c.l.b16 %v1850
  %v2511 = vunpack.c.l.b16 %v1851
  %v2512 = vunpack.c.l.b16 %v1852
  %v2513 = vunpack.c.l.b16 %v1853
  %v2514 = vunpack.c.l.b16 %v1854
  %v2515 = vunpack.c.l.b16 %v1855
  %v2516 = vunpack.c.l.b16 %v1856
  %v2517 = vunpack.c.l.b16 %v1857
  %v2518 = vunpack.c.l.b16 %v1858
  %v2519 = vunpack.c.l.b16 %v1859
  %v2520 = vunpack.c.l.b16 %v1860
  %v2521 = vunpack.c.l.b16 %v1861
  %v2522 = vunpack.c.l.b16 %v1862
  %v2523 = vunpack.c.l.b16 %v1863
  %v2524 = vunpack.c.l.b16 %v1864
  %v2525 = vunpack.c.l.b16 %v1865
  %v2526 = vunpack.c.l.b16 %v1866
  %v2527 = vunpack.c.l.b16 %v1867
  %v2528 = vunpack.c.l.b16 %v1868
  %v2529 = vunpack.c.l.b16 %v1869
  %v2530 = vunpack.c.l.b16 %v1870
  %v2531 = vunpack.c.l.b16 %v1871
  %v2532 = vunpack.c.l.b16 %v1872
  %v2533 = vunpack.c.l.b16 %v1873
  %v2534 = vunpack.c.l.b16 %v1874
  %v2535 = vunpack.c.l.b16 %v1875
  %v2536 = vunpack.c.l.b16 %v1876
  %v2537 = vunpack.c.l.b16 %v1877
  %v2538 = vunpack.c.l.b16 %v1878
  %v2539 = vunpack.c.l.b16 %v1879
  %v2540 = vunpack.c.l.b16 %v1880
  %v2541 = vunpack.c.l.b16 %v1881
  %v2542 = vunpack.c.l.b16 %v1882
  %v2543 = vunpack.c.l.b16 %v1883
  %v2544 = vunpack.c.l.b16 %v1884
  %v2545 = vunpack.c.l.b16 %v1885
  %v2546 = vunpack.c.l.b16 %v1886
  %v2547 = vunpack.c.l.b16 %v1887
  %v2548 = vunpack.c.l.b16 %v1888
  %v2549 = vunpack.c.l.b16 %v1889
  %v2550 = vpack.c.b16 %v2407, %v2406
  %v2551 = vpack.c.b16 %v2409, %v2408
  %v2552 = vpack.c.b16 %v2411, %v2410
  %v2553 = vpack.c.b16 %v2413, %v2412
  %v2554 = vpack.c.b16 %v2415, %v2414
  %v2555 = vpack.c.b16 %v2417, %v2416
  %v2556 = vpack.c.b16 %v2419, %v2418
  %v2557 = vpack.c.b16 %v2421, %v2420
  %v2558 = vpack.c.b16 %v2423, %v2422
  %v2559 = vpack.c.b16 %v2425, %v2424
  %v2560 = vpack.c.b16 %v2427, %v2426
  %v2561 = vpack.c.b16 %v2429, %v2428
  %v2562 = vpack.c.b16 %v2431, %v2430
  %v2563 = vpack.c.b16 %v2433, %v2432
  %v2564 = vpack.c.b16 %v2435, %v2434
  %v2565 = vpack.c.b16 %v2437, %v2436
  %v2566 = vpack.c.b16 %v2439, %v2438
  %v2567 = vpack.c.b16 %v2441, %v2440
  %v2568 = vpack.c.b16 %v2443, %v2442
  %v2569 = vpack.c.b16 %v2445, %v2444
  %v2570 = vpack.c.b16 %v2447, %v2446
  %v2571 = vpack.c.b16 %v2449, %v2448
  %v2572 = vpack.c.b16 %v2451, %v2450
  %v2573 = vpack.c.b16 %v2453, %v2452
  %v2574 = vpack.c.b16 %v2455, %v2454
  %v2575 = vpack.c.b16 %v2457, %v2456
  %v2576 = vpack.c.b16 %v2459, %v2458
  %v2577 = vpack.c.b16 %v2461, %v2460
  %v2578 = vpack.c.b16 %v2463, %v2462
  %v2579 = vpack.c.b16 %v2465, %v2464
  %v2580 = vpack.c.b16 %v2467, %v2466
  %v2581 = vpack.c.b16 %v2469, %v2468
  %v2582 = vpack.c.b16 %v2471, %v2470
  %v2583 = vpack.c.b16 %v2473, %v2472
  %v2584 = vpack.c.b16 %v2475, %v2474
  %v2585 = vpack.c.b16 %v2477, %v2476
  %v2586 = vpack.c.b16 %v2479, %v2478
  %v2587 = vpack.c.b16 %v2481, %v2480
  %v2588 = vpack.c.b16 %v2483, %v2482
  %v2589 = vpack.c.b16 %v2485, %v2484
  %v2590 = vpack.c.b16 %v2487, %v2486
  %v2591 = vpack.c.b16 %v2489, %v2488
  %v2592 = vpack.c.b16 %v2491, %v2490
  %v2593 = vpack.c.b16 %v2493, %v2492
  %v2594 = vpack.c.b16 %v2495, %v2494
  %v2595 = vpack.c.b16 %v2497, %v2496
  %v2596 = vpack.c.b16 %v2499, %v2498
  %v2597 = vpack.c.b16 %v2501, %v2500
  %v2598 = vpack.c.b16 %v2503, %v2502
  %v2599 = vpack.c.b16 %v2505, %v2504
  %v2600 = vpack.c.b16 %v2507, %v2506
  %v2601 = vpack.c.b16 %v2509, %v2508
  %v2602 = vpack.c.b16 %v2511, %v2510
  %v2603 = vpack.c.b16 %v2513, %v2512
  %v2604 = vpack.c.b16 %v2515, %v2514
  %v2605 = vpack.c.b16 %v2517, %v2516
  %v2606 = vpack.c.b16 %v2519, %v2518
  %v2607 = vpack.c.b16 %v2521, %v2520
  %v2608 = vpack.c.b16 %v2523, %v2522
  %v2609 = vpack.c.b16 %v2525, %v2524
  %v2610 = vpack.c.b16 %v2527, %v2526
  %v2611 = vpack.c.b16 %v2529, %v2528
  %v2612 = vpack.c.b16 %v2531, %v2530
  %v2613 = vpack.c.b16 %v2533, %v2532
  %v2614 = vpack.c.b16 %v2535, %v2534
  %v2615 = vpack.c.b16 %v2537, %v2536
  %v2616 = vpack.c.b16 %v2539, %v2538
  %v2617 = vpack.c.b16 %v2541, %v2540
  %v2618 = vpack.c.b16 %v2543, %v2542
  %v2619 = vpack.c.b16 %v2545, %v2544
  %v2620 = vpack.c.b16 %v2547, %v2546
  %v2621 = vpack.c.b16 %v2549, %v2548
  %2694 = vmatpush.bf16.msra.mxu0 %v2557
  %2695 = vmatpush.bf16.msra.mxu0 %v2556
  %2696 = vmatpush.bf16.msra.mxu0 %v2555
  %2697 = vmatpush.bf16.msra.mxu0 %v2554
  %2698 = vmatpush.bf16.msra.mxu0 %v2553
  %2699 = vmatpush.bf16.msra.mxu0 %v2552
  %2700 = vmatpush.bf16.msra.mxu0 %v2551
  %2701 = vmatpush.bf16.msra.mxu0 %v2550
  %2702 = vmatmul.bf16.gmra.mxu0 %v2118
  %v2703 = vpop.f32.mrf.mxu0
  %v2704 = vadd.f32 %v1892, %v2703
  %v2705 = vpop.f32.mrf.mxu0
  %v2706 = vadd.f32 %v1892, %v2705
  %2707 = vmatmul.bf16.gmra.mxu0 %v2127
  %v2708 = vpop.f32.mrf.mxu0
  %v2709 = vadd.f32 %v1892, %v2708
  %v2710 = vpop.f32.mrf.mxu0
  %v2711 = vadd.f32 %v1892, %v2710
  %2712 = vmatmul.bf16.gmra.mxu0 %v2136
  %v2713 = vpop.f32.mrf.mxu0
  %v2714 = vadd.f32 %v1892, %v2713
  %v2715 = vpop.f32.mrf.mxu0
  %v2716 = vadd.f32 %v1892, %v2715
  %2717 = vmatmul.bf16.gmra.mxu0 %v2145
  %v2718 = vpop.f32.mrf.mxu0
  %v2719 = vadd.f32 %v1892, %v2718
  %v2720 = vpop.f32.mrf.mxu0
  %v2721 = vadd.f32 %v1892, %v2720
  %2722 = vmatmul.bf16.gmra.mxu0 %v2154
  %v2723 = vpop.f32.mrf.mxu0
  %v2724 = vadd.f32 %v1892, %v2723
  %v2725 = vpop.f32.mrf.mxu0
  %v2726 = vadd.f32 %v1892, %v2725
  %2727 = vmatmul.bf16.gmra.mxu0 %v2163
  %v2728 = vpop.f32.mrf.mxu0
  %v2729 = vadd.f32 %v1892, %v2728
  %v2730 = vpop.f32.mrf.mxu0
  %v2731 = vadd.f32 %v1892, %v2730
  %2732 = vmatmul.bf16.gmra.mxu0 %v2172
  %v2733 = vpop.f32.mrf.mxu0
  %v2734 = vadd.f32 %v1892, %v2733
  %v2735 = vpop.f32.mrf.mxu0
  %v2736 = vadd.f32 %v1892, %v2735
  %2737 = vmatmul.bf16.gmra.mxu0 %v2181
  %v2738 = vpop.f32.mrf.mxu0
  %v2739 = vadd.f32 %v1892, %v2738
  %v2740 = vpop.f32.mrf.mxu0
  %v2741 = vadd.f32 %v1892, %v2740
  %2742 = vdwg.mxu0
  %2743 = vmatpush.bf16.msra.mxu0 %v2565
  %2744 = vmatpush.bf16.msra.mxu0 %v2564
  %2745 = vmatpush.bf16.msra.mxu0 %v2563
  %2746 = vmatpush.bf16.msra.mxu0 %v2562
  %2747 = vmatpush.bf16.msra.mxu0 %v2561
  %2748 = vmatpush.bf16.msra.mxu0 %v2560
  %2749 = vmatpush.bf16.msra.mxu0 %v2559
  %2750 = vmatpush.bf16.msra.mxu0 %v2558
  %2751 = vmatmul.bf16.gmra.mxu0 %v2119
  %v2752 = vpop.f32.mrf.mxu0
  %v2753 = vadd.f32 %v2704, %v2752
  %v2754 = vpop.f32.mrf.mxu0
  %v2755 = vadd.f32 %v2706, %v2754
  %2756 = vmatmul.bf16.gmra.mxu0 %v2128
  %v2757 = vpop.f32.mrf.mxu0
  %v2758 = vadd.f32 %v2709, %v2757
  %v2759 = vpop.f32.mrf.mxu0
  %v2760 = vadd.f32 %v2711, %v2759
  %2761 = vmatmul.bf16.gmra.mxu0 %v2137
  %v2762 = vpop.f32.mrf.mxu0
  %v2763 = vadd.f32 %v2714, %v2762
  %v2764 = vpop.f32.mrf.mxu0
  %v2765 = vadd.f32 %v2716, %v2764
  %2766 = vmatmul.bf16.gmra.mxu0 %v2146
  %v2767 = vpop.f32.mrf.mxu0
  %v2768 = vadd.f32 %v2719, %v2767
  %v2769 = vpop.f32.mrf.mxu0
  %v2770 = vadd.f32 %v2721, %v2769
  %2771 = vmatmul.bf16.gmra.mxu0 %v2155
  %v2772 = vpop.f32.mrf.mxu0
  %v2773 = vadd.f32 %v2724, %v2772
  %v2774 = vpop.f32.mrf.mxu0
  %v2775 = vadd.f32 %v2726, %v2774
  %2776 = vmatmul.bf16.gmra.mxu0 %v2164
  %v2777 = vpop.f32.mrf.mxu0
  %v2778 = vadd.f32 %v2729, %v2777
  %v2779 = vpop.f32.mrf.mxu0
  %v2780 = vadd.f32 %v2731, %v2779
  %2781 = vmatmul.bf16.gmra.mxu0 %v2173
  %v2782 = vpop.f32.mrf.mxu0
  %v2783 = vadd.f32 %v2734, %v2782
  %v2784 = vpop.f32.mrf.mxu0
  %v2785 = vadd.f32 %v2736, %v2784
  %2786 = vmatmul.bf16.gmra.mxu0 %v2182
  %v2787 = vpop.f32.mrf.mxu0
  %v2788 = vadd.f32 %v2739, %v2787
  %v2789 = vpop.f32.mrf.mxu0
  %v2790 = vadd.f32 %v2741, %v2789
  %2791 = vdwg.mxu0
  %2792 = vmatpush.bf16.msra.mxu0 %v2573
  %2793 = vmatpush.bf16.msra.mxu0 %v2572
  %2794 = vmatpush.bf16.msra.mxu0 %v2571
  %2795 = vmatpush.bf16.msra.mxu0 %v2570
  %2796 = vmatpush.bf16.msra.mxu0 %v2569
  %2797 = vmatpush.bf16.msra.mxu0 %v2568
  %2798 = vmatpush.bf16.msra.mxu0 %v2567
  %2799 = vmatpush.bf16.msra.mxu0 %v2566
  %2800 = vmatmul.bf16.gmra.mxu0 %v2120
  %v2801 = vpop.f32.mrf.mxu0
  %v2802 = vadd.f32 %v2753, %v2801
  %v2803 = vpop.f32.mrf.mxu0
  %v2804 = vadd.f32 %v2755, %v2803
  %2805 = vmatmul.bf16.gmra.mxu0 %v2129
  %v2806 = vpop.f32.mrf.mxu0
  %v2807 = vadd.f32 %v2758, %v2806
  %v2808 = vpop.f32.mrf.mxu0
  %v2809 = vadd.f32 %v2760, %v2808
  %2810 = vmatmul.bf16.gmra.mxu0 %v2138
  %v2811 = vpop.f32.mrf.mxu0
  %v2812 = vadd.f32 %v2763, %v2811
  %v2813 = vpop.f32.mrf.mxu0
  %v2814 = vadd.f32 %v2765, %v2813
  %2815 = vmatmul.bf16.gmra.mxu0 %v2147
  %v2816 = vpop.f32.mrf.mxu0
  %v2817 = vadd.f32 %v2768, %v2816
  %v2818 = vpop.f32.mrf.mxu0
  %v2819 = vadd.f32 %v2770, %v2818
  %2820 = vmatmul.bf16.gmra.mxu0 %v2156
  %v2821 = vpop.f32.mrf.mxu0
  %v2822 = vadd.f32 %v2773, %v2821
  %v2823 = vpop.f32.mrf.mxu0
  %v2824 = vadd.f32 %v2775, %v2823
  %2825 = vmatmul.bf16.gmra.mxu0 %v2165
  %v2826 = vpop.f32.mrf.mxu0
  %v2827 = vadd.f32 %v2778, %v2826
  %v2828 = vpop.f32.mrf.mxu0
  %v2829 = vadd.f32 %v2780, %v2828
  %2830 = vmatmul.bf16.gmra.mxu0 %v2174
  %v2831 = vpop.f32.mrf.mxu0
  %v2832 = vadd.f32 %v2783, %v2831
  %v2833 = vpop.f32.mrf.mxu0
  %v2834 = vadd.f32 %v2785, %v2833
  %2835 = vmatmul.bf16.gmra.mxu0 %v2183
  %v2836 = vpop.f32.mrf.mxu0
  %v2837 = vadd.f32 %v2788, %v2836
  %v2838 = vpop.f32.mrf.mxu0
  %v2839 = vadd.f32 %v2790, %v2838
  %2840 = vdwg.mxu0
  %2841 = vmatpush.bf16.msra.mxu0 %v2581
  %2842 = vmatpush.bf16.msra.mxu0 %v2580
  %2843 = vmatpush.bf16.msra.mxu0 %v2579
  %2844 = vmatpush.bf16.msra.mxu0 %v2578
  %2845 = vmatpush.bf16.msra.mxu0 %v2577
  %2846 = vmatpush.bf16.msra.mxu0 %v2576
  %2847 = vmatpush.bf16.msra.mxu0 %v2575
  %2848 = vmatpush.bf16.msra.mxu0 %v2574
  %2849 = vmatmul.bf16.gmra.mxu0 %v2121
  %v2850 = vpop.f32.mrf.mxu0
  %v2851 = vadd.f32 %v2802, %v2850
  %v2852 = vpop.f32.mrf.mxu0
  %v2853 = vadd.f32 %v2804, %v2852
  %2854 = vmatmul.bf16.gmra.mxu0 %v2130
  %v2855 = vpop.f32.mrf.mxu0
  %v2856 = vadd.f32 %v2807, %v2855
  %v2857 = vpop.f32.mrf.mxu0
  %v2858 = vadd.f32 %v2809, %v2857
  %2859 = vmatmul.bf16.gmra.mxu0 %v2139
  %v2860 = vpop.f32.mrf.mxu0
  %v2861 = vadd.f32 %v2812, %v2860
  %v2862 = vpop.f32.mrf.mxu0
  %v2863 = vadd.f32 %v2814, %v2862
  %2864 = vmatmul.bf16.gmra.mxu0 %v2148
  %v2865 = vpop.f32.mrf.mxu0
  %v2866 = vadd.f32 %v2817, %v2865
  %v2867 = vpop.f32.mrf.mxu0
  %v2868 = vadd.f32 %v2819, %v2867
  %2869 = vmatmul.bf16.gmra.mxu0 %v2157
  %v2870 = vpop.f32.mrf.mxu0
  %v2871 = vadd.f32 %v2822, %v2870
  %v2872 = vpop.f32.mrf.mxu0
  %v2873 = vadd.f32 %v2824, %v2872
  %2874 = vmatmul.bf16.gmra.mxu0 %v2166
  %v2875 = vpop.f32.mrf.mxu0
  %v2876 = vadd.f32 %v2827, %v2875
  %v2877 = vpop.f32.mrf.mxu0
  %v2878 = vadd.f32 %v2829, %v2877
  %2879 = vmatmul.bf16.gmra.mxu0 %v2175
  %v2880 = vpop.f32.mrf.mxu0
  %v2881 = vadd.f32 %v2832, %v2880
  %v2882 = vpop.f32.mrf.mxu0
  %v2883 = vadd.f32 %v2834, %v2882
  %2884 = vmatmul.bf16.gmra.mxu0 %v2184
  %v2885 = vpop.f32.mrf.mxu0
  %v2886 = vadd.f32 %v2837, %v2885
  %v2887 = vpop.f32.mrf.mxu0
  %v2888 = vadd.f32 %v2839, %v2887
  %2889 = vdwg.mxu0
  %2890 = vmatpush.bf16.msra.mxu0 %v2589
  %2891 = vmatpush.bf16.msra.mxu0 %v2588
  %2892 = vmatpush.bf16.msra.mxu0 %v2587
  %2893 = vmatpush.bf16.msra.mxu0 %v2586
  %2894 = vmatpush.bf16.msra.mxu0 %v2585
  %2895 = vmatpush.bf16.msra.mxu0 %v2584
  %2896 = vmatpush.bf16.msra.mxu0 %v2583
  %2897 = vmatpush.bf16.msra.mxu0 %v2582
  %2898 = vmatmul.bf16.gmra.mxu0 %v2122
  %v2899 = vpop.f32.mrf.mxu0
  %v2900 = vadd.f32 %v2851, %v2899
  %v2901 = vpop.f32.mrf.mxu0
  %v2902 = vadd.f32 %v2853, %v2901
  %2903 = vmatmul.bf16.gmra.mxu0 %v2131
  %v2904 = vpop.f32.mrf.mxu0
  %v2905 = vadd.f32 %v2856, %v2904
  %v2906 = vpop.f32.mrf.mxu0
  %v2907 = vadd.f32 %v2858, %v2906
  %2908 = vmatmul.bf16.gmra.mxu0 %v2140
  %v2909 = vpop.f32.mrf.mxu0
  %v2910 = vadd.f32 %v2861, %v2909
  %v2911 = vpop.f32.mrf.mxu0
  %v2912 = vadd.f32 %v2863, %v2911
  %2913 = vmatmul.bf16.gmra.mxu0 %v2149
  %v2914 = vpop.f32.mrf.mxu0
  %v2915 = vadd.f32 %v2866, %v2914
  %v2916 = vpop.f32.mrf.mxu0
  %v2917 = vadd.f32 %v2868, %v2916
  %2918 = vmatmul.bf16.gmra.mxu0 %v2158
  %v2919 = vpop.f32.mrf.mxu0
  %v2920 = vadd.f32 %v2871, %v2919
  %v2921 = vpop.f32.mrf.mxu0
  %v2922 = vadd.f32 %v2873, %v2921
  %2923 = vmatmul.bf16.gmra.mxu0 %v2167
  %v2924 = vpop.f32.mrf.mxu0
  %v2925 = vadd.f32 %v2876, %v2924
  %v2926 = vpop.f32.mrf.mxu0
  %v2927 = vadd.f32 %v2878, %v2926
  %2928 = vmatmul.bf16.gmra.mxu0 %v2176
  %v2929 = vpop.f32.mrf.mxu0
  %v2930 = vadd.f32 %v2881, %v2929
  %v2931 = vpop.f32.mrf.mxu0
  %v2932 = vadd.f32 %v2883, %v2931
  %2933 = vmatmul.bf16.gmra.mxu0 %v2185
  %v2934 = vpop.f32.mrf.mxu0
  %v2935 = vadd.f32 %v2886, %v2934
  %v2936 = vpop.f32.mrf.mxu0
  %v2937 = vadd.f32 %v2888, %v2936
  %2938 = vdwg.mxu0
  %2939 = vmatpush.bf16.msra.mxu0 %v2597
  %2940 = vmatpush.bf16.msra.mxu0 %v2596
  %2941 = vmatpush.bf16.msra.mxu0 %v2595
  %2942 = vmatpush.bf16.msra.mxu0 %v2594
  %2943 = vmatpush.bf16.msra.mxu0 %v2593
  %2944 = vmatpush.bf16.msra.mxu0 %v2592
  %2945 = vmatpush.bf16.msra.mxu0 %v2591
  %2946 = vmatpush.bf16.msra.mxu0 %v2590
  %2947 = vmatmul.bf16.gmra.mxu0 %v2123
  %v2948 = vpop.f32.mrf.mxu0
  %v2949 = vadd.f32 %v2900, %v2948
  %v2950 = vpop.f32.mrf.mxu0
  %v2951 = vadd.f32 %v2902, %v2950
  %2952 = vmatmul.bf16.gmra.mxu0 %v2132
  %v2953 = vpop.f32.mrf.mxu0
  %v2954 = vadd.f32 %v2905, %v2953
  %v2955 = vpop.f32.mrf.mxu0
  %v2956 = vadd.f32 %v2907, %v2955
  %2957 = vmatmul.bf16.gmra.mxu0 %v2141
  %v2958 = vpop.f32.mrf.mxu0
  %v2959 = vadd.f32 %v2910, %v2958
  %v2960 = vpop.f32.mrf.mxu0
  %v2961 = vadd.f32 %v2912, %v2960
  %2962 = vmatmul.bf16.gmra.mxu0 %v2150
  %v2963 = vpop.f32.mrf.mxu0
  %v2964 = vadd.f32 %v2915, %v2963
  %v2965 = vpop.f32.mrf.mxu0
  %v2966 = vadd.f32 %v2917, %v2965
  %2967 = vmatmul.bf16.gmra.mxu0 %v2159
  %v2968 = vpop.f32.mrf.mxu0
  %v2969 = vadd.f32 %v2920, %v2968
  %v2970 = vpop.f32.mrf.mxu0
  %v2971 = vadd.f32 %v2922, %v2970
  %2972 = vmatmul.bf16.gmra.mxu0 %v2168
  %v2973 = vpop.f32.mrf.mxu0
  %v2974 = vadd.f32 %v2925, %v2973
  %v2975 = vpop.f32.mrf.mxu0
  %v2976 = vadd.f32 %v2927, %v2975
  %2977 = vmatmul.bf16.gmra.mxu0 %v2177
  %v2978 = vpop.f32.mrf.mxu0
  %v2979 = vadd.f32 %v2930, %v2978
  %v2980 = vpop.f32.mrf.mxu0
  %v2981 = vadd.f32 %v2932, %v2980
  %2982 = vmatmul.bf16.gmra.mxu0 %v2186
  %v2983 = vpop.f32.mrf.mxu0
  %v2984 = vadd.f32 %v2935, %v2983
  %v2985 = vpop.f32.mrf.mxu0
  %v2986 = vadd.f32 %v2937, %v2985
  %2987 = vdwg.mxu0
  %2988 = vmatpush.bf16.msra.mxu0 %v2605
  %2989 = vmatpush.bf16.msra.mxu0 %v2604
  %2990 = vmatpush.bf16.msra.mxu0 %v2603
  %2991 = vmatpush.bf16.msra.mxu0 %v2602
  %2992 = vmatpush.bf16.msra.mxu0 %v2601
  %2993 = vmatpush.bf16.msra.mxu0 %v2600
  %2994 = vmatpush.bf16.msra.mxu0 %v2599
  %2995 = vmatpush.bf16.msra.mxu0 %v2598
  %2996 = vmatmul.bf16.gmra.mxu0 %v2124
  %v2997 = vpop.f32.mrf.mxu0
  %v2998 = vadd.f32 %v2949, %v2997
  %v2999 = vpop.f32.mrf.mxu0
  %v3000 = vadd.f32 %v2951, %v2999
  %3001 = vmatmul.bf16.gmra.mxu0 %v2133
  %v3002 = vpop.f32.mrf.mxu0
  %v3003 = vadd.f32 %v2954, %v3002
  %v3004 = vpop.f32.mrf.mxu0
  %v3005 = vadd.f32 %v2956, %v3004
  %3006 = vmatmul.bf16.gmra.mxu0 %v2142
  %v3007 = vpop.f32.mrf.mxu0
  %v3008 = vadd.f32 %v2959, %v3007
  %v3009 = vpop.f32.mrf.mxu0
  %v3010 = vadd.f32 %v2961, %v3009
  %3011 = vmatmul.bf16.gmra.mxu0 %v2151
  %v3012 = vpop.f32.mrf.mxu0
  %v3013 = vadd.f32 %v2964, %v3012
  %v3014 = vpop.f32.mrf.mxu0
  %v3015 = vadd.f32 %v2966, %v3014
  %3016 = vmatmul.bf16.gmra.mxu0 %v2160
  %v3017 = vpop.f32.mrf.mxu0
  %v3018 = vadd.f32 %v2969, %v3017
  %v3019 = vpop.f32.mrf.mxu0
  %v3020 = vadd.f32 %v2971, %v3019
  %3021 = vmatmul.bf16.gmra.mxu0 %v2169
  %v3022 = vpop.f32.mrf.mxu0
  %v3023 = vadd.f32 %v2974, %v3022
  %v3024 = vpop.f32.mrf.mxu0
  %v3025 = vadd.f32 %v2976, %v3024
  %3026 = vmatmul.bf16.gmra.mxu0 %v2178
  %v3027 = vpop.f32.mrf.mxu0
  %v3028 = vadd.f32 %v2979, %v3027
  %v3029 = vpop.f32.mrf.mxu0
  %v3030 = vadd.f32 %v2981, %v3029
  %3031 = vmatmul.bf16.gmra.mxu0 %v2187
  %v3032 = vpop.f32.mrf.mxu0
  %v3033 = vadd.f32 %v2984, %v3032
  %v3034 = vpop.f32.mrf.mxu0
  %v3035 = vadd.f32 %v2986, %v3034
  %3036 = vdwg.mxu0
  %3037 = vmatpush.bf16.msra.mxu0 %v2613
  %3038 = vmatpush.bf16.msra.mxu0 %v2612
  %3039 = vmatpush.bf16.msra.mxu0 %v2611
  %3040 = vmatpush.bf16.msra.mxu0 %v2610
  %3041 = vmatpush.bf16.msra.mxu0 %v2609
  %3042 = vmatpush.bf16.msra.mxu0 %v2608
  %3043 = vmatpush.bf16.msra.mxu0 %v2607
  %3044 = vmatpush.bf16.msra.mxu0 %v2606
  %3045 = vmatmul.bf16.gmra.mxu0 %v2125
  %v3046 = vpop.f32.mrf.mxu0
  %v3047 = vadd.f32 %v2998, %v3046
  %v3048 = vpop.f32.mrf.mxu0
  %v3049 = vadd.f32 %v3000, %v3048
  %3050 = vmatmul.bf16.gmra.mxu0 %v2134
  %v3051 = vpop.f32.mrf.mxu0
  %v3052 = vadd.f32 %v3003, %v3051
  %v3053 = vpop.f32.mrf.mxu0
  %v3054 = vadd.f32 %v3005, %v3053
  %3055 = vmatmul.bf16.gmra.mxu0 %v2143
  %v3056 = vpop.f32.mrf.mxu0
  %v3057 = vadd.f32 %v3008, %v3056
  %v3058 = vpop.f32.mrf.mxu0
  %v3059 = vadd.f32 %v3010, %v3058
  %3060 = vmatmul.bf16.gmra.mxu0 %v2152
  %v3061 = vpop.f32.mrf.mxu0
  %v3062 = vadd.f32 %v3013, %v3061
  %v3063 = vpop.f32.mrf.mxu0
  %v3064 = vadd.f32 %v3015, %v3063
  %3065 = vmatmul.bf16.gmra.mxu0 %v2161
  %v3066 = vpop.f32.mrf.mxu0
  %v3067 = vadd.f32 %v3018, %v3066
  %v3068 = vpop.f32.mrf.mxu0
  %v3069 = vadd.f32 %v3020, %v3068
  %3070 = vmatmul.bf16.gmra.mxu0 %v2170
  %v3071 = vpop.f32.mrf.mxu0
  %v3072 = vadd.f32 %v3023, %v3071
  %v3073 = vpop.f32.mrf.mxu0
  %v3074 = vadd.f32 %v3025, %v3073
  %3075 = vmatmul.bf16.gmra.mxu0 %v2179
  %v3076 = vpop.f32.mrf.mxu0
  %v3077 = vadd.f32 %v3028, %v3076
  %v3078 = vpop.f32.mrf.mxu0
  %v3079 = vadd.f32 %v3030, %v3078
  %3080 = vmatmul.bf16.gmra.mxu0 %v2188
  %v3081 = vpop.f32.mrf.mxu0
  %v3082 = vadd.f32 %v3033, %v3081
  %v3083 = vpop.f32.mrf.mxu0
  %v3084 = vadd.f32 %v3035, %v3083
  %3085 = vdwg.mxu0
  %3086 = vmatpush.bf16.msra.mxu0 %v2621
  %3087 = vmatpush.bf16.msra.mxu0 %v2620
  %3088 = vmatpush.bf16.msra.mxu0 %v2619
  %3089 = vmatpush.bf16.msra.mxu0 %v2618
  %3090 = vmatpush.bf16.msra.mxu0 %v2617
  %3091 = vmatpush.bf16.msra.mxu0 %v2616
  %3092 = vmatpush.bf16.msra.mxu0 %v2615
  %3093 = vmatpush.bf16.msra.mxu0 %v2614
  %3094 = vmatmul.bf16.gmra.mxu0 %v2126
  %v3095 = vpop.f32.mrf.mxu0
  %v3096 = vadd.f32 %v3047, %v3095
  %v3097 = vpop.f32.mrf.mxu0
  %v3098 = vadd.f32 %v3049, %v3097
  %3099 = vmatmul.bf16.gmra.mxu0 %v2135
  %v3100 = vpop.f32.mrf.mxu0
  %v3101 = vadd.f32 %v3052, %v3100
  %v3102 = vpop.f32.mrf.mxu0
  %v3103 = vadd.f32 %v3054, %v3102
  %3104 = vmatmul.bf16.gmra.mxu0 %v2144
  %v3105 = vpop.f32.mrf.mxu0
  %v3106 = vadd.f32 %v3057, %v3105
  %v3107 = vpop.f32.mrf.mxu0
  %v3108 = vadd.f32 %v3059, %v3107
  %3109 = vmatmul.bf16.gmra.mxu0 %v2153
  %v3110 = vpop.f32.mrf.mxu0
  %v3111 = vadd.f32 %v3062, %v3110
  %v3112 = vpop.f32.mrf.mxu0
  %v3113 = vadd.f32 %v3064, %v3112
  %3114 = vmatmul.bf16.gmra.mxu0 %v2162
  %v3115 = vpop.f32.mrf.mxu0
  %v3116 = vadd.f32 %v3067, %v3115
  %v3117 = vpop.f32.mrf.mxu0
  %v3118 = vadd.f32 %v3069, %v3117
  %3119 = vmatmul.bf16.gmra.mxu0 %v2171
  %v3120 = vpop.f32.mrf.mxu0
  %v3121 = vadd.f32 %v3072, %v3120
  %v3122 = vpop.f32.mrf.mxu0
  %v3123 = vadd.f32 %v3074, %v3122
  %3124 = vmatmul.bf16.gmra.mxu0 %v2180
  %v3125 = vpop.f32.mrf.mxu0
  %v3126 = vadd.f32 %v3077, %v3125
  %v3127 = vpop.f32.mrf.mxu0
  %v3128 = vadd.f32 %v3079, %v3127
  %3129 = vmatmul.bf16.gmra.mxu0 %v2189
  %v3130 = vpop.f32.mrf.mxu0
  %v3131 = vadd.f32 %v3082, %v3130
  %v3132 = vpop.f32.mrf.mxu0
  %v3133 = vadd.f32 %v3084, %v3132
  %3134 = vdwg.mxu0
  %v3135 = vmax.f32 %v3096, 0.0
  %v3136 = vmax.f32 %v3098, 0.0
  %v3137 = vmax.f32 %v3101, 0.0
  %v3138 = vmax.f32 %v3103, 0.0
  %v3139 = vmax.f32 %v3106, 0.0
  %v3140 = vmax.f32 %v3108, 0.0
  %v3141 = vmax.f32 %v3111, 0.0
  %v3142 = vmax.f32 %v3113, 0.0
  %v3143 = vmax.f32 %v3116, 0.0
  %v3144 = vmax.f32 %v3118, 0.0
  %v3145 = vmax.f32 %v3121, 0.0
  %v3146 = vmax.f32 %v3123, 0.0
  %v3147 = vmax.f32 %v3126, 0.0
  %v3148 = vmax.f32 %v3128, 0.0
  %v3149 = vmax.f32 %v3131, 0.0
  %v3150 = vmax.f32 %v3133, 0.0
  %v3151 = vpack.c.bf16 %v3136, %v3135
  %v3152 = vpack.c.bf16 %v3138, %v3137
  %v3153 = vpack.c.bf16 %v3140, %v3139
  %v3154 = vpack.c.bf16 %v3142, %v3141
  %v3155 = vpack.c.bf16 %v3144, %v3143
  %v3156 = vpack.c.bf16 %v3146, %v3145
  %v3157 = vpack.c.bf16 %v3148, %v3147
  %v3158 = vpack.c.bf16 %v3150, %v3149
  %v3159 = vld [vmem:[%s5] sm:$0xff]
  %v3160 = vld [vmem:[%s5 + $0x8] sm:$0xff]
  %v3161 = vld [vmem:[%s5 + $0x10] sm:$0xf]
  %v3162 = vld [vmem:[%s5 + $0x14] sm:$0xff]
  %v3163 = vld [vmem:[%s5 + $0x1c] sm:$0xff]
  %v3164 = vld [vmem:[%s5 + $0x24] sm:$0xf]
  %v3165 = vld [vmem:[%s5 + $0x28] sm:$0xff]
  %v3166 = vld [vmem:[%s5 + $0x30] sm:$0xff]
  %v3167 = vld [vmem:[%s5 + $0x38] sm:$0xf]
  %v3168 = vld [vmem:[%s5 + $0x3c] sm:$0xff]
  %v3169 = vld [vmem:[%s5 + $0x44] sm:$0xff]
  %v3170 = vld [vmem:[%s5 + $0x4c] sm:$0xf]
  %v3171 = vld [vmem:[%s5 + $0x50] sm:$0xff]
  %v3172 = vld [vmem:[%s5 + $0x58] sm:$0xff]
  %v3173 = vld [vmem:[%s5 + $0x60] sm:$0xf]
  %v3174 = vld [vmem:[%s5 + $0x64] sm:$0xff]
  %v3175 = vld [vmem:[%s5 + $0x6c] sm:$0xff]
  %v3176 = vld [vmem:[%s5 + $0x74] sm:$0xf]
  %v3177 = vld [vmem:[%s5 + $0x78] sm:$0xff]
  %v3178 = vld [vmem:[%s5 + $0x80] sm:$0xff]
  %v3179 = vld [vmem:[%s5 + $0x88] sm:$0xf]
  %v3180 = vld [vmem:[%s5 + $0x8c] sm:$0xff]
  %v3181 = vld [vmem:[%s5 + $0x94] sm:$0xff]
  %v3182 = vld [vmem:[%s5 + $0x9c] sm:$0xf]
  %v3183 = vld [vmem:[%s5 + $0xa0] sm:$0xff]
  %v3184 = vld [vmem:[%s5 + $0xa8] sm:$0xff]
  %v3185 = vld [vmem:[%s5 + $0xb0] sm:$0xf]
  %v3186 = vld [vmem:[%s5 + $0xb4] sm:$0xff]
  %v3187 = vld [vmem:[%s5 + $0xbc] sm:$0xff]
  %v3188 = vld [vmem:[%s5 + $0xc4] sm:$0xf]
  %v3189 = vld [vmem:[%s5 + $0xc8] sm:$0xff]
  %v3190 = vld [vmem:[%s5 + $0xd0] sm:$0xff]
  %v3191 = vld [vmem:[%s5 + $0xd8] sm:$0xf]
  %v3192 = vld [vmem:[%s5 + $0xdc] sm:$0xff]
  %v3193 = vld [vmem:[%s5 + $0xe4] sm:$0xff]
  %v3194 = vld [vmem:[%s5 + $0xec] sm:$0xf]
  %v3195 = vld [vmem:[%s5 + $0xf0] sm:$0xff]
  %v3196 = vld [vmem:[%s5 + $0xf8] sm:$0xff]
  %v3197 = vld [vmem:[%s5 + $0x100] sm:$0xf]
  %v3198 = vld [vmem:[%s5 + $0x104] sm:$0xff]
  %v3199 = vld [vmem:[%s5 + $0x10c] sm:$0xff]
  %v3200 = vld [vmem:[%s5 + $0x114] sm:$0xf]
  %v3201 = vld [vmem:[%s5 + $0x118] sm:$0xff]
  %v3202 = vld [vmem:[%s5 + $0x120] sm:$0xff]
  %v3203 = vld [vmem:[%s5 + $0x128] sm:$0xf]
  %v3204 = vld [vmem:[%s5 + $0x12c] sm:$0xff]
  %v3205 = vld [vmem:[%s5 + $0x134] sm:$0xff]
  %v3206 = vld [vmem:[%s5 + $0x13c] sm:$0xf]
  %v3255 = vunpack.c.l.b16 %v3159
  %v3256 = vunpack.c.h.b16 %v3159
  %v3257 = vunpack.c.l.b16 %v3160
  %v3258 = vunpack.c.h.b16 %v3160
  %v3259 = vunpack.c.l.b16 %v3161
  %v3260 = vunpack.c.l.b16 %v3162
  %v3261 = vunpack.c.h.b16 %v3162
  %v3262 = vunpack.c.l.b16 %v3163
  %v3263 = vunpack.c.h.b16 %v3163
  %v3264 = vunpack.c.l.b16 %v3164
  %v3265 = vunpack.c.l.b16 %v3165
  %v3266 = vunpack.c.h.b16 %v3165
  %v3267 = vunpack.c.l.b16 %v3166
  %v3268 = vunpack.c.h.b16 %v3166
  %v3269 = vunpack.c.l.b16 %v3167
  %v3270 = vunpack.c.l.b16 %v3168
  %v3271 = vunpack.c.h.b16 %v3168
  %v3272 = vunpack.c.l.b16 %v3169
  %v3273 = vunpack.c.h.b16 %v3169
  %v3274 = vunpack.c.l.b16 %v3170
  %v3275 = vunpack.c.l.b16 %v3171
  %v3276 = vunpack.c.h.b16 %v3171
  %v3277 = vunpack.c.l.b16 %v3172
  %v3278 = vunpack.c.h.b16 %v3172
  %v3279 = vunpack.c.l.b16 %v3173
  %v3280 = vunpack.c.l.b16 %v3174
  %v3281 = vunpack.c.h.b16 %v3174
  %v3282 = vunpack.c.l.b16 %v3175
  %v3283 = vunpack.c.h.b16 %v3175
  %v3284 = vunpack.c.l.b16 %v3176
  %v3285 = vunpack.c.l.b16 %v3177
  %v3286 = vunpack.c.h.b16 %v3177
  %v3287 = vunpack.c.l.b16 %v3178
  %v3288 = vunpack.c.h.b16 %v3178
  %v3289 = vunpack.c.l.b16 %v3179
  %v3290 = vunpack.c.l.b16 %v3180
  %v3291 = vunpack.c.h.b16 %v3180
  %v3292 = vunpack.c.l.b16 %v3181
  %v3293 = vunpack.c.h.b16 %v3181
  %v3294 = vunpack.c.l.b16 %v3182
  %v3295 = vunpack.c.l.b16 %v3183
  %v3296 = vunpack.c.h.b16 %v3183
  %v3297 = vunpack.c.l.b16 %v3184
  %v3298 = vunpack.c.h.b16 %v3184
  %v3299 = vunpack.c.l.b16 %v3185
  %v3300 = vunpack.c.l.b16 %v3186
  %v3301 = vunpack.c.h.b16 %v3186
  %v3302 = vunpack.c.l.b16 %v3187
  %v3303 = vunpack.c.h.b16 %v3187
  %v3304 = vunpack.c.l.b16 %v3188
  %v3305 = vunpack.c.l.b16 %v3189
  %v3306 = vunpack.c.h.b16 %v3189
  %v3307 = vunpack.c.l.b16 %v3190
  %v3308 = vunpack.c.h.b16 %v3190
  %v3309 = vunpack.c.l.b16 %v3191
  %v3310 = vunpack.c.l.b16 %v3192
  %v3311 = vunpack.c.h.b16 %v3192
  %v3312 = vunpack.c.l.b16 %v3193
  %v3313 = vunpack.c.h.b16 %v3193
  %v3314 = vunpack.c.l.b16 %v3194
  %v3315 = vunpack.c.l.b16 %v3195
  %v3316 = vunpack.c.h.b16 %v3195
  %v3317 = vunpack.c.l.b16 %v3196
  %v3318 = vunpack.c.h.b16 %v3196
  %v3319 = vunpack.c.l.b16 %v3197
  %v3320 = vunpack.c.l.b16 %v3198
  %v3321 = vunpack.c.h.b16 %v3198
  %v3322 = vunpack.c.l.b16 %v3199
  %v3323 = vunpack.c.h.b16 %v3199
  %v3324 = vunpack.c.l.b16 %v3200
  %v3325 = vunpack.c.l.b16 %v3201
  %v3326 = vunpack.c.h.b16 %v3201
  %v3327 = vunpack.c.l.b16 %v3202
  %v3328 = vunpack.c.h.b16 %v3202
  %v3329 = vunpack.c.l.b16 %v3203
  %v3330 = vunpack.c.l.b16 %v3204
  %v3331 = vunpack.c.h.b16 %v3204
  %v3332 = vunpack.c.l.b16 %v3205
  %v3333 = vunpack.c.h.b16 %v3205
  %v3334 = vunpack.c.l.b16 %v3206
  %v3335 = vpack.c.b16 %v3260, %v3255
  %v3336 = vpack.c.b16 %v3261, %v3256
  %v3337 = vpack.c.b16 %v3262, %v3257
  %v3338 = vpack.c.b16 %v3263, %v3258
  %v3339 = vpack.c.b16 %v3264, %v3259
  %v3340 = vpack.c.b16 %v3270, %v3265
  %v3341 = vpack.c.b16 %v3271, %v3266
  %v3342 = vpack.c.b16 %v3272, %v3267
  %v3343 = vpack.c.b16 %v3273, %v3268
  %v3344 = vpack.c.b16 %v3274, %v3269
  %v3345 = vpack.c.b16 %v3280, %v3275
  %v3346 = vpack.c.b16 %v3281, %v3276
  %v3347 = vpack.c.b16 %v3282, %v3277
  %v3348 = vpack.c.b16 %v3283, %v3278
  %v3349 = vpack.c.b16 %v3284, %v3279
  %v3350 = vpack.c.b16 %v3290, %v3285
  %v3351 = vpack.c.b16 %v3291, %v3286
  %v3352 = vpack.c.b16 %v3292, %v3287
  %v3353 = vpack.c.b16 %v3293, %v3288
  %v3354 = vpack.c.b16 %v3294, %v3289
  %v3355 = vpack.c.b16 %v3300, %v3295
  %v3356 = vpack.c.b16 %v3301, %v3296
  %v3357 = vpack.c.b16 %v3302, %v3297
  %v3358 = vpack.c.b16 %v3303, %v3298
  %v3359 = vpack.c.b16 %v3304, %v3299
  %v3360 = vpack.c.b16 %v3310, %v3305
  %v3361 = vpack.c.b16 %v3311, %v3306
  %v3362 = vpack.c.b16 %v3312, %v3307
  %v3363 = vpack.c.b16 %v3313, %v3308
  %v3364 = vpack.c.b16 %v3314, %v3309
  %v3365 = vpack.c.b16 %v3320, %v3315
  %v3366 = vpack.c.b16 %v3321, %v3316
  %v3367 = vpack.c.b16 %v3322, %v3317
  %v3368 = vpack.c.b16 %v3323, %v3318
  %v3369 = vpack.c.b16 %v3324, %v3319
  %v3370 = vpack.c.b16 %v3330, %v3325
  %v3371 = vpack.c.b16 %v3331, %v3326
  %v3372 = vpack.c.b16 %v3332, %v3327
  %v3373 = vpack.c.b16 %v3333, %v3328
  %v3374 = vpack.c.b16 %v3334, %v3329
  %3415 = vmatpush.bf16.msra.mxu0 %v3370
  %3416 = vmatpush.bf16.msra.mxu0 %v3365
  %3417 = vmatpush.bf16.msra.mxu0 %v3360
  %3418 = vmatpush.bf16.msra.mxu0 %v3355
  %3419 = vmatpush.bf16.msra.mxu0 %v3350
  %3420 = vmatpush.bf16.msra.mxu0 %v3345
  %3421 = vmatpush.bf16.msra.mxu0 %v3340
  %3422 = vmatpush.bf16.msra.mxu0 %v3335
  %3423 = vmatmul.bf16.gmra.mxu0 %v3151
  %v3424 = vpop.f32.mrf.mxu0
  %v3425 = vadd.f32 0.0, %v3424
  %v3426 = vpop.f32.mrf.mxu0
  %v3427 = vadd.f32 0.0, %v3426
  %3428 = vmatmul.bf16.gmra.mxu0 %v3152
  %v3429 = vpop.f32.mrf.mxu0
  %v3430 = vadd.f32 0.0, %v3429
  %v3431 = vpop.f32.mrf.mxu0
  %v3432 = vadd.f32 0.0, %v3431
  %3433 = vmatmul.bf16.gmra.mxu0 %v3153
  %v3434 = vpop.f32.mrf.mxu0
  %v3435 = vadd.f32 0.0, %v3434
  %v3436 = vpop.f32.mrf.mxu0
  %v3437 = vadd.f32 0.0, %v3436
  %3438 = vmatmul.bf16.gmra.mxu0 %v3154
  %v3439 = vpop.f32.mrf.mxu0
  %v3440 = vadd.f32 0.0, %v3439
  %v3441 = vpop.f32.mrf.mxu0
  %v3442 = vadd.f32 0.0, %v3441
  %3443 = vmatmul.bf16.gmra.mxu0 %v3155
  %v3444 = vpop.f32.mrf.mxu0
  %v3445 = vadd.f32 0.0, %v3444
  %v3446 = vpop.f32.mrf.mxu0
  %v3447 = vadd.f32 0.0, %v3446
  %3448 = vmatmul.bf16.gmra.mxu0 %v3156
  %v3449 = vpop.f32.mrf.mxu0
  %v3450 = vadd.f32 0.0, %v3449
  %v3451 = vpop.f32.mrf.mxu0
  %v3452 = vadd.f32 0.0, %v3451
  %3453 = vmatmul.bf16.gmra.mxu0 %v3157
  %v3454 = vpop.f32.mrf.mxu0
  %v3455 = vadd.f32 0.0, %v3454
  %v3456 = vpop.f32.mrf.mxu0
  %v3457 = vadd.f32 0.0, %v3456
  %3458 = vmatmul.bf16.gmra.mxu0 %v3158
  %v3459 = vpop.f32.mrf.mxu0
  %v3460 = vadd.f32 0.0, %v3459
  %v3461 = vpop.f32.mrf.mxu0
  %v3462 = vadd.f32 0.0, %v3461
  %3463 = vdwg.mxu0
  %3464 = vmatpush.bf16.msra.mxu0 %v3371
  %3465 = vmatpush.bf16.msra.mxu0 %v3366
  %3466 = vmatpush.bf16.msra.mxu0 %v3361
  %3467 = vmatpush.bf16.msra.mxu0 %v3356
  %3468 = vmatpush.bf16.msra.mxu0 %v3351
  %3469 = vmatpush.bf16.msra.mxu0 %v3346
  %3470 = vmatpush.bf16.msra.mxu0 %v3341
  %3471 = vmatpush.bf16.msra.mxu0 %v3336
  %3472 = vmatmul.bf16.gmra.mxu0 %v3151
  %v3473 = vpop.f32.mrf.mxu0
  %v3474 = vadd.f32 0.0, %v3473
  %v3475 = vpop.f32.mrf.mxu0
  %v3476 = vadd.f32 0.0, %v3475
  %3477 = vmatmul.bf16.gmra.mxu0 %v3152
  %v3478 = vpop.f32.mrf.mxu0
  %v3479 = vadd.f32 0.0, %v3478
  %v3480 = vpop.f32.mrf.mxu0
  %v3481 = vadd.f32 0.0, %v3480
  %3482 = vmatmul.bf16.gmra.mxu0 %v3153
  %v3483 = vpop.f32.mrf.mxu0
  %v3484 = vadd.f32 0.0, %v3483
  %v3485 = vpop.f32.mrf.mxu0
  %v3486 = vadd.f32 0.0, %v3485
  %3487 = vmatmul.bf16.gmra.mxu0 %v3154
  %v3488 = vpop.f32.mrf.mxu0
  %v3489 = vadd.f32 0.0, %v3488
  %v3490 = vpop.f32.mrf.mxu0
  %v3491 = vadd.f32 0.0, %v3490
  %3492 = vmatmul.bf16.gmra.mxu0 %v3155
  %v3493 = vpop.f32.mrf.mxu0
  %v3494 = vadd.f32 0.0, %v3493
  %v3495 = vpop.f32.mrf.mxu0
  %v3496 = vadd.f32 0.0, %v3495
  %3497 = vmatmul.bf16.gmra.mxu0 %v3156
  %v3498 = vpop.f32.mrf.mxu0
  %v3499 = vadd.f32 0.0, %v3498
  %v3500 = vpop.f32.mrf.mxu0
  %v3501 = vadd.f32 0.0, %v3500
  %3502 = vmatmul.bf16.gmra.mxu0 %v3157
  %v3503 = vpop.f32.mrf.mxu0
  %v3504 = vadd.f32 0.0, %v3503
  %v3505 = vpop.f32.mrf.mxu0
  %v3506 = vadd.f32 0.0, %v3505
  %3507 = vmatmul.bf16.gmra.mxu0 %v3158
  %v3508 = vpop.f32.mrf.mxu0
  %v3509 = vadd.f32 0.0, %v3508
  %v3510 = vpop.f32.mrf.mxu0
  %v3511 = vadd.f32 0.0, %v3510
  %3512 = vdwg.mxu0
  %3513 = vmatpush.bf16.msra.mxu0 %v3372
  %3514 = vmatpush.bf16.msra.mxu0 %v3367
  %3515 = vmatpush.bf16.msra.mxu0 %v3362
  %3516 = vmatpush.bf16.msra.mxu0 %v3357
  %3517 = vmatpush.bf16.msra.mxu0 %v3352
  %3518 = vmatpush.bf16.msra.mxu0 %v3347
  %3519 = vmatpush.bf16.msra.mxu0 %v3342
  %3520 = vmatpush.bf16.msra.mxu0 %v3337
  %3521 = vmatmul.bf16.gmra.mxu0 %v3151
  %v3522 = vpop.f32.mrf.mxu0
  %v3523 = vadd.f32 0.0, %v3522
  %v3524 = vpop.f32.mrf.mxu0
  %v3525 = vadd.f32 0.0, %v3524
  %3526 = vmatmul.bf16.gmra.mxu0 %v3152
  %v3527 = vpop.f32.mrf.mxu0
  %v3528 = vadd.f32 0.0, %v3527
  %v3529 = vpop.f32.mrf.mxu0
  %v3530 = vadd.f32 0.0, %v3529
  %3531 = vmatmul.bf16.gmra.mxu0 %v3153
  %v3532 = vpop.f32.mrf.mxu0
  %v3533 = vadd.f32 0.0, %v3532
  %v3534 = vpop.f32.mrf.mxu0
  %v3535 = vadd.f32 0.0, %v3534
  %3536 = vmatmul.bf16.gmra.mxu0 %v3154
  %v3537 = vpop.f32.mrf.mxu0
  %v3538 = vadd.f32 0.0, %v3537
  %v3539 = vpop.f32.mrf.mxu0
  %v3540 = vadd.f32 0.0, %v3539
  %3541 = vmatmul.bf16.gmra.mxu0 %v3155
  %v3542 = vpop.f32.mrf.mxu0
  %v3543 = vadd.f32 0.0, %v3542
  %v3544 = vpop.f32.mrf.mxu0
  %v3545 = vadd.f32 0.0, %v3544
  %3546 = vmatmul.bf16.gmra.mxu0 %v3156
  %v3547 = vpop.f32.mrf.mxu0
  %v3548 = vadd.f32 0.0, %v3547
  %v3549 = vpop.f32.mrf.mxu0
  %v3550 = vadd.f32 0.0, %v3549
  %3551 = vmatmul.bf16.gmra.mxu0 %v3157
  %v3552 = vpop.f32.mrf.mxu0
  %v3553 = vadd.f32 0.0, %v3552
  %v3554 = vpop.f32.mrf.mxu0
  %v3555 = vadd.f32 0.0, %v3554
  %3556 = vmatmul.bf16.gmra.mxu0 %v3158
  %v3557 = vpop.f32.mrf.mxu0
  %v3558 = vadd.f32 0.0, %v3557
  %v3559 = vpop.f32.mrf.mxu0
  %v3560 = vadd.f32 0.0, %v3559
  %3561 = vdwg.mxu0
  %3562 = vmatpush.bf16.msra.mxu0 %v3373
  %3563 = vmatpush.bf16.msra.mxu0 %v3368
  %3564 = vmatpush.bf16.msra.mxu0 %v3363
  %3565 = vmatpush.bf16.msra.mxu0 %v3358
  %3566 = vmatpush.bf16.msra.mxu0 %v3353
  %3567 = vmatpush.bf16.msra.mxu0 %v3348
  %3568 = vmatpush.bf16.msra.mxu0 %v3343
  %3569 = vmatpush.bf16.msra.mxu0 %v3338
  %3570 = vmatmul.bf16.gmra.mxu0 %v3151
  %v3571 = vpop.f32.mrf.mxu0
  %v3572 = vadd.f32 0.0, %v3571
  %v3573 = vpop.f32.mrf.mxu0
  %v3574 = vadd.f32 0.0, %v3573
  %3575 = vmatmul.bf16.gmra.mxu0 %v3152
  %v3576 = vpop.f32.mrf.mxu0
  %v3577 = vadd.f32 0.0, %v3576
  %v3578 = vpop.f32.mrf.mxu0
  %v3579 = vadd.f32 0.0, %v3578
  %3580 = vmatmul.bf16.gmra.mxu0 %v3153
  %v3581 = vpop.f32.mrf.mxu0
  %v3582 = vadd.f32 0.0, %v3581
  %v3583 = vpop.f32.mrf.mxu0
  %v3584 = vadd.f32 0.0, %v3583
  %3585 = vmatmul.bf16.gmra.mxu0 %v3154
  %v3586 = vpop.f32.mrf.mxu0
  %v3587 = vadd.f32 0.0, %v3586
  %v3588 = vpop.f32.mrf.mxu0
  %v3589 = vadd.f32 0.0, %v3588
  %3590 = vmatmul.bf16.gmra.mxu0 %v3155
  %v3591 = vpop.f32.mrf.mxu0
  %v3592 = vadd.f32 0.0, %v3591
  %v3593 = vpop.f32.mrf.mxu0
  %v3594 = vadd.f32 0.0, %v3593
  %3595 = vmatmul.bf16.gmra.mxu0 %v3156
  %v3596 = vpop.f32.mrf.mxu0
  %v3597 = vadd.f32 0.0, %v3596
  %v3598 = vpop.f32.mrf.mxu0
  %v3599 = vadd.f32 0.0, %v3598
  %3600 = vmatmul.bf16.gmra.mxu0 %v3157
  %v3601 = vpop.f32.mrf.mxu0
  %v3602 = vadd.f32 0.0, %v3601
  %v3603 = vpop.f32.mrf.mxu0
  %v3604 = vadd.f32 0.0, %v3603
  %3605 = vmatmul.bf16.gmra.mxu0 %v3158
  %v3606 = vpop.f32.mrf.mxu0
  %v3607 = vadd.f32 0.0, %v3606
  %v3608 = vpop.f32.mrf.mxu0
  %v3609 = vadd.f32 0.0, %v3608
  %3610 = vdwg.mxu0
  %3611 = vmatpush.bf16.msra.mxu0 %v3374
  %3612 = vmatpush.bf16.msra.mxu0 %v3369
  %3613 = vmatpush.bf16.msra.mxu0 %v3364
  %3614 = vmatpush.bf16.msra.mxu0 %v3359
  %3615 = vmatpush.bf16.msra.mxu0 %v3354
  %3616 = vmatpush.bf16.msra.mxu0 %v3349
  %3617 = vmatpush.bf16.msra.mxu0 %v3344
  %3618 = vmatpush.bf16.msra.mxu0 %v3339
  %3619 = vmatmul.bf16.gmra.mxu0 %v3151
  %v3620 = vpop.f32.mrf.mxu0
  %v3621 = vadd.f32 0.0, %v3620
  %v3622 = vpop.f32.mrf.mxu0
  %v3623 = vadd.f32 0.0, %v3622
  %3624 = vmatmul.bf16.gmra.mxu0 %v3152
  %v3625 = vpop.f32.mrf.mxu0
  %v3626 = vadd.f32 0.0, %v3625
  %v3627 = vpop.f32.mrf.mxu0
  %v3628 = vadd.f32 0.0, %v3627
  %3629 = vmatmul.bf16.gmra.mxu0 %v3153
  %v3630 = vpop.f32.mrf.mxu0
  %v3631 = vadd.f32 0.0, %v3630
  %v3632 = vpop.f32.mrf.mxu0
  %v3633 = vadd.f32 0.0, %v3632
  %3634 = vmatmul.bf16.gmra.mxu0 %v3154
  %v3635 = vpop.f32.mrf.mxu0
  %v3636 = vadd.f32 0.0, %v3635
  %v3637 = vpop.f32.mrf.mxu0
  %v3638 = vadd.f32 0.0, %v3637
  %3639 = vmatmul.bf16.gmra.mxu0 %v3155
  %v3640 = vpop.f32.mrf.mxu0
  %v3641 = vadd.f32 0.0, %v3640
  %v3642 = vpop.f32.mrf.mxu0
  %v3643 = vadd.f32 0.0, %v3642
  %3644 = vmatmul.bf16.gmra.mxu0 %v3156
  %v3645 = vpop.f32.mrf.mxu0
  %v3646 = vadd.f32 0.0, %v3645
  %v3647 = vpop.f32.mrf.mxu0
  %v3648 = vadd.f32 0.0, %v3647
  %3649 = vmatmul.bf16.gmra.mxu0 %v3157
  %v3650 = vpop.f32.mrf.mxu0
  %v3651 = vadd.f32 0.0, %v3650
  %v3652 = vpop.f32.mrf.mxu0
  %v3653 = vadd.f32 0.0, %v3652
  %3654 = vmatmul.bf16.gmra.mxu0 %v3158
  %v3655 = vpop.f32.mrf.mxu0
  %v3656 = vadd.f32 0.0, %v3655
  %v3657 = vpop.f32.mrf.mxu0
  %v3658 = vadd.f32 0.0, %v3657
  %3659 = vdwg.mxu0
  %v3660 = vpack.c.bf16 %v3474, %v3425
  %v3661 = vpack.c.bf16 %v3572, %v3523
  %v3662 = vpack.c.bf16 %v3621, %v3621
  %v3663 = vpack.c.bf16 %v3476, %v3427
  %v3664 = vpack.c.bf16 %v3574, %v3525
  %v3665 = vpack.c.bf16 %v3623, %v3623
  %v3666 = vpack.c.bf16 %v3479, %v3430
  %v3667 = vpack.c.bf16 %v3577, %v3528
  %v3668 = vpack.c.bf16 %v3626, %v3626
  %v3669 = vpack.c.bf16 %v3481, %v3432
  %v3670 = vpack.c.bf16 %v3579, %v3530
  %v3671 = vpack.c.bf16 %v3628, %v3628
  %v3672 = vpack.c.bf16 %v3484, %v3435
  %v3673 = vpack.c.bf16 %v3582, %v3533
  %v3674 = vpack.c.bf16 %v3631, %v3631
  %v3675 = vpack.c.bf16 %v3486, %v3437
  %v3676 = vpack.c.bf16 %v3584, %v3535
  %v3677 = vpack.c.bf16 %v3633, %v3633
  %v3678 = vpack.c.bf16 %v3489, %v3440
  %v3679 = vpack.c.bf16 %v3587, %v3538
  %v3680 = vpack.c.bf16 %v3636, %v3636
  %v3681 = vpack.c.bf16 %v3491, %v3442
  %v3682 = vpack.c.bf16 %v3589, %v3540
  %v3683 = vpack.c.bf16 %v3638, %v3638
  %v3684 = vpack.c.bf16 %v3494, %v3445
  %v3685 = vpack.c.bf16 %v3592, %v3543
  %v3686 = vpack.c.bf16 %v3641, %v3641
  %v3687 = vpack.c.bf16 %v3496, %v3447
  %v3688 = vpack.c.bf16 %v3594, %v3545
  %v3689 = vpack.c.bf16 %v3643, %v3643
  %v3690 = vpack.c.bf16 %v3499, %v3450
  %v3691 = vpack.c.bf16 %v3597, %v3548
  %v3692 = vpack.c.bf16 %v3646, %v3646
  %v3693 = vpack.c.bf16 %v3501, %v3452
  %v3694 = vpack.c.bf16 %v3599, %v3550
  %v3695 = vpack.c.bf16 %v3648, %v3648
  %v3696 = vpack.c.bf16 %v3504, %v3455
  %v3697 = vpack.c.bf16 %v3602, %v3553
  %v3698 = vpack.c.bf16 %v3651, %v3651
  %v3699 = vpack.c.bf16 %v3506, %v3457
  %v3700 = vpack.c.bf16 %v3604, %v3555
  %v3701 = vpack.c.bf16 %v3653, %v3653
  %v3702 = vpack.c.bf16 %v3509, %v3460
  %v3703 = vpack.c.bf16 %v3607, %v3558
  %v3704 = vpack.c.bf16 %v3656, %v3656
  %v3705 = vpack.c.bf16 %v3511, %v3462
  %v3706 = vpack.c.bf16 %v3609, %v3560
  %v3707 = vpack.c.bf16 %v3658, %v3658
  %v3708 = vld [vmem:[%s6] sm:$0xff]
  %v3709 = vld [vmem:[%s6 + $0x8] sm:$0xff]
  %v3710 = vld [vmem:[%s6 + $0x10] sm:$0xf]
  %v3711 = vld [vmem:[%s6 + $0x14] sm:$0xff]
  %v3712 = vld [vmem:[%s6 + $0x1c] sm:$0xff]
  %v3713 = vld [vmem:[%s6 + $0x24] sm:$0xf]
  %v3714 = vld [vmem:[%s6 + $0x28] sm:$0xff]
  %v3715 = vld [vmem:[%s6 + $0x30] sm:$0xff]
  %v3716 = vld [vmem:[%s6 + $0x38] sm:$0xf]
  %v3717 = vld [vmem:[%s6 + $0x3c] sm:$0xff]
  %v3718 = vld [vmem:[%s6 + $0x44] sm:$0xff]
  %v3719 = vld [vmem:[%s6 + $0x4c] sm:$0xf]
  %v3720 = vld [vmem:[%s6 + $0x50] sm:$0xff]
  %v3721 = vld [vmem:[%s6 + $0x58] sm:$0xff]
  %v3722 = vld [vmem:[%s6 + $0x60] sm:$0xf]
  %v3723 = vld [vmem:[%s6 + $0x64] sm:$0xff]
  %v3724 = vld [vmem:[%s6 + $0x6c] sm:$0xff]
  %v3725 = vld [vmem:[%s6 + $0x74] sm:$0xf]
  %v3726 = vld [vmem:[%s6 + $0x78] sm:$0xff]
  %v3727 = vld [vmem:[%s6 + $0x80] sm:$0xff]
  %v3728 = vld [vmem:[%s6 + $0x88] sm:$0xf]
  %v3729 = vld [vmem:[%s6 + $0x8c] sm:$0xff]
  %v3730 = vld [vmem:[%s6 + $0x94] sm:$0xff]
  %v3731 = vld [vmem:[%s6 + $0x9c] sm:$0xf]
  %v3732 = vld [vmem:[%s6 + $0xa0] sm:$0xff]
  %v3733 = vld [vmem:[%s6 + $0xa8] sm:$0xff]
  %v3734 = vld [vmem:[%s6 + $0xb0] sm:$0xf]
  %v3735 = vld [vmem:[%s6 + $0xb4] sm:$0xff]
  %v3736 = vld [vmem:[%s6 + $0xbc] sm:$0xff]
  %v3737 = vld [vmem:[%s6 + $0xc4] sm:$0xf]
  %v3738 = vld [vmem:[%s6 + $0xc8] sm:$0xff]
  %v3739 = vld [vmem:[%s6 + $0xd0] sm:$0xff]
  %v3740 = vld [vmem:[%s6 + $0xd8] sm:$0xf]
  %v3741 = vld [vmem:[%s6 + $0xdc] sm:$0xff]
  %v3742 = vld [vmem:[%s6 + $0xe4] sm:$0xff]
  %v3743 = vld [vmem:[%s6 + $0xec] sm:$0xf]
  %v3744 = vld [vmem:[%s6 + $0xf0] sm:$0xff]
  %v3745 = vld [vmem:[%s6 + $0xf8] sm:$0xff]
  %v3746 = vld [vmem:[%s6 + $0x100] sm:$0xf]
  %v3747 = vld [vmem:[%s6 + $0x104] sm:$0xff]
  %v3748 = vld [vmem:[%s6 + $0x10c] sm:$0xff]
  %v3749 = vld [vmem:[%s6 + $0x114] sm:$0xf]
  %v3750 = vld [vmem:[%s6 + $0x118] sm:$0xff]
  %v3751 = vld [vmem:[%s6 + $0x120] sm:$0xff]
  %v3752 = vld [vmem:[%s6 + $0x128] sm:$0xf]
  %v3753 = vld [vmem:[%s6 + $0x12c] sm:$0xff]
  %v3754 = vld [vmem:[%s6 + $0x134] sm:$0xff]
  %v3755 = vld [vmem:[%s6 + $0x13c] sm:$0xf]
  %v3756 = vunpack.c.l.bf16 %v3660
  %v3757 = vunpack.c.h.bf16 %v3660
  %v3758 = vunpack.c.l.bf16 %v3661
  %v3759 = vunpack.c.h.bf16 %v3661
  %v3760 = vunpack.c.l.bf16 %v3662
  %v3761 = vunpack.c.l.bf16 %v3663
  %v3762 = vunpack.c.h.bf16 %v3663
  %v3763 = vunpack.c.l.bf16 %v3664
  %v3764 = vunpack.c.h.bf16 %v3664
  %v3765 = vunpack.c.l.bf16 %v3665
  %v3766 = vunpack.c.l.bf16 %v3666
  %v3767 = vunpack.c.h.bf16 %v3666
  %v3768 = vunpack.c.l.bf16 %v3667
  %v3769 = vunpack.c.h.bf16 %v3667
  %v3770 = vunpack.c.l.bf16 %v3668
  %v3771 = vunpack.c.l.bf16 %v3669
  %v3772 = vunpack.c.h.bf16 %v3669
  %v3773 = vunpack.c.l.bf16 %v3670
  %v3774 = vunpack.c.h.bf16 %v3670
  %v3775 = vunpack.c.l.bf16 %v3671
  %v3776 = vunpack.c.l.bf16 %v3672
  %v3777 = vunpack.c.h.bf16 %v3672
  %v3778 = vunpack.c.l.bf16 %v3673
  %v3779 = vunpack.c.h.bf16 %v3673
  %v3780 = vunpack.c.l.bf16 %v3674
  %v3781 = vunpack.c.l.bf16 %v3675
  %v3782 = vunpack.c.h.bf16 %v3675
  %v3783 = vunpack.c.l.bf16 %v3676
  %v3784 = vunpack.c.h.bf16 %v3676
  %v3785 = vunpack.c.l.bf16 %v3677
  %v3786 = vunpack.c.l.bf16 %v3678
  %v3787 = vunpack.c.h.bf16 %v3678
  %v3788 = vunpack.c.l.bf16 %v3679
  %v3789 = vunpack.c.h.bf16 %v3679
  %v3790 = vunpack.c.l.bf16 %v3680
  %v3791 = vunpack.c.l.bf16 %v3681
  %v3792 = vunpack.c.h.bf16 %v3681
  %v3793 = vunpack.c.l.bf16 %v3682
  %v3794 = vunpack.c.h.bf16 %v3682
  %v3795 = vunpack.c.l.bf16 %v3683
  %v3796 = vunpack.c.l.bf16 %v3684
  %v3797 = vunpack.c.h.bf16 %v3684
  %v3798 = vunpack.c.l.bf16 %v3685
  %v3799 = vunpack.c.h.bf16 %v3685
  %v3800 = vunpack.c.l.bf16 %v3686
  %v3801 = vunpack.c.l.bf16 %v3687
  %v3802 = vunpack.c.h.bf16 %v3687
  %v3803 = vunpack.c.l.bf16 %v3688
  %v3804 = vunpack.c.h.bf16 %v3688
  %v3805 = vunpack.c.l.bf16 %v3689
  %v3806 = vunpack.c.l.bf16 %v3690
  %v3807 = vunpack.c.h.bf16 %v3690
  %v3808 = vunpack.c.l.bf16 %v3691
  %v3809 = vunpack.c.h.bf16 %v3691
  %v3810 = vunpack.c.l.bf16 %v3692
  %v3811 = vunpack.c.l.bf16 %v3693
  %v3812 = vunpack.c.h.bf16 %v3693
  %v3813 = vunpack.c.l.bf16 %v3694
  %v3814 = vunpack.c.h.bf16 %v3694
  %v3815 = vunpack.c.l.bf16 %v3695
  %v3816 = vunpack.c.l.bf16 %v3696
  %v3817 = vunpack.c.h.bf16 %v3696
  %v3818 = vunpack.c.l.bf16 %v3697
  %v3819 = vunpack.c.h.bf16 %v3697
  %v3820 = vunpack.c.l.bf16 %v3698
  %v3821 = vunpack.c.l.bf16 %v3699
  %v3822 = vunpack.c.h.bf16 %v3699
  %v3823 = vunpack.c.l.bf16 %v3700
  %v3824 = vunpack.c.h.bf16 %v3700
  %v3825 = vunpack.c.l.bf16 %v3701
  %v3826 = vunpack.c.l.bf16 %v3702
  %v3827 = vunpack.c.h.bf16 %v3702
  %v3828 = vunpack.c.l.bf16 %v3703
  %v3829 = vunpack.c.h.bf16 %v3703
  %v3830 = vunpack.c.l.bf16 %v3704
  %v3831 = vunpack.c.l.bf16 %v3705
  %v3832 = vunpack.c.h.bf16 %v3705
  %v3833 = vunpack.c.l.bf16 %v3706
  %v3834 = vunpack.c.h.bf16 %v3706
  %v3835 = vunpack.c.l.bf16 %v3707
  %v3836 = vunpack.c.l.bf16 %v3708
  %v3837 = vunpack.c.h.bf16 %v3708
  %v3838 = vunpack.c.l.bf16 %v3709
  %v3839 = vunpack.c.h.bf16 %v3709
  %v3840 = vunpack.c.l.bf16 %v3710
  %v3841 = vunpack.c.l.bf16 %v3711
  %v3842 = vunpack.c.h.bf16 %v3711
  %v3843 = vunpack.c.l.bf16 %v3712
  %v3844 = vunpack.c.h.bf16 %v3712
  %v3845 = vunpack.c.l.bf16 %v3713
  %v3846 = vunpack.c.l.bf16 %v3714
  %v3847 = vunpack.c.h.bf16 %v3714
  %v3848 = vunpack.c.l.bf16 %v3715
  %v3849 = vunpack.c.h.bf16 %v3715
  %v3850 = vunpack.c.l.bf16 %v3716
  %v3851 = vunpack.c.l.bf16 %v3717
  %v3852 = vunpack.c.h.bf16 %v3717
  %v3853 = vunpack.c.l.bf16 %v3718
  %v3854 = vunpack.c.h.bf16 %v3718
  %v3855 = vunpack.c.l.bf16 %v3719
  %v3856 = vunpack.c.l.bf16 %v3720
  %v3857 = vunpack.c.h.bf16 %v3720
  %v3858 = vunpack.c.l.bf16 %v3721
  %v3859 = vunpack.c.h.bf16 %v3721
  %v3860 = vunpack.c.l.bf16 %v3722
  %v3861 = vunpack.c.l.bf16 %v3723
  %v3862 = vunpack.c.h.bf16 %v3723
  %v3863 = vunpack.c.l.bf16 %v3724
  %v3864 = vunpack.c.h.bf16 %v3724
  %v3865 = vunpack.c.l.bf16 %v3725
  %v3866 = vunpack.c.l.bf16 %v3726
  %v3867 = vunpack.c.h.bf16 %v3726
  %v3868 = vunpack.c.l.bf16 %v3727
  %v3869 = vunpack.c.h.bf16 %v3727
  %v3870 = vunpack.c.l.bf16 %v3728
  %v3871 = vunpack.c.l.bf16 %v3729
  %v3872 = vunpack.c.h.bf16 %v3729
  %v3873 = vunpack.c.l.bf16 %v3730
  %v3874 = vunpack.c.h.bf16 %v3730
  %v3875 = vunpack.c.l.bf16 %v3731
  %v3876 = vunpack.c.l.bf16 %v3732
  %v3877 = vunpack.c.h.bf16 %v3732
  %v3878 = vunpack.c.l.bf16 %v3733
  %v3879 = vunpack.c.h.bf16 %v3733
  %v3880 = vunpack.c.l.bf16 %v3734
  %v3881 = vunpack.c.l.bf16 %v3735
  %v3882 = vunpack.c.h.bf16 %v3735
  %v3883 = vunpack.c.l.bf16 %v3736
  %v3884 = vunpack.c.h.bf16 %v3736
  %v3885 = vunpack.c.l.bf16 %v3737
  %v3886 = vunpack.c.l.bf16 %v3738
  %v3887 = vunpack.c.h.bf16 %v3738
  %v3888 = vunpack.c.l.bf16 %v3739
  %v3889 = vunpack.c.h.bf16 %v3739
  %v3890 = vunpack.c.l.bf16 %v3740
  %v3891 = vunpack.c.l.bf16 %v3741
  %v3892 = vunpack.c.h.bf16 %v3741
  %v3893 = vunpack.c.l.bf16 %v3742
  %v3894 = vunpack.c.h.bf16 %v3742
  %v3895 = vunpack.c.l.bf16 %v3743
  %v3896 = vunpack.c.l.bf16 %v3744
  %v3897 = vunpack.c.h.bf16 %v3744
  %v3898 = vunpack.c.l.bf16 %v3745
  %v3899 = vunpack.c.h.bf16 %v3745
  %v3900 = vunpack.c.l.bf16 %v3746
  %v3901 = vunpack.c.l.bf16 %v3747
  %v3902 = vunpack.c.h.bf16 %v3747
  %v3903 = vunpack.c.l.bf16 %v3748
  %v3904 = vunpack.c.h.bf16 %v3748
  %v3905 = vunpack.c.l.bf16 %v3749
  %v3906 = vunpack.c.l.bf16 %v3750
  %v3907 = vunpack.c.h.bf16 %v3750
  %v3908 = vunpack.c.l.bf16 %v3751
  %v3909 = vunpack.c.h.bf16 %v3751
  %v3910 = vunpack.c.l.bf16 %v3752
  %v3911 = vunpack.c.l.bf16 %v3753
  %v3912 = vunpack.c.h.bf16 %v3753
  %v3913 = vunpack.c.l.bf16 %v3754
  %v3914 = vunpack.c.h.bf16 %v3754
  %v3915 = vunpack.c.l.bf16 %v3755
  %v3916 = vmul.f32 %v3756, %v3836
  %v3917 = vmul.f32 %v3757, %v3837
  %v3918 = vmul.f32 %v3758, %v3838
  %v3919 = vmul.f32 %v3759, %v3839
  %v3920 = vmul.f32 %v3760, %v3840
  %v3921 = vmul.f32 %v3761, %v3841
  %v3922 = vmul.f32 %v3762, %v3842
  %v3923 = vmul.f32 %v3763, %v3843
  %v3924 = vmul.f32 %v3764, %v3844
  %v3925 = vmul.f32 %v3765, %v3845
  %v3926 = vmul.f32 %v3766, %v3846
  %v3927 = vmul.f32 %v3767, %v3847
  %v3928 = vmul.f32 %v3768, %v3848
  %v3929 = vmul.f32 %v3769, %v3849
  %v3930 = vmul.f32 %v3770, %v3850
  %v3931 = vmul.f32 %v3771, %v3851
  %v3932 = vmul.f32 %v3772, %v3852
  %v3933 = vmul.f32 %v3773, %v3853
  %v3934 = vmul.f32 %v3774, %v3854
  %v3935 = vmul.f32 %v3775, %v3855
  %v3936 = vmul.f32 %v3776, %v3856
  %v3937 = vmul.f32 %v3777, %v3857
  %v3938 = vmul.f32 %v3778, %v3858
  %v3939 = vmul.f32 %v3779, %v3859
  %v3940 = vmul.f32 %v3780, %v3860
  %v3941 = vmul.f32 %v3781, %v3861
  %v3942 = vmul.f32 %v3782, %v3862
  %v3943 = vmul.f32 %v3783, %v3863
  %v3944 = vmul.f32 %v3784, %v3864
  %v3945 = vmul.f32 %v3785, %v3865
  %v3946 = vmul.f32 %v3786, %v3866
  %v3947 = vmul.f32 %v3787, %v3867
  %v3948 = vmul.f32 %v3788, %v3868
  %v3949 = vmul.f32 %v3789, %v3869
  %v3950 = vmul.f32 %v3790, %v3870
  %v3951 = vmul.f32 %v3791, %v3871
  %v3952 = vmul.f32 %v3792, %v3872
  %v3953 = vmul.f32 %v3793, %v3873
  %v3954 = vmul.f32 %v3794, %v3874
  %v3955 = vmul.f32 %v3795, %v3875
  %v3956 = vmul.f32 %v3796, %v3876
  %v3957 = vmul.f32 %v3797, %v3877
  %v3958 = vmul.f32 %v3798, %v3878
  %v3959 = vmul.f32 %v3799, %v3879
  %v3960 = vmul.f32 %v3800, %v3880
  %v3961 = vmul.f32 %v3801, %v3881
  %v3962 = vmul.f32 %v3802, %v3882
  %v3963 = vmul.f32 %v3803, %v3883
  %v3964 = vmul.f32 %v3804, %v3884
  %v3965 = vmul.f32 %v3805, %v3885
  %v3966 = vmul.f32 %v3806, %v3886
  %v3967 = vmul.f32 %v3807, %v3887
  %v3968 = vmul.f32 %v3808, %v3888
  %v3969 = vmul.f32 %v3809, %v3889
  %v3970 = vmul.f32 %v3810, %v3890
  %v3971 = vmul.f32 %v3811, %v3891
  %v3972 = vmul.f32 %v3812, %v3892
  %v3973 = vmul.f32 %v3813, %v3893
  %v3974 = vmul.f32 %v3814, %v3894
  %v3975 = vmul.f32 %v3815, %v3895
  %v3976 = vmul.f32 %v3816, %v3896
  %v3977 = vmul.f32 %v3817, %v3897
  %v3978 = vmul.f32 %v3818, %v3898
  %v3979 = vmul.f32 %v3819, %v3899
  %v3980 = vmul.f32 %v3820, %v3900
  %v3981 = vmul.f32 %v3821, %v3901
  %v3982 = vmul.f32 %v3822, %v3902
  %v3983 = vmul.f32 %v3823, %v3903
  %v3984 = vmul.f32 %v3824, %v3904
  %v3985 = vmul.f32 %v3825, %v3905
  %v3986 = vmul.f32 %v3826, %v3906
  %v3987 = vmul.f32 %v3827, %v3907
  %v3988 = vmul.f32 %v3828, %v3908
  %v3989 = vmul.f32 %v3829, %v3909
  %v3990 = vmul.f32 %v3830, %v3910
  %v3991 = vmul.f32 %v3831, %v3911
  %v3992 = vmul.f32 %v3832, %v3912
  %v3993 = vmul.f32 %v3833, %v3913
  %v3994 = vmul.f32 %v3834, %v3914
  %v3995 = vmul.f32 %v3835, %v3915
  %v3996 = vpack.c.bf16 %v3921, %v3916
  %v3997 = vpack.c.bf16 %v3922, %v3917
  %v3998 = vpack.c.bf16 %v3923, %v3918
  %v3999 = vpack.c.bf16 %v3924, %v3919
  %v4000 = vpack.c.bf16 %v3925, %v3920
  %v4001 = vpack.c.bf16 %v3931, %v3926
  %v4002 = vpack.c.bf16 %v3932, %v3927
  %v4003 = vpack.c.bf16 %v3933, %v3928
  %v4004 = vpack.c.bf16 %v3934, %v3929
  %v4005 = vpack.c.bf16 %v3935, %v3930
  %v4006 = vpack.c.bf16 %v3941, %v3936
  %v4007 = vpack.c.bf16 %v3942, %v3937
  %v4008 = vpack.c.bf16 %v3943, %v3938
  %v4009 = vpack.c.bf16 %v3944, %v3939
  %v4010 = vpack.c.bf16 %v3945, %v3940
  %v4011 = vpack.c.bf16 %v3951, %v3946
  %v4012 = vpack.c.bf16 %v3952, %v3947
  %v4013 = vpack.c.bf16 %v3953, %v3948
  %v4014 = vpack.c.bf16 %v3954, %v3949
  %v4015 = vpack.c.bf16 %v3955, %v3950
  %v4016 = vpack.c.bf16 %v3961, %v3956
  %v4017 = vpack.c.bf16 %v3962, %v3957
  %v4018 = vpack.c.bf16 %v3963, %v3958
  %v4019 = vpack.c.bf16 %v3964, %v3959
  %v4020 = vpack.c.bf16 %v3965, %v3960
  %v4021 = vpack.c.bf16 %v3971, %v3966
  %v4022 = vpack.c.bf16 %v3972, %v3967
  %v4023 = vpack.c.bf16 %v3973, %v3968
  %v4024 = vpack.c.bf16 %v3974, %v3969
  %v4025 = vpack.c.bf16 %v3975, %v3970
  %v4026 = vpack.c.bf16 %v3981, %v3976
  %v4027 = vpack.c.bf16 %v3982, %v3977
  %v4028 = vpack.c.bf16 %v3983, %v3978
  %v4029 = vpack.c.bf16 %v3984, %v3979
  %v4030 = vpack.c.bf16 %v3985, %v3980
  %v4031 = vpack.c.bf16 %v3991, %v3986
  %v4032 = vpack.c.bf16 %v3992, %v3987
  %v4033 = vpack.c.bf16 %v3993, %v3988
  %v4034 = vpack.c.bf16 %v3994, %v3989
  %v4035 = vpack.c.bf16 %v3995, %v3990
  %v4036 = vld [vmem:[%s7] sm:$0xf]
  %4037 = vmatpush.bf16.msra.mxu0 %v4031
  %4038 = vmatpush.bf16.msra.mxu0 %v4026
  %4039 = vmatpush.bf16.msra.mxu0 %v4021
  %4040 = vmatpush.bf16.msra.mxu0 %v4016
  %4041 = vmatpush.bf16.msra.mxu0 %v4011
  %4042 = vmatpush.bf16.msra.mxu0 %v4006
  %4043 = vmatpush.bf16.msra.mxu0 %v4001
  %4044 = vmatpush.bf16.msra.mxu0 %v3996
  %4045 = vmatmul.bf16.gmra.mxu0 %v4036
  %v4046 = vpop.f32.mrf.mxu0
  %v4047 = vadd.f32 0.0, %v4046
  %v4048 = vpop.f32.mrf.mxu0
  %4049 = vdwg.mxu0
  %4050 = vmatpush.bf16.msra.mxu0 %v4032
  %4051 = vmatpush.bf16.msra.mxu0 %v4027
  %4052 = vmatpush.bf16.msra.mxu0 %v4022
  %4053 = vmatpush.bf16.msra.mxu0 %v4017
  %4054 = vmatpush.bf16.msra.mxu0 %v4012
  %4055 = vmatpush.bf16.msra.mxu0 %v4007
  %4056 = vmatpush.bf16.msra.mxu0 %v4002
  %4057 = vmatpush.bf16.msra.mxu0 %v3997
  %4058 = vmatmul.bf16.gmra.mxu0 %v4036
  %v4059 = vpop.f32.mrf.mxu0
  %v4060 = vadd.f32 0.0, %v4059
  %v4061 = vpop.f32.mrf.mxu0
  %4062 = vdwg.mxu0
  %4063 = vmatpush.bf16.msra.mxu0 %v4033
  %4064 = vmatpush.bf16.msra.mxu0 %v4028
  %4065 = vmatpush.bf16.msra.mxu0 %v4023
  %4066 = vmatpush.bf16.msra.mxu0 %v4018
  %4067 = vmatpush.bf16.msra.mxu0 %v4013
  %4068 = vmatpush.bf16.msra.mxu0 %v4008
  %4069 = vmatpush.bf16.msra.mxu0 %v4003
  %4070 = vmatpush.bf16.msra.mxu0 %v3998
  %4071 = vmatmul.bf16.gmra.mxu0 %v4036
  %v4072 = vpop.f32.mrf.mxu0
  %v4073 = vadd.f32 0.0, %v4072
  %v4074 = vpop.f32.mrf.mxu0
  %4075 = vdwg.mxu0
  %4076 = vmatpush.bf16.msra.mxu0 %v4034
  %4077 = vmatpush.bf16.msra.mxu0 %v4029
  %4078 = vmatpush.bf16.msra.mxu0 %v4024
  %4079 = vmatpush.bf16.msra.mxu0 %v4019
  %4080 = vmatpush.bf16.msra.mxu0 %v4014
  %4081 = vmatpush.bf16.msra.mxu0 %v4009
  %4082 = vmatpush.bf16.msra.mxu0 %v4004
  %4083 = vmatpush.bf16.msra.mxu0 %v3999
  %4084 = vmatmul.bf16.gmra.mxu0 %v4036
  %v4085 = vpop.f32.mrf.mxu0
  %v4086 = vadd.f32 0.0, %v4085
  %v4087 = vpop.f32.mrf.mxu0
  %4088 = vdwg.mxu0
  %4089 = vmatpush.bf16.msra.mxu0 %v4035
  %4090 = vmatpush.bf16.msra.mxu0 %v4030
  %4091 = vmatpush.bf16.msra.mxu0 %v4025
  %4092 = vmatpush.bf16.msra.mxu0 %v4020
  %4093 = vmatpush.bf16.msra.mxu0 %v4015
  %4094 = vmatpush.bf16.msra.mxu0 %v4010
  %4095 = vmatpush.bf16.msra.mxu0 %v4005
  %4096 = vmatpush.bf16.msra.mxu0 %v4000
  %4097 = vmatmul.bf16.gmra.mxu0 %v4036
  %v4098 = vpop.f32.mrf.mxu0
  %v4099 = vadd.f32 0.0, %v4098
  %v4100 = vpop.f32.mrf.mxu0
  %4101 = vdwg.mxu0
  %v4102 = vpack.c.bf16 %v4047, %v4047
  %v4103 = vpack.c.bf16 %v4060, %v4060
  %v4104 = vpack.c.bf16 %v4073, %v4073
  %v4105 = vpack.c.bf16 %v4086, %v4086
  %v4106 = vpack.c.bf16 %v4099, %v4099
  %v4107 = vld [vmem:[%s8] sm:$0xf]
  %v4108 = vld [vmem:[%s8 + $0x4] sm:$0xf]
  %v4109 = vld [vmem:[%s8 + $0x8] sm:$0xf]
  %v4110 = vld [vmem:[%s8 + $0xc] sm:$0xf]
  %v4111 = vld [vmem:[%s8 + $0x10] sm:$0xf]
  %v4112 = vld [vmem:[%s8 + $0x14] sm:$0xf]
  %v4113 = vld [vmem:[%s8 + $0x18] sm:$0xf]
  %v4114 = vld [vmem:[%s8 + $0x1c] sm:$0xf]
  %v4115 = vld [vmem:[%s8 + $0x20] sm:$0xf]
  %v4116 = vld [vmem:[%s8 + $0x24] sm:$0xf]
  %v4117 = vld [vmem:[%s8 + $0x28] sm:$0xf]
  %v4118 = vld [vmem:[%s8 + $0x2c] sm:$0xf]
  %v4119 = vld [vmem:[%s8 + $0x30] sm:$0xf]
  %v4120 = vld [vmem:[%s8 + $0x34] sm:$0xf]
  %v4121 = vld [vmem:[%s8 + $0x38] sm:$0xf]
  %v4122 = vld [vmem:[%s8 + $0x3c] sm:$0xf]
  %v4123 = vld [vmem:[%s8 + $0x40] sm:$0xf]
  %v4124 = vld [vmem:[%s8 + $0x44] sm:$0xf]
  %v4125 = vld [vmem:[%s8 + $0x48] sm:$0xf]
  %v4126 = vld [vmem:[%s8 + $0x4c] sm:$0xf]
  %v4127 = vld [vmem:[%s8 + $0x50] sm:$0xf]
  %v4128 = vld [vmem:[%s8 + $0x54] sm:$0xf]
  %v4129 = vld [vmem:[%s8 + $0x58] sm:$0xf]
  %v4130 = vld [vmem:[%s8 + $0x5c] sm:$0xf]
  %v4131 = vld [vmem:[%s8 + $0x60] sm:$0xf]
  %v4132 = vld [vmem:[%s8 + $0x64] sm:$0xf]
  %v4133 = vld [vmem:[%s8 + $0x68] sm:$0xf]
  %v4134 = vld [vmem:[%s8 + $0x6c] sm:$0xf]
  %v4135 = vld [vmem:[%s8 + $0x70] sm:$0xf]
  %v4136 = vld [vmem:[%s8 + $0x74] sm:$0xf]
  %v4137 = vld [vmem:[%s8 + $0x78] sm:$0xf]
  %v4138 = vld [vmem:[%s8 + $0x7c] sm:$0xf]
  %v4139 = vld [vmem:[%s8 + $0x80] sm:$0xf]
  %v4140 = vld [vmem:[%s8 + $0x84] sm:$0xf]
  %v4141 = vld [vmem:[%s8 + $0x88] sm:$0xf]
  %v4142 = vld [vmem:[%s8 + $0x8c] sm:$0xf]
  %v4143 = vld [vmem:[%s8 + $0x90] sm:$0xf]
  %v4144 = vld [vmem:[%s8 + $0x94] sm:$0xf]
  %v4145 = vld [vmem:[%s8 + $0x98] sm:$0xf]
  %v4146 = vld [vmem:[%s8 + $0x9c] sm:$0xf]
  %v4147 = vld [vmem:[%s8 + $0xa0] sm:$0xf]
  %v4148 = vld [vmem:[%s8 + $0xa4] sm:$0xf]
  %v4149 = vld [vmem:[%s8 + $0xa8] sm:$0xf]
  %v4150 = vld [vmem:[%s8 + $0xac] sm:$0xf]
  %v4151 = vld [vmem:[%s8 + $0xb0] sm:$0xf]
  %v4152 = vld [vmem:[%s8 + $0xb4] sm:$0xf]
  %v4153 = vld [vmem:[%s8 + $0xb8] sm:$0xf]
  %v4154 = vld [vmem:[%s8 + $0xbc] sm:$0xf]
  %v4155 = vld [vmem:[%s8 + $0xc0] sm:$0xf]
  %v4156 = vld [vmem:[%s8 + $0xc4] sm:$0xf]
  %v4157 = vld [vmem:[%s8 + $0xc8] sm:$0xf]
  %v4158 = vld [vmem:[%s8 + $0xcc] sm:$0xf]
  %v4159 = vld [vmem:[%s8 + $0xd0] sm:$0xf]
  %v4160 = vld [vmem:[%s8 + $0xd4] sm:$0xf]
  %v4161 = vld [vmem:[%s8 + $0xd8] sm:$0xf]
  %v4162 = vld [vmem:[%s8 + $0xdc] sm:$0xf]
  %v4163 = vld [vmem:[%s8 + $0xe0] sm:$0xf]
  %v4164 = vld [vmem:[%s8 + $0xe4] sm:$0xf]
  %v4165 = vld [vmem:[%s8 + $0xe8] sm:$0xf]
  %v4166 = vld [vmem:[%s8 + $0xec] sm:$0xf]
  %v4167 = vld [vmem:[%s8 + $0xf0] sm:$0xf]
  %v4168 = vld [vmem:[%s8 + $0xf4] sm:$0xf]
  %v4169 = vld [vmem:[%s8 + $0xf8] sm:$0xf]
  %v4170 = vld [vmem:[%s8 + $0xfc] sm:$0xf]
  %v4171 = vld [vmem:[%s8 + $0x100] sm:$0xf]
  %v4172 = vld [vmem:[%s8 + $0x104] sm:$0xf]
  %v4173 = vld [vmem:[%s8 + $0x108] sm:$0xf]
  %v4174 = vld [vmem:[%s8 + $0x10c] sm:$0xf]
  %v4175 = vld [vmem:[%s8 + $0x110] sm:$0xf]
  %v4176 = vld [vmem:[%s8 + $0x114] sm:$0xf]
  %v4177 = vld [vmem:[%s8 + $0x118] sm:$0xf]
  %v4178 = vld [vmem:[%s8 + $0x11c] sm:$0xf]
  %v4179 = vld [vmem:[%s8 + $0x120] sm:$0xf]
  %v4180 = vld [vmem:[%s8 + $0x124] sm:$0xf]
  %v4181 = vld [vmem:[%s8 + $0x128] sm:$0xf]
  %v4182 = vld [vmem:[%s8 + $0x12c] sm:$0xf]
  %v4183 = vld [vmem:[%s9] sm:$0x1]
  %v4185 = vperm.slane %v4183, 0
  %v4263 = vunpack.c.l.b16 %v4107
  %v4264 = vunpack.c.l.b16 %v4108
  %v4265 = vunpack.c.l.b16 %v4109
  %v4266 = vunpack.c.l.b16 %v4110
  %v4267 = vunpack.c.l.b16 %v4111
  %v4268 = vunpack.c.l.b16 %v4112
  %v4269 = vunpack.c.l.b16 %v4113
  %v4270 = vunpack.c.l.b16 %v4114
  %v4271 = vunpack.c.l.b16 %v4115
  %v4272 = vunpack.c.l.b16 %v4116
  %v4273 = vunpack.c.l.b16 %v4117
  %v4274 = vunpack.c.l.b16 %v4118
  %v4275 = vunpack.c.l.b16 %v4119
  %v4276 = vunpack.c.l.b16 %v4120
  %v4277 = vunpack.c.l.b16 %v4121
  %v4278 = vunpack.c.l.b16 %v4122
  %v4279 = vunpack.c.l.b16 %v4123
  %v4280 = vunpack.c.l.b16 %v4124
  %v4281 = vunpack.c.l.b16 %v4125
  %v4282 = vunpack.c.l.b16 %v4126
  %v4283 = vunpack.c.l.b16 %v4127
  %v4284 = vunpack.c.l.b16 %v4128
  %v4285 = vunpack.c.l.b16 %v4129
  %v4286 = vunpack.c.l.b16 %v4130
  %v4287 = vunpack.c.l.b16 %v4131
  %v4288 = vunpack.c.l.b16 %v4132
  %v4289 = vunpack.c.l.b16 %v4133
  %v4290 = vunpack.c.l.b16 %v4134
  %v4291 = vunpack.c.l.b16 %v4135
  %v4292 = vunpack.c.l.b16 %v4136
  %v4293 = vunpack.c.l.b16 %v4137
  %v4294 = vunpack.c.l.b16 %v4138
  %v4295 = vunpack.c.l.b16 %v4139
  %v4296 = vunpack.c.l.b16 %v4140
  %v4297 = vunpack.c.l.b16 %v4141
  %v4298 = vunpack.c.l.b16 %v4142
  %v4299 = vunpack.c.l.b16 %v4143
  %v4300 = vunpack.c.l.b16 %v4144
  %v4301 = vunpack.c.l.b16 %v4145
  %v4302 = vunpack.c.l.b16 %v4146
  %v4303 = vunpack.c.l.b16 %v4147
  %v4304 = vunpack.c.l.b16 %v4148
  %v4305 = vunpack.c.l.b16 %v4149
  %v4306 = vunpack.c.l.b16 %v4150
  %v4307 = vunpack.c.l.b16 %v4151
  %v4308 = vunpack.c.l.b16 %v4152
  %v4309 = vunpack.c.l.b16 %v4153
  %v4310 = vunpack.c.l.b16 %v4154
  %v4311 = vunpack.c.l.b16 %v4155
  %v4312 = vunpack.c.l.b16 %v4156
  %v4313 = vunpack.c.l.b16 %v4157
  %v4314 = vunpack.c.l.b16 %v4158
  %v4315 = vunpack.c.l.b16 %v4159
  %v4316 = vunpack.c.l.b16 %v4160
  %v4317 = vunpack.c.l.b16 %v4161
  %v4318 = vunpack.c.l.b16 %v4162
  %v4319 = vunpack.c.l.b16 %v4163
  %v4320 = vunpack.c.l.b16 %v4164
  %v4321 = vunpack.c.l.b16 %v4165
  %v4322 = vunpack.c.l.b16 %v4166
  %v4323 = vunpack.c.l.b16 %v4167
  %v4324 = vunpack.c.l.b16 %v4168
  %v4325 = vunpack.c.l.b16 %v4169
  %v4326 = vunpack.c.l.b16 %v4170
  %v4327 = vunpack.c.l.b16 %v4171
  %v4328 = vunpack.c.l.b16 %v4172
  %v4329 = vunpack.c.l.b16 %v4173
  %v4330 = vunpack.c.l.b16 %v4174
  %v4331 = vunpack.c.l.b16 %v4175
  %v4332 = vunpack.c.l.b16 %v4176
  %v4333 = vunpack.c.l.b16 %v4177
  %v4334 = vunpack.c.l.b16 %v4178
  %v4335 = vunpack.c.l.b16 %v4179
  %v4336 = vunpack.c.l.b16 %v4180
  %v4337 = vunpack.c.l.b16 %v4181
  %v4338 = vunpack.c.l.b16 %v4182
  %v4339 = vpack.c.b16 %v4264, %v4263
  %v4340 = vpack.c.b16 %v4266, %v4265
  %v4341 = vpack.c.b16 %v4268, %v4267
  %v4342 = vpack.c.b16 %v4270, %v4269
  %v4343 = vpack.c.b16 %v4272, %v4271
  %v4344 = vpack.c.b16 %v4274, %v4273
  %v4345 = vpack.c.b16 %v4276, %v4275
  %v4346 = vpack.c.b16 %v4278, %v4277
  %v4347 = vpack.c.b16 %v4280, %v4279
  %v4348 = vpack.c.b16 %v4282, %v4281
  %v4349 = vpack.c.b16 %v4284, %v4283
  %v4350 = vpack.c.b16 %v4286, %v4285
  %v4351 = vpack.c.b16 %v4288, %v4287
  %v4352 = vpack.c.b16 %v4290, %v4289
  %v4353 = vpack.c.b16 %v4292, %v4291
  %v4354 = vpack.c.b16 %v4294, %v4293
  %v4355 = vpack.c.b16 %v4296, %v4295
  %v4356 = vpack.c.b16 %v4298, %v4297
  %v4357 = vpack.c.b16 %v4300, %v4299
  %v4358 = vpack.c.b16 %v4302, %v4301
  %v4359 = vpack.c.b16 %v4304, %v4303
  %v4360 = vpack.c.b16 %v4306, %v4305
  %v4361 = vpack.c.b16 %v4308, %v4307
  %v4362 = vpack.c.b16 %v4310, %v4309
  %v4363 = vpack.c.b16 %v4312, %v4311
  %v4364 = vpack.c.b16 %v4314, %v4313
  %v4365 = vpack.c.b16 %v4316, %v4315
  %v4366 = vpack.c.b16 %v4318, %v4317
  %v4367 = vpack.c.b16 %v4320, %v4319
  %v4368 = vpack.c.b16 %v4322, %v4321
  %v4369 = vpack.c.b16 %v4324, %v4323
  %v4370 = vpack.c.b16 %v4326, %v4325
  %v4371 = vpack.c.b16 %v4328, %v4327
  %v4372 = vpack.c.b16 %v4330, %v4329
  %v4373 = vpack.c.b16 %v4332, %v4331
  %v4374 = vpack.c.b16 %v4334, %v4333
  %v4375 = vpack.c.b16 %v4336, %v4335
  %v4376 = vpack.c.b16 %v4338, %v4337
  %vm4415 = vcmask 785408
  %v4417 = vsel %vm4415, %v4106, 0
  %4419 = vmatpush.bf16.msra.mxu0 %v4346
  %4420 = vmatpush.bf16.msra.mxu0 %v4345
  %4421 = vmatpush.bf16.msra.mxu0 %v4344
  %4422 = vmatpush.bf16.msra.mxu0 %v4343
  %4423 = vmatpush.bf16.msra.mxu0 %v4342
  %4424 = vmatpush.bf16.msra.mxu0 %v4341
  %4425 = vmatpush.bf16.msra.mxu0 %v4340
  %4426 = vmatpush.bf16.msra.mxu0 %v4339
  %4427 = vmatmul.bf16.gmra.mxu0 %v4102
  %v4428 = vpop.f32.mrf.mxu0
  %v4429 = vadd.f32 %v4185, %v4428
  %v4430 = vpop.f32.mrf.mxu0
  %4431 = vdwg.mxu0
  %4432 = vmatpush.bf16.msra.mxu0 %v4354
  %4433 = vmatpush.bf16.msra.mxu0 %v4353
  %4434 = vmatpush.bf16.msra.mxu0 %v4352
  %4435 = vmatpush.bf16.msra.mxu0 %v4351
  %4436 = vmatpush.bf16.msra.mxu0 %v4350
  %4437 = vmatpush.bf16.msra.mxu0 %v4349
  %4438 = vmatpush.bf16.msra.mxu0 %v4348
  %4439 = vmatpush.bf16.msra.mxu0 %v4347
  %4440 = vmatmul.bf16.gmra.mxu0 %v4103
  %v4441 = vpop.f32.mrf.mxu0
  %v4442 = vadd.f32 %v4429, %v4441
  %v4443 = vpop.f32.mrf.mxu0
  %4444 = vdwg.mxu0
  %4445 = vmatpush.bf16.msra.mxu0 %v4362
  %4446 = vmatpush.bf16.msra.mxu0 %v4361
  %4447 = vmatpush.bf16.msra.mxu0 %v4360
  %4448 = vmatpush.bf16.msra.mxu0 %v4359
  %4449 = vmatpush.bf16.msra.mxu0 %v4358
  %4450 = vmatpush.bf16.msra.mxu0 %v4357
  %4451 = vmatpush.bf16.msra.mxu0 %v4356
  %4452 = vmatpush.bf16.msra.mxu0 %v4355
  %4453 = vmatmul.bf16.gmra.mxu0 %v4104
  %v4454 = vpop.f32.mrf.mxu0
  %v4455 = vadd.f32 %v4442, %v4454
  %v4456 = vpop.f32.mrf.mxu0
  %4457 = vdwg.mxu0
  %4458 = vmatpush.bf16.msra.mxu0 %v4370
  %4459 = vmatpush.bf16.msra.mxu0 %v4369
  %4460 = vmatpush.bf16.msra.mxu0 %v4368
  %4461 = vmatpush.bf16.msra.mxu0 %v4367
  %4462 = vmatpush.bf16.msra.mxu0 %v4366
  %4463 = vmatpush.bf16.msra.mxu0 %v4365
  %4464 = vmatpush.bf16.msra.mxu0 %v4364
  %4465 = vmatpush.bf16.msra.mxu0 %v4363
  %4466 = vmatmul.bf16.gmra.mxu0 %v4105
  %v4467 = vpop.f32.mrf.mxu0
  %v4468 = vadd.f32 %v4455, %v4467
  %v4469 = vpop.f32.mrf.mxu0
  %4470 = vdwg.mxu0
  %4471 = vmatpush.bf16.msra.mxu0 0
  %4472 = vmatpush.bf16.msra.mxu0 0
  %4473 = vmatpush.bf16.msra.mxu0 %v4376
  %4474 = vmatpush.bf16.msra.mxu0 %v4375
  %4475 = vmatpush.bf16.msra.mxu0 %v4374
  %4476 = vmatpush.bf16.msra.mxu0 %v4373
  %4477 = vmatpush.bf16.msra.mxu0 %v4372
  %4478 = vmatpush.bf16.msra.mxu0 %v4371
  %4479 = vmatmul.bf16.gmra.mxu0 %v4417
  %v4480 = vpop.f32.mrf.mxu0
  %v4481 = vadd.f32 %v4468, %v4480
  %v4482 = vpop.f32.mrf.mxu0
  %4483 = vdwg.mxu0
  %vm4484 = vcmask 261120
  %4485 = vst.msk [vmem:[%s10] sm:$0xff] %vm4484, %v4481
  // Predicated region
  $region42: #{_fused_forward.1} parent=0 // pred_check
    _
  $region43: #{_fused_forward.1} parent=0 // pred_check_branch
    %4487 = sbr.rel (0) target = $region45
  $region44: #{_fused_forward.1} parent=0 // pred_region
    _
  $region45: #{_fused_forward.1} parent=0 // pred_fallthru
    _
  // Predicated region
  $region46: #{_fused_forward.1} parent=0 // pred_check
    _
  $region47: #{_fused_forward.1} parent=0 // pred_check_branch
    %4489 = sbr.rel (0) target = $region49
  $region48: #{_fused_forward.1} parent=0 // pred_region
    _
  $region49: #{_fused_forward.1} parent=0 // pred_fallthru
    _

</llo_original>
